<compile_context>
chip_gen: v7x
topology: tpu7x:2x2x1
jax: 0.10.0
libtpu: 0.0.40
codegen_flags: <defaults>
</compile_context>

<pallas_src>
import functools
import math

import jax
import jax.numpy as jnp
from jax import lax
from jax.experimental import pallas as pl
from jax.experimental.pallas import tpu as pltpu


def _rup(n, m):
    return -(-int(n) // int(m)) * int(m)


def _padded_bytes(shape, dtype):
    """VMEM footprint of one buffer with (sublane, lane) padding applied."""
    itemsize = jnp.dtype(dtype).itemsize
    shape = tuple(int(s) for s in shape)
    if len(shape) == 1:
        shape = (1,) + shape
    *lead, s2, s1 = shape
    lead_prod = 1
    for v in lead:
        lead_prod *= v
    sublane = max(1, 32 // itemsize)          # 8 rows for f32, 16 for bf16
    return lead_prod * _rup(s2, sublane) * _rup(s1, 128) * itemsize


def _self_attention_kernel(x_ref, gamma_ref, beta_ref, wq_ref, bq_ref,
                           wkv_ref, bkv_ref, wout_ref, bout_ref, o_ref,
                           k_ref, v_ref, xn_ref, q_ref, y_ref,
                           *, n_head, tq, head_group, kv_stripe):
    _, C, S = x_ref.shape            # x block: (1, C, S) for the current sample
    d = C // n_head
    qt = pl.program_id(1)

    # ---- once per sample: GroupNorm(1, C) + cached xn / K / V (all channel-major) ----
    @pl.when(qt == 0)
    def _():
        xf = x_ref[0].astype(jnp.float32)                         # (C, S)
        inv_n = 1.0 / float(C * S)
        mean = jnp.sum(xf) * inv_n
        xc = xf - mean                                            # two-pass variance
        var = jnp.sum(xc * xc) * inv_n
        rstd = lax.rsqrt(var + 1e-5)
        # per-channel affine broadcast as (C, 1) over (C, S); no transpose anywhere.
        xn_ref[...] = (xc * (gamma_ref[...] * rstd) + beta_ref[...]).astype(jnp.bfloat16)

        # K/V projection striped over S to bound transients; results land directly in
        # the lane-dense (h, d, S) layout (S on lanes) -> no head relayouts.
        def kv_body(si, carry):
            s0 = pl.multiple_of(si * kv_stripe, kv_stripe)
            xn_s = xn_ref[:, pl.ds(s0, kv_stripe)]                           # (C, st)
            kv = jnp.dot(wkv_ref[...], xn_s,
                         preferred_element_type=jnp.float32) + bkv_ref[...]  # (2C, st)
            k_ref[:, :, pl.ds(s0, kv_stripe)] = (
                kv[:C].reshape(n_head, d, kv_stripe).astype(jnp.bfloat16))
            v_ref[:, :, pl.ds(s0, kv_stripe)] = (
                kv[C:].reshape(n_head, d, kv_stripe).astype(jnp.bfloat16))
            return carry

        lax.fori_loop(0, S // kv_stripe, kv_body, 0)

    # ---- per query tile (channel-major everywhere; no in-kernel transposes) ----
    q0 = pl.multiple_of(qt * tq, tq)
    xn_t = xn_ref[:, pl.ds(q0, tq)]                               # (C, tq) bf16 (cached)
    # q projection (scale^2 already folded into wq/bq in the wrapper)
    q = jnp.dot(wq_ref[...], xn_t,
                preferred_element_type=jnp.float32) + bq_ref[...]  # (C, tq) f32
    q_ref[...] = q.reshape(n_head, d, tq).astype(jnp.bfloat16)     # (h, d, tq)

    # Head-group loop bounds the (hg, tq, S) f32 score slab (VMEM / vreg pressure).
    def attn_group(g, carry):
        h0 = pl.multiple_of(g * head_group, head_group)
        qg = q_ref[pl.ds(h0, head_group)]                          # (hg, d, tq) bf16
        kg = k_ref[pl.ds(h0, head_group)]                          # (hg, d, S)  bf16
        vg = v_ref[pl.ds(h0, head_group)]                          # (hg, d, S)  bf16
        att = lax.dot_general(qg, kg, (((1,), (1,)), ((0,), (0,))),
                              preferred_element_type=jnp.float32)  # (hg, tq, S) f32
        att = att - jnp.max(att, axis=-1, keepdims=True)
        p = jnp.exp(att)                                           # f32
        l = jnp.sum(p, axis=-1)                                    # (hg, tq) f32 row-sums
        # Deferred normalization: PV on unnormalized bf16 probabilities, then scale the
        # small (hg, d, tq) result instead of the full (hg, tq, S) slab.
        y_un = lax.dot_general(vg, p.astype(jnp.bfloat16),
                               (((2,), (2,)), ((0,), (0,))),
                               preferred_element_type=jnp.float32)  # (hg, d, tq) f32
        y_g = y_un * pl.reciprocal(l, approx=True)[:, None, :]
        r0 = pl.multiple_of(g * head_group * d, head_group * d)
        y_ref[pl.ds(r0, head_group * d), :] = (
            y_g.reshape(head_group * d, tq).astype(jnp.bfloat16))
        return carry

    lax.fori_loop(0, n_head // head_group, attn_group, 0)

    out = jnp.dot(wout_ref[...], y_ref[...],
                  preferred_element_type=jnp.float32) + bout_ref[...]   # (C, tq) f32
    # TODO(synk): dropout_rate=0.0 in the reference module -> identity; no RNG needed.
    x_t = x_ref[0, :, pl.ds(q0, tq)].astype(jnp.float32)           # residual slab
    o_ref[0] = (x_t + out).astype(o_ref.dtype)


def self_attention_1d(x, gamma, beta, w_qkv, b_qkv, w_out, b_out, n_head,
                      q_tile=None, head_group=None, kv_stripe=None):
    """x: (N, C, S) like the PyTorch module (NCW; f32 or bf16). Returns (N, C, S)."""
    N, C, S = x.shape
    assert C % n_head == 0
    d = C // n_head
    qscale = float(d) ** (-0.5)             # == (d**-0.25)**2, folded into q only

    if q_tile is None:
        q_tile = 128 if (S > 128 and S % 128 == 0) else S
    assert S % q_tile == 0
    num_q = S // q_tile

    if head_group is None:
        # Cap the transient score slab (att f32 + exp f32 + bf16 copy) at ~8 MiB.
        per_head = q_tile * _rup(S, 128) * (4 + 4 + 2)
        head_group = n_head
        while head_group > 1 and head_group * per_head > (8 << 20):
            head_group -= 1
            while n_head % head_group:
                head_group -= 1
    assert n_head % head_group == 0

    if kv_stripe is None:
        kv_stripe = S
        for cand in (512, 256, 128):
            if S > cand and S % cand == 0:
                kv_stripe = cand
                break
    assert S % kv_stripe == 0

    # 1x1-conv weights stay (out, in): the kernel is channel-major so no transposes are
    # needed.  d**-0.5 folded into Wq / bq; biases/affine passed as (rows, 1) columns.
    wq = (w_qkv[:C] * qscale).astype(jnp.bfloat16)                      # (C, C)
    wkv = w_qkv[C:].astype(jnp.bfloat16)                                # (2C, C)
    wout = w_out.astype(jnp.bfloat16)                                   # (C, C)
    bq = (b_qkv[:C] * qscale).reshape(C, 1).astype(jnp.float32)
    bkv = b_qkv[C:].reshape(2 * C, 1).astype(jnp.float32)
    bout = b_out.reshape(C, 1).astype(jnp.float32)
    gamma2 = gamma.reshape(C, 1).astype(jnp.float32)
    beta2 = beta.reshape(C, 1).astype(jnp.float32)

    kernel = functools.partial(_self_attention_kernel, n_head=n_head, tq=q_tile,
                               head_group=head_group, kv_stripe=kv_stripe)

    # --- padding-aware VMEM budget (blocks double-buffered; weights counted x2 as an
    # upper bound so the same limit also covers the non-Buffered(1) fallback). ---
    vmem = 2 * _padded_bytes((1, C, S), x.dtype)            # x block
    vmem += 2 * _padded_bytes((1, C, q_tile), x.dtype)      # output block
    for shp, dt in (((C, 1), jnp.float32), ((C, 1), jnp.float32),
                    ((C, C), jnp.bfloat16), ((C, 1), jnp.float32),
                    ((2 * C, C), jnp.bfloat16), ((2 * C, 1), jnp.float32),
                    ((C, C), jnp.bfloat16), ((C, 1), jnp.float32)):
        vmem += 2 * _padded_bytes(shp, dt)
    for shp, dt in (((n_head, d, S), jnp.bfloat16), ((n_head, d, S), jnp.bfloat16),
                    ((C, S), jnp.bfloat16), ((n_head, d, q_tile), jnp.bfloat16),
                    ((C, q_tile), jnp.bfloat16)):
        vmem += _padded_bytes(shp, dt)
    transient = (head_group * q_tile * _rup(S, 128) * (4 + 4 + 2)   # att / exp / bf16 p
                 + _padded_bytes((2 * C, kv_stripe), jnp.float32)   # kv stripe temp
                 + 4 * _padded_bytes((C, q_tile), jnp.float32))     # q / out temps
    vmem_limit = int(min(64 << 20,
                         max(int((vmem + transient) * 1.4) + (2 << 20), 16 << 20)))

    bytes_x = x.size * x.dtype.itemsize
    w_bytes = 4 * C * C * 2 + 6 * C * 4
    cost = pl.CostEstimate(
        flops=int(N * (2 * S * C * 3 * C + 4 * n_head * S * S * d + 2 * S * C * C)),
        transcendentals=int(N * n_head * S * S),
        bytes_accessed=int(2 * bytes_x + w_bytes),
    )

    def _const_spec(shape, mode):
        zeros = (0,) * len(shape)
        if mode is None:
            return pl.BlockSpec(shape, lambda b, t: zeros)
        return pl.BlockSpec(shape, lambda b, t: zeros, pipeline_mode=mode)

    def _run(weight_mode):
        grid_spec = pltpu.PrefetchScalarGridSpec(
            num_scalar_prefetch=0,
            grid=(N, num_q),
            in_specs=[
                pl.BlockSpec((1, C, S), lambda b, t: (b, 0, 0)),     # x (full sample)
                _const_spec((C, 1), weight_mode),                    # gamma
                _const_spec((C, 1), weight_mode),                    # beta
                _const_spec((C, C), weight_mode),                    # Wq * s^2 (bf16)
                _const_spec((C, 1), weight_mode),                    # bq * s^2
                _const_spec((2 * C, C), weight_mode),                # Wkv (bf16)
                _const_spec((2 * C, 1), weight_mode),                # bkv
                _const_spec((C, C), weight_mode),                    # Wout (bf16)
                _const_spec((C, 1), weight_mode),                    # bout
            ],
            out_specs=pl.BlockSpec((1, C, q_tile), lambda b, t: (b, 0, t)),
            scratch_shapes=[
                pltpu.VMEM((n_head, d, S), jnp.bfloat16),      # K cache, S lane-dense
                pltpu.VMEM((n_head, d, S), jnp.bfloat16),      # V cache, S lane-dense
                pltpu.VMEM((C, S), jnp.bfloat16),              # cached normalized acts
                pltpu.VMEM((n_head, d, q_tile), jnp.bfloat16),  # per-tile q (head-sliced)
                pltpu.VMEM((C, q_tile), jnp.bfloat16),         # per-tile attention out
            ],
        )
        # TODO(synk): with N=1 on v7x (2 TCs) the single "parallel" axis leaves one core
        # idle; recovering it needs a separate KV-precompute pallas_call so the query
        # axis can be split across cores.
        return pl.pallas_call(
            kernel,
            out_shape=jax.ShapeDtypeStruct((N, C, S), x.dtype),
            grid_spec=grid_spec,
            compiler_params=pltpu.CompilerParams(
                dimension_semantics=("parallel", "arbitrary"),
                vmem_limit_bytes=vmem_limit),
            cost_estimate=cost,
        )(x, gamma2, beta2, wq, bq, wkv, bkv, wout, bout)

    try:
        # Grid-invariant weights/biases: single-buffer instead of default double-buffer.
        return _run(pl.Buffered(1))
    except Exception:   # jax versions that reject buffer_count=1 / pipeline_mode
        return _run(None)


def _reference(x, gamma, beta, w_qkv, b_qkv, w_out, b_out, n_head):
    """Pure-JAX replica of the PyTorch forward for validation."""
    N, C, S = x.shape
    d = C // n_head
    mean = jnp.mean(x, axis=(1, 2), keepdims=True)
    var = jnp.var(x, axis=(1, 2), keepdims=True)
    xn = (x - mean) / jnp.sqrt(var + 1e-5)
    xn = xn * gamma[None, :, None] + beta[None, :, None]
    qkv = jnp.einsum('oc,ncs->nos', w_qkv, xn) + b_qkv[None, :, None]   # (N, 3C, S)
    qkv = qkv.reshape(N, n_head * 3, d, S).transpose(0, 1, 3, 2)        # (N, 3H, S, d)
    q, k, v = jnp.split(qkv, 3, axis=1)
    scale = d ** (-0.25)
    att = jnp.einsum('nhqd,nhkd->nhqk', q * scale, k * scale)
    att = jax.nn.softmax(att, axis=-1)
    y = jnp.einsum('nhqk,nhkd->nhqd', att, v)                            # (N, H, S, d)
    y = y.transpose(0, 1, 3, 2).reshape(N, C, S)
    out = jnp.einsum('oc,ncs->nos', w_out, y) + b_out[None, :, None]
    return x + out


if __name__ == "__main__":
    # Small, but exercises 2 query tiles (TQ=128), 2 head groups and 2 K/V stripes.
    N, C, S = 2, 64, 256
    n_head = 4

    key = jax.random.PRNGKey(0)
    kx, kqw, kqb, kow, kob, kg, kb = jax.random.split(key, 7)

    x = jax.random.normal(kx, (N, C, S), dtype=jnp.float32)

    bound = 1.0 / math.sqrt(C)   # Conv1d (kernel_size=1) weights squeezed to 2-D
    w_qkv = jax.random.uniform(kqw, (3 * C, C), jnp.float32, -bound, bound)
    b_qkv = jax.random.uniform(kqb, (3 * C,), jnp.float32, -bound, bound)
    w_out = jax.random.uniform(kow, (C, C), jnp.float32, -bound, bound)
    b_out = jax.random.uniform(kob, (C,), jnp.float32, -bound, bound)
    gamma = jnp.ones((C,), jnp.float32) + 0.1 * jax.random.normal(kg, (C,), jnp.float32)
    beta = 0.1 * jax.random.normal(kb, (C,), jnp.float32)

    out = self_attention_1d(x, gamma, beta, w_qkv, b_qkv, w_out, b_out, n_head,
                            head_group=2, kv_stripe=128)
    out = jax.block_until_ready(out)

    ref = _reference(x, gamma, beta, w_qkv, b_qkv, w_out, b_out, n_head)
    err = float(jnp.max(jnp.abs(out - ref)))
    assert out.shape == (N, C, S)
    # bf16 MXU operands (f32 accumulation) + approx reciprocal -> loosened tolerance.
    assert jnp.allclose(out, ref, atol=5e-2, rtol=5e-2), err

    print("KERNEL_OK")
</pallas_src>

<mosaic_0001>
module attributes {stable_mosaic.version = 11 : i64} {
  func.func @_self_attention_kernel(%arg0: i32, %arg1: i32, %arg2: memref<1x64x256xf32, #tpu.memory_space<vmem>>, %arg3: memref<64x1xf32, #tpu.memory_space<vmem>>, %arg4: memref<64x1xf32, #tpu.memory_space<vmem>>, %arg5: memref<64x64xbf16, #tpu.memory_space<vmem>>, %arg6: memref<64x1xf32, #tpu.memory_space<vmem>>, %arg7: memref<128x64xbf16, #tpu.memory_space<vmem>>, %arg8: memref<128x1xf32, #tpu.memory_space<vmem>>, %arg9: memref<64x64xbf16, #tpu.memory_space<vmem>>, %arg10: memref<64x1xf32, #tpu.memory_space<vmem>>, %arg11: memref<1x64x128xf32, #tpu.memory_space<vmem>>, %arg12: memref<4x16x256xbf16, #tpu.memory_space<vmem>>, %arg13: memref<4x16x256xbf16, #tpu.memory_space<vmem>>, %arg14: memref<64x256xbf16, #tpu.memory_space<vmem>>, %arg15: memref<4x16x128xbf16, #tpu.memory_space<vmem>>, %arg16: memref<64x128xbf16, #tpu.memory_space<vmem>>) attributes {dimension_semantics = [#tpu.dimension_semantics<parallel>, #tpu.dimension_semantics<arbitrary>], iteration_bounds = array<i64: 2, 2>, scalar_prefetch = 0 : i64, scratch_operands = 5 : i64, tpu.core_type = #tpu.core_type<tc>, window_params = [{transform_indices = @transform_0, window_bounds = array<i64: 1, 64, 256>}, {pipeline_mode = #tpu.pipeline_mode<synchronous>, transform_indices = @transform_1, window_bounds = array<i64: 64, 1>}, {pipeline_mode = #tpu.pipeline_mode<synchronous>, transform_indices = @transform_2, window_bounds = array<i64: 64, 1>}, {pipeline_mode = #tpu.pipeline_mode<synchronous>, transform_indices = @transform_3, window_bounds = array<i64: 64, 64>}, {pipeline_mode = #tpu.pipeline_mode<synchronous>, transform_indices = @transform_4, window_bounds = array<i64: 64, 1>}, {pipeline_mode = #tpu.pipeline_mode<synchronous>, transform_indices = @transform_5, window_bounds = array<i64: 128, 64>}, {pipeline_mode = #tpu.pipeline_mode<synchronous>, transform_indices = @transform_6, window_bounds = array<i64: 128, 1>}, {pipeline_mode = #tpu.pipeline_mode<synchronous>, transform_indices = @transform_7, window_bounds = array<i64: 64, 64>}, {pipeline_mode = #tpu.pipeline_mode<synchronous>, transform_indices = @transform_8, window_bounds = array<i64: 64, 1>}, {transform_indices = @transform_9, window_bounds = array<i64: 1, 64, 128>}]} {
    %c0_i32 = arith.constant 0 : i32
    %0 = arith.cmpi eq, %arg1, %c0_i32 : i32
    %1 = arith.extui %0 : i1 to i32
    %c0_i32_0 = arith.constant 0 : i32
    %2 = arith.cmpi ne, %1, %c0_i32_0 : i32
    scf.if %2 {
      %c0_22 = arith.constant 0 : index
      %c0_23 = arith.constant 0 : index
      %c0_24 = arith.constant 0 : index
      %29 = vector.load %arg2[%c0_22, %c0_23, %c0_24] : memref<1x64x256xf32, #tpu.memory_space<vmem>>, vector<1x64x256xf32>
      %30 = vector.shape_cast %29 : vector<1x64x256xf32> to vector<64x256xf32>
      %31 = vector.shape_cast %30 : vector<64x256xf32> to vector<1x64x256xf32>
      %cst_25 = arith.constant dense<0.000000e+00> : vector<1xf32>
      %32 = vector.multi_reduction <add>, %31, %cst_25 [1, 2] : vector<1x64x256xf32> to vector<1xf32>
      %33 = vector.shape_cast %32 : vector<1xf32> to vector<1x1x1xf32>
      %34 = vector.extract %33[0, 0, 0] : f32 from vector<1x1x1xf32>
      %cst_26 = arith.constant 6.10351563E-5 : f32
      %35 = arith.mulf %34, %cst_26 : f32
      %36 = vector.broadcast %35 : f32 to vector<64x256xf32>
      %37 = arith.subf %30, %36 : vector<64x256xf32>
      %38 = arith.mulf %37, %37 : vector<64x256xf32>
      %39 = vector.shape_cast %38 : vector<64x256xf32> to vector<1x64x256xf32>
      %cst_27 = arith.constant dense<0.000000e+00> : vector<1xf32>
      %40 = vector.multi_reduction <add>, %39, %cst_27 [1, 2] : vector<1x64x256xf32> to vector<1xf32>
      %41 = vector.shape_cast %40 : vector<1xf32> to vector<1x1x1xf32>
      %42 = vector.extract %41[0, 0, 0] : f32 from vector<1x1x1xf32>
      %cst_28 = arith.constant 6.10351563E-5 : f32
      %43 = arith.mulf %42, %cst_28 : f32
      %cst_29 = arith.constant 9.99999974E-6 : f32
      %44 = arith.addf %43, %cst_29 : f32
      %45 = math.rsqrt %44 : f32
      %c0_30 = arith.constant 0 : index
      %c0_31 = arith.constant 0 : index
      %46 = vector.load %arg3[%c0_30, %c0_31] : memref<64x1xf32, #tpu.memory_space<vmem>>, vector<64x1xf32>
      %47 = vector.broadcast %45 : f32 to vector<64x1xf32>
      %48 = arith.mulf %46, %47 : vector<64x1xf32>
      %49 = vector.broadcast %48 : vector<64x1xf32> to vector<64x256xf32>
      %50 = arith.mulf %37, %49 : vector<64x256xf32>
      %c0_32 = arith.constant 0 : index
      %c0_33 = arith.constant 0 : index
      %51 = vector.load %arg4[%c0_32, %c0_33] : memref<64x1xf32, #tpu.memory_space<vmem>>, vector<64x1xf32>
      %52 = vector.broadcast %51 : vector<64x1xf32> to vector<64x256xf32>
      %53 = arith.addf %50, %52 : vector<64x256xf32>
      %54 = arith.truncf %53 : vector<64x256xf32> to vector<64x256xbf16>
      %c0_34 = arith.constant 0 : index
      %c0_35 = arith.constant 0 : index
      %55 = vector.load %arg14[%c0_34, %c0_35] : memref<64x256xbf16, #tpu.memory_space<vmem>>, vector<64x256xbf16>
      tpu.vector_store %arg14[%c0_34, %c0_35], %54 {strides = array<i32>} : memref<64x256xbf16, #tpu.memory_space<vmem>>, vector<64x256xbf16>,
      %c0_i32_36 = arith.constant 0 : i32
      %c2_i32_37 = arith.constant 2 : i32
      %56 = arith.addi %c0_i32_36, %c2_i32_37 : i32
      %c1_i32_38 = arith.constant 1 : i32
      scf.for %arg17 = %c0_i32_36 to %56 step %c1_i32_38  : i32 {
        %c128_i32_40 = arith.constant 128 : i32
        %57 = arith.muli %arg17, %c128_i32_40 : i32
        %58 = tpu.assume_multiple %57, 128 : i32
        %c0_41 = arith.constant 0 : index
        %59 = arith.index_cast %58 : i32 to index
        %60 = vector.load %arg14[%c0_41, %59] : memref<64x256xbf16, #tpu.memory_space<vmem>>, vector<64x128xbf16>
        %c0_42 = arith.constant 0 : index
        %c0_43 = arith.constant 0 : index
        %61 = vector.load %arg7[%c0_42, %c0_43] : memref<128x64xbf16, #tpu.memory_space<vmem>>, vector<128x64xbf16>
        %cst_44 = arith.constant dense<0.000000e+00> : vector<128x128xf32>
        %62 = tpu.matmul %61, %60, %cst_44 {dimension_numbers = #tpu.dot_dimension_numbers<[1], [0], [0], [1], [0, 0, 1, 1], [], []>} : vector<128x64xbf16>, vector<64x128xbf16>, vector<128x128xf32> -> vector<128x128xf32>
        %c0_45 = arith.constant 0 : index
        %c0_46 = arith.constant 0 : index
        %63 = vector.load %arg8[%c0_45, %c0_46] : memref<128x1xf32, #tpu.memory_space<vmem>>, vector<128x1xf32>
        %64 = vector.broadcast %63 : vector<128x1xf32> to vector<128x128xf32>
        %65 = arith.addf %62, %64 : vector<128x128xf32>
        %66 = vector.extract_strided_slice %65 {offsets = [0, 0], sizes = [64, 128], strides = [1, 1]} : vector<128x128xf32> to vector<64x128xf32>
        %67 = vector.shape_cast %66 : vector<64x128xf32> to vector<4x16x128xf32>
        %68 = arith.truncf %67 : vector<4x16x128xf32> to vector<4x16x128xbf16>
        %c0_47 = arith.constant 0 : index
        %c0_48 = arith.constant 0 : index
        %69 = arith.index_cast %58 : i32 to index
        %70 = vector.load %arg12[%c0_47, %c0_48, %69] : memref<4x16x256xbf16, #tpu.memory_space<vmem>>, vector<4x16x128xbf16>
        tpu.vector_store %arg12[%c0_47, %c0_48, %69], %68 {strides = array<i32>} : memref<4x16x256xbf16, #tpu.memory_space<vmem>>, vector<4x16x128xbf16>,
        %71 = vector.extract_strided_slice %65 {offsets = [64, 0], sizes = [64, 128], strides = [1, 1]} : vector<128x128xf32> to vector<64x128xf32>
        %72 = vector.shape_cast %71 : vector<64x128xf32> to vector<4x16x128xf32>
        %73 = arith.truncf %72 : vector<4x16x128xf32> to vector<4x16x128xbf16>
        %c0_49 = arith.constant 0 : index
        %c0_50 = arith.constant 0 : index
        %74 = arith.index_cast %58 : i32 to index
        %75 = vector.load %arg13[%c0_49, %c0_50, %74] : memref<4x16x256xbf16, #tpu.memory_space<vmem>>, vector<4x16x128xbf16>
        tpu.vector_store %arg13[%c0_49, %c0_50, %74], %73 {strides = array<i32>} : memref<4x16x256xbf16, #tpu.memory_space<vmem>>, vector<4x16x128xbf16>,
      }
      %c2_i32_39 = arith.constant 2 : i32
    } else {
    }
    %c128_i32 = arith.constant 128 : i32
    %3 = arith.muli %arg1, %c128_i32 : i32
    %4 = tpu.assume_multiple %3, 128 : i32
    %c0 = arith.constant 0 : index
    %5 = arith.index_cast %4 : i32 to index
    %6 = vector.load %arg14[%c0, %5] : memref<64x256xbf16, #tpu.memory_space<vmem>>, vector<64x128xbf16>
    %c0_1 = arith.constant 0 : index
    %c0_2 = arith.constant 0 : index
    %7 = vector.load %arg5[%c0_1, %c0_2] : memref<64x64xbf16, #tpu.memory_space<vmem>>, vector<64x64xbf16>
    %cst = arith.constant dense<0.000000e+00> : vector<64x128xf32>
    %8 = tpu.matmul %7, %6, %cst {dimension_numbers = #tpu.dot_dimension_numbers<[1], [0], [0], [1], [0, 0, 1, 1], [], []>} : vector<64x64xbf16>, vector<64x128xbf16>, vector<64x128xf32> -> vector<64x128xf32>
    %c0_3 = arith.constant 0 : index
    %c0_4 = arith.constant 0 : index
    %9 = vector.load %arg6[%c0_3, %c0_4] : memref<64x1xf32, #tpu.memory_space<vmem>>, vector<64x1xf32>
    %10 = vector.broadcast %9 : vector<64x1xf32> to vector<64x128xf32>
    %11 = arith.addf %8, %10 : vector<64x128xf32>
    %12 = vector.shape_cast %11 : vector<64x128xf32> to vector<4x16x128xf32>
    %13 = arith.truncf %12 : vector<4x16x128xf32> to vector<4x16x128xbf16>
    %c0_5 = arith.constant 0 : index
    %c0_6 = arith.constant 0 : index
    %c0_7 = arith.constant 0 : index
    %14 = vector.load %arg15[%c0_5, %c0_6, %c0_7] : memref<4x16x128xbf16, #tpu.memory_space<vmem>>, vector<4x16x128xbf16>
    tpu.vector_store %arg15[%c0_5, %c0_6, %c0_7], %13 {strides = array<i32>} : memref<4x16x128xbf16, #tpu.memory_space<vmem>>, vector<4x16x128xbf16>,
    %c0_i32_8 = arith.constant 0 : i32
    %c2_i32 = arith.constant 2 : i32
    %15 = arith.addi %c0_i32_8, %c2_i32 : i32
    %c1_i32 = arith.constant 1 : i32
    scf.for %arg17 = %c0_i32_8 to %15 step %c1_i32  : i32 {
      %c2_i32_22 = arith.constant 2 : i32
      %29 = arith.muli %arg17, %c2_i32_22 : i32
      %30 = tpu.assume_multiple %29, 2 : i32
      %31 = arith.index_cast %30 : i32 to index
      %c0_23 = arith.constant 0 : index
      %c0_24 = arith.constant 0 : index
      %32 = vector.load %arg15[%31, %c0_23, %c0_24] : memref<4x16x128xbf16, #tpu.memory_space<vmem>>, vector<2x16x128xbf16>
      %33 = arith.index_cast %30 : i32 to index
      %c0_25 = arith.constant 0 : index
      %c0_26 = arith.constant 0 : index
      %34 = vector.load %arg12[%33, %c0_25, %c0_26] : memref<4x16x256xbf16, #tpu.memory_space<vmem>>, vector<2x16x256xbf16>
      %35 = arith.index_cast %30 : i32 to index
      %c0_27 = arith.constant 0 : index
      %c0_28 = arith.constant 0 : index
      %36 = vector.load %arg13[%35, %c0_27, %c0_28] : memref<4x16x256xbf16, #tpu.memory_space<vmem>>, vector<2x16x256xbf16>
      %cst_29 = arith.constant dense<0.000000e+00> : vector<2x128x256xf32>
      %37 = tpu.matmul %32, %34, %cst_29 {dimension_numbers = #tpu.dot_dimension_numbers<[1], [1], [2], [2], [0, 0, 0, 2, 1, 2], [0], [0]>} : vector<2x16x128xbf16>, vector<2x16x256xbf16>, vector<2x128x256xf32> -> vector<2x128x256xf32>
      %cst_30 = arith.constant dense<0xFF800000> : vector<2x128xf32>
      %38 = vector.multi_reduction <maximumf>, %37, %cst_30 [2] : vector<2x128x256xf32> to vector<2x128xf32>
      %39 = vector.shape_cast %38 : vector<2x128xf32> to vector<2x128x1xf32>
      %40 = vector.broadcast %39 : vector<2x128x1xf32> to vector<2x128x256xf32>
      %41 = arith.subf %37, %40 : vector<2x128x256xf32>
      %42 = math.exp %41 : vector<2x128x256xf32>
      %cst_31 = arith.constant dense<0.000000e+00> : vector<2x128xf32>
      %43 = vector.multi_reduction <add>, %42, %cst_31 [2] : vector<2x128x256xf32> to vector<2x128xf32>
      %44 = arith.truncf %42 : vector<2x128x256xf32> to vector<2x128x256xbf16>
      %cst_32 = arith.constant dense<0.000000e+00> : vector<2x16x128xf32>
      %45 = tpu.matmul %36, %44, %cst_32 {dimension_numbers = #tpu.dot_dimension_numbers<[2], [2], [1], [1], [0, 0, 0, 1, 1, 1], [0], [0]>} : vector<2x16x256xbf16>, vector<2x128x256xbf16>, vector<2x16x128xf32> -> vector<2x16x128xf32>
      %46 = tpu.reciprocal %43 {approx = true} : vector<2x128xf32> -> vector<2x128xf32>
      %47 = vector.shape_cast %46 : vector<2x128xf32> to vector<2x1x128xf32>
      %48 = vector.broadcast %47 : vector<2x1x128xf32> to vector<2x16x128xf32>
      %49 = arith.mulf %45, %48 : vector<2x16x128xf32>
      %c2_i32_33 = arith.constant 2 : i32
      %50 = arith.muli %arg17, %c2_i32_33 : i32
      %c16_i32 = arith.constant 16 : i32
      %51 = arith.muli %50, %c16_i32 : i32
      %52 = tpu.assume_multiple %51, 32 : i32
      %53 = vector.shape_cast %49 : vector<2x16x128xf32> to vector<32x128xf32>
      %54 = arith.truncf %53 : vector<32x128xf32> to vector<32x128xbf16>
      %55 = arith.index_cast %52 : i32 to index
      %c0_34 = arith.constant 0 : index
      %56 = vector.load %arg16[%55, %c0_34] : memref<64x128xbf16, #tpu.memory_space<vmem>>, vector<32x128xbf16>
      tpu.vector_store %arg16[%55, %c0_34], %54 {strides = array<i32>} : memref<64x128xbf16, #tpu.memory_space<vmem>>, vector<32x128xbf16>,
    }
    %c2_i32_9 = arith.constant 2 : i32
    %c0_10 = arith.constant 0 : index
    %c0_11 = arith.constant 0 : index
    %16 = vector.load %arg9[%c0_10, %c0_11] : memref<64x64xbf16, #tpu.memory_space<vmem>>, vector<64x64xbf16>
    %c0_12 = arith.constant 0 : index
    %c0_13 = arith.constant 0 : index
    %17 = vector.load %arg16[%c0_12, %c0_13] : memref<64x128xbf16, #tpu.memory_space<vmem>>, vector<64x128xbf16>
    %cst_14 = arith.constant dense<0.000000e+00> : vector<64x128xf32>
    %18 = tpu.matmul %16, %17, %cst_14 {dimension_numbers = #tpu.dot_dimension_numbers<[1], [0], [0], [1], [0, 0, 1, 1], [], []>} : vector<64x64xbf16>, vector<64x128xbf16>, vector<64x128xf32> -> vector<64x128xf32>
    %c0_15 = arith.constant 0 : index
    %c0_16 = arith.constant 0 : index
    %19 = vector.load %arg10[%c0_15, %c0_16] : memref<64x1xf32, #tpu.memory_space<vmem>>, vector<64x1xf32>
    %20 = vector.broadcast %19 : vector<64x1xf32> to vector<64x128xf32>
    %21 = arith.addf %18, %20 : vector<64x128xf32>
    %c0_17 = arith.constant 0 : index
    %c0_18 = arith.constant 0 : index
    %22 = arith.index_cast %4 : i32 to index
    %23 = vector.load %arg2[%c0_17, %c0_18, %22] : memref<1x64x256xf32, #tpu.memory_space<vmem>>, vector<1x64x128xf32>
    %24 = vector.shape_cast %23 : vector<1x64x128xf32> to vector<64x128xf32>
    %25 = arith.addf %24, %21 : vector<64x128xf32>
    %c0_19 = arith.constant 0 : index
    %c0_20 = arith.constant 0 : index
    %c0_21 = arith.constant 0 : index
    %26 = vector.load %arg11[%c0_19, %c0_20, %c0_21] : memref<1x64x128xf32, #tpu.memory_space<vmem>>, vector<1x64x128xf32>
    %27 = vector.shape_cast %26 : vector<1x64x128xf32> to vector<64x128xf32>
    %28 = vector.shape_cast %25 : vector<64x128xf32> to vector<1x64x128xf32>
    tpu.vector_store %arg11[%c0_19, %c0_20, %c0_21], %28 {strides = array<i32>} : memref<1x64x128xf32, #tpu.memory_space<vmem>>, vector<1x64x128xf32>,
    return
  }
  func.func @transform_0(%arg0: i32, %arg1: i32) -> (i32, i32, i32) {
    %c0_i32 = arith.constant 0 : i32
    %c0_i32_0 = arith.constant 0 : i32
    %c0_i32_1 = arith.constant 0 : i32
    return %arg0, %c0_i32, %c0_i32_0 : i32, i32, i32
  }
  func.func @transform_1(%arg0: i32, %arg1: i32) -> (i32, i32) {
    %c0_i32 = arith.constant 0 : i32
    %c0_i32_0 = arith.constant 0 : i32
    %c0_i32_1 = arith.constant 0 : i32
    return %c0_i32, %c0_i32_0 : i32, i32
  }
  func.func @transform_2(%arg0: i32, %arg1: i32) -> (i32, i32) {
    %c0_i32 = arith.constant 0 : i32
    %c0_i32_0 = arith.constant 0 : i32
    %c0_i32_1 = arith.constant 0 : i32
    return %c0_i32, %c0_i32_0 : i32, i32
  }
  func.func @transform_3(%arg0: i32, %arg1: i32) -> (i32, i32) {
    %c0_i32 = arith.constant 0 : i32
    %c0_i32_0 = arith.constant 0 : i32
    %c0_i32_1 = arith.constant 0 : i32
    return %c0_i32, %c0_i32_0 : i32, i32
  }
  func.func @transform_4(%arg0: i32, %arg1: i32) -> (i32, i32) {
    %c0_i32 = arith.constant 0 : i32
    %c0_i32_0 = arith.constant 0 : i32
    %c0_i32_1 = arith.constant 0 : i32
    return %c0_i32, %c0_i32_0 : i32, i32
  }
  func.func @transform_5(%arg0: i32, %arg1: i32) -> (i32, i32) {
    %c0_i32 = arith.constant 0 : i32
    %c0_i32_0 = arith.constant 0 : i32
    %c0_i32_1 = arith.constant 0 : i32
    return %c0_i32, %c0_i32_0 : i32, i32
  }
  func.func @transform_6(%arg0: i32, %arg1: i32) -> (i32, i32) {
    %c0_i32 = arith.constant 0 : i32
    %c0_i32_0 = arith.constant 0 : i32
    %c0_i32_1 = arith.constant 0 : i32
    return %c0_i32, %c0_i32_0 : i32, i32
  }
  func.func @transform_7(%arg0: i32, %arg1: i32) -> (i32, i32) {
    %c0_i32 = arith.constant 0 : i32
    %c0_i32_0 = arith.constant 0 : i32
    %c0_i32_1 = arith.constant 0 : i32
    return %c0_i32, %c0_i32_0 : i32, i32
  }
  func.func @transform_8(%arg0: i32, %arg1: i32) -> (i32, i32) {
    %c0_i32 = arith.constant 0 : i32
    %c0_i32_0 = arith.constant 0 : i32
    %c0_i32_1 = arith.constant 0 : i32
    return %c0_i32, %c0_i32_0 : i32, i32
  }
  func.func @transform_9(%arg0: i32, %arg1: i32) -> (i32, i32, i32) {
    %c0_i32 = arith.constant 0 : i32
    %c0_i32_0 = arith.constant 0 : i32
    return %arg0, %c0_i32, %arg1 : i32, i32, i32
  }
}

module attributes {stable_mosaic.version = 11 : i64} {
  func.func @_self_attention_kernel(%arg0: i32, %arg1: i32, %arg2: memref<1x64x256xf32, #tpu.memory_space<vmem>>, %arg3: memref<64x1xf32, #tpu.memory_space<vmem>>, %arg4: memref<64x1xf32, #tpu.memory_space<vmem>>, %arg5: memref<64x64xbf16, #tpu.memory_space<vmem>>, %arg6: memref<64x1xf32, #tpu.memory_space<vmem>>, %arg7: memref<128x64xbf16, #tpu.memory_space<vmem>>, %arg8: memref<128x1xf32, #tpu.memory_space<vmem>>, %arg9: memref<64x64xbf16, #tpu.memory_space<vmem>>, %arg10: memref<64x1xf32, #tpu.memory_space<vmem>>, %arg11: memref<1x64x128xf32, #tpu.memory_space<vmem>>, %arg12: memref<4x16x256xbf16, #tpu.memory_space<vmem>>, %arg13: memref<4x16x256xbf16, #tpu.memory_space<vmem>>, %arg14: memref<64x256xbf16, #tpu.memory_space<vmem>>, %arg15: memref<4x16x128xbf16, #tpu.memory_space<vmem>>, %arg16: memref<64x128xbf16, #tpu.memory_space<vmem>>) attributes {dimension_semantics = [#tpu.dimension_semantics<parallel>, #tpu.dimension_semantics<arbitrary>], iteration_bounds = array<i64: 2, 2>, scalar_prefetch = 0 : i64, scratch_operands = 5 : i64, tpu.core_type = #tpu.core_type<tc>, window_params = [{transform_indices = @transform_0, window_bounds = array<i64: 1, 64, 256>}, {pipeline_mode = #tpu.pipeline_mode<synchronous>, transform_indices = @transform_1, window_bounds = array<i64: 64, 1>}, {pipeline_mode = #tpu.pipeline_mode<synchronous>, transform_indices = @transform_2, window_bounds = array<i64: 64, 1>}, {pipeline_mode = #tpu.pipeline_mode<synchronous>, transform_indices = @transform_3, window_bounds = array<i64: 64, 64>}, {pipeline_mode = #tpu.pipeline_mode<synchronous>, transform_indices = @transform_4, window_bounds = array<i64: 64, 1>}, {pipeline_mode = #tpu.pipeline_mode<synchronous>, transform_indices = @transform_5, window_bounds = array<i64: 128, 64>}, {pipeline_mode = #tpu.pipeline_mode<synchronous>, transform_indices = @transform_6, window_bounds = array<i64: 128, 1>}, {pipeline_mode = #tpu.pipeline_mode<synchronous>, transform_indices = @transform_7, window_bounds = array<i64: 64, 64>}, {pipeline_mode = #tpu.pipeline_mode<synchronous>, transform_indices = @transform_8, window_bounds = array<i64: 64, 1>}, {transform_indices = @transform_9, window_bounds = array<i64: 1, 64, 128>}]} {
    %c0_i32 = arith.constant 0 : i32
    %0 = arith.cmpi eq, %arg1, %c0_i32 : i32
    %1 = arith.extui %0 : i1 to i32
    %c0_i32_0 = arith.constant 0 : i32
    %2 = arith.cmpi ne, %1, %c0_i32_0 : i32
    scf.if %2 {
      %c0_22 = arith.constant 0 : index
      %c0_23 = arith.constant 0 : index
      %c0_24 = arith.constant 0 : index
      %29 = vector.load %arg2[%c0_22, %c0_23, %c0_24] : memref<1x64x256xf32, #tpu.memory_space<vmem>>, vector<1x64x256xf32>
      %30 = vector.shape_cast %29 : vector<1x64x256xf32> to vector<64x256xf32>
      %31 = vector.shape_cast %30 : vector<64x256xf32> to vector<1x64x256xf32>
      %cst_25 = arith.constant dense<0.000000e+00> : vector<1xf32>
      %32 = vector.multi_reduction <add>, %31, %cst_25 [1, 2] : vector<1x64x256xf32> to vector<1xf32>
      %33 = vector.shape_cast %32 : vector<1xf32> to vector<1x1x1xf32>
      %34 = vector.extract %33[0, 0, 0] : f32 from vector<1x1x1xf32>
      %cst_26 = arith.constant 6.10351563E-5 : f32
      %35 = arith.mulf %34, %cst_26 : f32
      %36 = vector.broadcast %35 : f32 to vector<64x256xf32>
      %37 = arith.subf %30, %36 : vector<64x256xf32>
      %38 = arith.mulf %37, %37 : vector<64x256xf32>
      %39 = vector.shape_cast %38 : vector<64x256xf32> to vector<1x64x256xf32>
      %cst_27 = arith.constant dense<0.000000e+00> : vector<1xf32>
      %40 = vector.multi_reduction <add>, %39, %cst_27 [1, 2] : vector<1x64x256xf32> to vector<1xf32>
      %41 = vector.shape_cast %40 : vector<1xf32> to vector<1x1x1xf32>
      %42 = vector.extract %41[0, 0, 0] : f32 from vector<1x1x1xf32>
      %cst_28 = arith.constant 6.10351563E-5 : f32
      %43 = arith.mulf %42, %cst_28 : f32
      %cst_29 = arith.constant 9.99999974E-6 : f32
      %44 = arith.addf %43, %cst_29 : f32
      %45 = math.rsqrt %44 : f32
      %c0_30 = arith.constant 0 : index
      %c0_31 = arith.constant 0 : index
      %46 = vector.load %arg3[%c0_30, %c0_31] : memref<64x1xf32, #tpu.memory_space<vmem>>, vector<64x1xf32>
      %47 = vector.broadcast %45 : f32 to vector<64x1xf32>
      %48 = arith.mulf %46, %47 : vector<64x1xf32>
      %49 = vector.broadcast %48 : vector<64x1xf32> to vector<64x256xf32>
      %50 = arith.mulf %37, %49 : vector<64x256xf32>
      %c0_32 = arith.constant 0 : index
      %c0_33 = arith.constant 0 : index
      %51 = vector.load %arg4[%c0_32, %c0_33] : memref<64x1xf32, #tpu.memory_space<vmem>>, vector<64x1xf32>
      %52 = vector.broadcast %51 : vector<64x1xf32> to vector<64x256xf32>
      %53 = arith.addf %50, %52 : vector<64x256xf32>
      %54 = arith.truncf %53 : vector<64x256xf32> to vector<64x256xbf16>
      %c0_34 = arith.constant 0 : index
      %c0_35 = arith.constant 0 : index
      %55 = vector.load %arg14[%c0_34, %c0_35] : memref<64x256xbf16, #tpu.memory_space<vmem>>, vector<64x256xbf16>
      tpu.vector_store %arg14[%c0_34, %c0_35], %54 {strides = array<i32>} : memref<64x256xbf16, #tpu.memory_space<vmem>>, vector<64x256xbf16>,
      %c0_i32_36 = arith.constant 0 : i32
      %c2_i32_37 = arith.constant 2 : i32
      %56 = arith.addi %c0_i32_36, %c2_i32_37 : i32
      %c1_i32_38 = arith.constant 1 : i32
      scf.for %arg17 = %c0_i32_36 to %56 step %c1_i32_38  : i32 {
        %c128_i32_40 = arith.constant 128 : i32
        %57 = arith.muli %arg17, %c128_i32_40 : i32
        %58 = tpu.assume_multiple %57, 128 : i32
        %c0_41 = arith.constant 0 : index
        %59 = arith.index_cast %58 : i32 to index
        %60 = vector.load %arg14[%c0_41, %59] : memref<64x256xbf16, #tpu.memory_space<vmem>>, vector<64x128xbf16>
        %c0_42 = arith.constant 0 : index
        %c0_43 = arith.constant 0 : index
        %61 = vector.load %arg7[%c0_42, %c0_43] : memref<128x64xbf16, #tpu.memory_space<vmem>>, vector<128x64xbf16>
        %cst_44 = arith.constant dense<0.000000e+00> : vector<128x128xf32>
        %62 = tpu.matmul %61, %60, %cst_44 {dimension_numbers = #tpu.dot_dimension_numbers<[1], [0], [0], [1], [0, 0, 1, 1], [], []>} : vector<128x64xbf16>, vector<64x128xbf16>, vector<128x128xf32> -> vector<128x128xf32>
        %c0_45 = arith.constant 0 : index
        %c0_46 = arith.constant 0 : index
        %63 = vector.load %arg8[%c0_45, %c0_46] : memref<128x1xf32, #tpu.memory_space<vmem>>, vector<128x1xf32>
        %64 = vector.broadcast %63 : vector<128x1xf32> to vector<128x128xf32>
        %65 = arith.addf %62, %64 : vector<128x128xf32>
        %66 = vector.extract_strided_slice %65 {offsets = [0, 0], sizes = [64, 128], strides = [1, 1]} : vector<128x128xf32> to vector<64x128xf32>
        %67 = vector.shape_cast %66 : vector<64x128xf32> to vector<4x16x128xf32>
        %68 = arith.truncf %67 : vector<4x16x128xf32> to vector<4x16x128xbf16>
        %c0_47 = arith.constant 0 : index
        %c0_48 = arith.constant 0 : index
        %69 = arith.index_cast %58 : i32 to index
        %70 = vector.load %arg12[%c0_47, %c0_48, %69] : memref<4x16x256xbf16, #tpu.memory_space<vmem>>, vector<4x16x128xbf16>
        tpu.vector_store %arg12[%c0_47, %c0_48, %69], %68 {strides = array<i32>} : memref<4x16x256xbf16, #tpu.memory_space<vmem>>, vector<4x16x128xbf16>,
        %71 = vector.extract_strided_slice %65 {offsets = [64, 0], sizes = [64, 128], strides = [1, 1]} : vector<128x128xf32> to vector<64x128xf32>
        %72 = vector.shape_cast %71 : vector<64x128xf32> to vector<4x16x128xf32>
        %73 = arith.truncf %72 : vector<4x16x128xf32> to vector<4x16x128xbf16>
        %c0_49 = arith.constant 0 : index
        %c0_50 = arith.constant 0 : index
        %74 = arith.index_cast %58 : i32 to index
        %75 = vector.load %arg13[%c0_49, %c0_50, %74] : memref<4x16x256xbf16, #tpu.memory_space<vmem>>, vector<4x16x128xbf16>
        tpu.vector_store %arg13[%c0_49, %c0_50, %74], %73 {strides = array<i32>} : memref<4x16x256xbf16, #tpu.memory_space<vmem>>, vector<4x16x128xbf16>,
      }
      %c2_i32_39 = arith.constant 2 : i32
    } else {
    }
    %c128_i32 = arith.constant 128 : i32
    %3 = arith.muli %arg1, %c128_i32 : i32
    %4 = tpu.assume_multiple %3, 128 : i32
    %c0 = arith.constant 0 : index
    %5 = arith.index_cast %4 : i32 to index
    %6 = vector.load %arg14[%c0, %5] : memref<64x256xbf16, #tpu.memory_space<vmem>>, vector<64x128xbf16>
    %c0_1 = arith.constant 0 : index
    %c0_2 = arith.constant 0 : index
    %7 = vector.load %arg5[%c0_1, %c0_2] : memref<64x64xbf16, #tpu.memory_space<vmem>>, vector<64x64xbf16>
    %cst = arith.constant dense<0.000000e+00> : vector<64x128xf32>
    %8 = tpu.matmul %7, %6, %cst {dimension_numbers = #tpu.dot_dimension_numbers<[1], [0], [0], [1], [0, 0, 1, 1], [], []>} : vector<64x64xbf16>, vector<64x128xbf16>, vector<64x128xf32> -> vector<64x128xf32>
    %c0_3 = arith.constant 0 : index
    %c0_4 = arith.constant 0 : index
    %9 = vector.load %arg6[%c0_3, %c0_4] : memref<64x1xf32, #tpu.memory_space<vmem>>, vector<64x1xf32>
    %10 = vector.broadcast %9 : vector<64x1xf32> to vector<64x128xf32>
    %11 = arith.addf %8, %10 : vector<64x128xf32>
    %12 = vector.shape_cast %11 : vector<64x128xf32> to vector<4x16x128xf32>
    %13 = arith.truncf %12 : vector<4x16x128xf32> to vector<4x16x128xbf16>
    %c0_5 = arith.constant 0 : index
    %c0_6 = arith.constant 0 : index
    %c0_7 = arith.constant 0 : index
    %14 = vector.load %arg15[%c0_5, %c0_6, %c0_7] : memref<4x16x128xbf16, #tpu.memory_space<vmem>>, vector<4x16x128xbf16>
    tpu.vector_store %arg15[%c0_5, %c0_6, %c0_7], %13 {strides = array<i32>} : memref<4x16x128xbf16, #tpu.memory_space<vmem>>, vector<4x16x128xbf16>,
    %c0_i32_8 = arith.constant 0 : i32
    %c2_i32 = arith.constant 2 : i32
    %15 = arith.addi %c0_i32_8, %c2_i32 : i32
    %c1_i32 = arith.constant 1 : i32
    scf.for %arg17 = %c0_i32_8 to %15 step %c1_i32  : i32 {
      %c2_i32_22 = arith.constant 2 : i32
      %29 = arith.muli %arg17, %c2_i32_22 : i32
      %30 = tpu.assume_multiple %29, 2 : i32
      %31 = arith.index_cast %30 : i32 to index
      %c0_23 = arith.constant 0 : index
      %c0_24 = arith.constant 0 : index
      %32 = vector.load %arg15[%31, %c0_23, %c0_24] : memref<4x16x128xbf16, #tpu.memory_space<vmem>>, vector<2x16x128xbf16>
      %33 = arith.index_cast %30 : i32 to index
      %c0_25 = arith.constant 0 : index
      %c0_26 = arith.constant 0 : index
      %34 = vector.load %arg12[%33, %c0_25, %c0_26] : memref<4x16x256xbf16, #tpu.memory_space<vmem>>, vector<2x16x256xbf16>
      %35 = arith.index_cast %30 : i32 to index
      %c0_27 = arith.constant 0 : index
      %c0_28 = arith.constant 0 : index
      %36 = vector.load %arg13[%35, %c0_27, %c0_28] : memref<4x16x256xbf16, #tpu.memory_space<vmem>>, vector<2x16x256xbf16>
      %cst_29 = arith.constant dense<0.000000e+00> : vector<2x128x256xf32>
      %37 = tpu.matmul %32, %34, %cst_29 {dimension_numbers = #tpu.dot_dimension_numbers<[1], [1], [2], [2], [0, 0, 0, 2, 1, 2], [0], [0]>} : vector<2x16x128xbf16>, vector<2x16x256xbf16>, vector<2x128x256xf32> -> vector<2x128x256xf32>
      %cst_30 = arith.constant dense<0xFF800000> : vector<2x128xf32>
      %38 = vector.multi_reduction <maximumf>, %37, %cst_30 [2] : vector<2x128x256xf32> to vector<2x128xf32>
      %39 = vector.shape_cast %38 : vector<2x128xf32> to vector<2x128x1xf32>
      %40 = vector.broadcast %39 : vector<2x128x1xf32> to vector<2x128x256xf32>
      %41 = arith.subf %37, %40 : vector<2x128x256xf32>
      %42 = math.exp %41 : vector<2x128x256xf32>
      %cst_31 = arith.constant dense<0.000000e+00> : vector<2x128xf32>
      %43 = vector.multi_reduction <add>, %42, %cst_31 [2] : vector<2x128x256xf32> to vector<2x128xf32>
      %44 = arith.truncf %42 : vector<2x128x256xf32> to vector<2x128x256xbf16>
      %cst_32 = arith.constant dense<0.000000e+00> : vector<2x16x128xf32>
      %45 = tpu.matmul %36, %44, %cst_32 {dimension_numbers = #tpu.dot_dimension_numbers<[2], [2], [1], [1], [0, 0, 0, 1, 1, 1], [0], [0]>} : vector<2x16x256xbf16>, vector<2x128x256xbf16>, vector<2x16x128xf32> -> vector<2x16x128xf32>
      %46 = tpu.reciprocal %43 {approx = true} : vector<2x128xf32> -> vector<2x128xf32>
      %47 = vector.shape_cast %46 : vector<2x128xf32> to vector<2x1x128xf32>
      %48 = vector.broadcast %47 : vector<2x1x128xf32> to vector<2x16x128xf32>
      %49 = arith.mulf %45, %48 : vector<2x16x128xf32>
      %c2_i32_33 = arith.constant 2 : i32
      %50 = arith.muli %arg17, %c2_i32_33 : i32
      %c16_i32 = arith.constant 16 : i32
      %51 = arith.muli %50, %c16_i32 : i32
      %52 = tpu.assume_multiple %51, 32 : i32
      %53 = vector.shape_cast %49 : vector<2x16x128xf32> to vector<32x128xf32>
      %54 = arith.truncf %53 : vector<32x128xf32> to vector<32x128xbf16>
      %55 = arith.index_cast %52 : i32 to index
      %c0_34 = arith.constant 0 : index
      %56 = vector.load %arg16[%55, %c0_34] : memref<64x128xbf16, #tpu.memory_space<vmem>>, vector<32x128xbf16>
      tpu.vector_store %arg16[%55, %c0_34], %54 {strides = array<i32>} : memref<64x128xbf16, #tpu.memory_space<vmem>>, vector<32x128xbf16>,
    }
    %c2_i32_9 = arith.constant 2 : i32
    %c0_10 = arith.constant 0 : index
    %c0_11 = arith.constant 0 : index
    %16 = vector.load %arg9[%c0_10, %c0_11] : memref<64x64xbf16, #tpu.memory_space<vmem>>, vector<64x64xbf16>
    %c0_12 = arith.constant 0 : index
    %c0_13 = arith.constant 0 : index
    %17 = vector.load %arg16[%c0_12, %c0_13] : memref<64x128xbf16, #tpu.memory_space<vmem>>, vector<64x128xbf16>
    %cst_14 = arith.constant dense<0.000000e+00> : vector<64x128xf32>
    %18 = tpu.matmul %16, %17, %cst_14 {dimension_numbers = #tpu.dot_dimension_numbers<[1], [0], [0], [1], [0, 0, 1, 1], [], []>} : vector<64x64xbf16>, vector<64x128xbf16>, vector<64x128xf32> -> vector<64x128xf32>
    %c0_15 = arith.constant 0 : index
    %c0_16 = arith.constant 0 : index
    %19 = vector.load %arg10[%c0_15, %c0_16] : memref<64x1xf32, #tpu.memory_space<vmem>>, vector<64x1xf32>
    %20 = vector.broadcast %19 : vector<64x1xf32> to vector<64x128xf32>
    %21 = arith.addf %18, %20 : vector<64x128xf32>
    %c0_17 = arith.constant 0 : index
    %c0_18 = arith.constant 0 : index
    %22 = arith.index_cast %4 : i32 to index
    %23 = vector.load %arg2[%c0_17, %c0_18, %22] : memref<1x64x256xf32, #tpu.memory_space<vmem>>, vector<1x64x128xf32>
    %24 = vector.shape_cast %23 : vector<1x64x128xf32> to vector<64x128xf32>
    %25 = arith.addf %24, %21 : vector<64x128xf32>
    %c0_19 = arith.constant 0 : index
    %c0_20 = arith.constant 0 : index
    %c0_21 = arith.constant 0 : index
    %26 = vector.load %arg11[%c0_19, %c0_20, %c0_21] : memref<1x64x128xf32, #tpu.memory_space<vmem>>, vector<1x64x128xf32>
    %27 = vector.shape_cast %26 : vector<1x64x128xf32> to vector<64x128xf32>
    %28 = vector.shape_cast %25 : vector<64x128xf32> to vector<1x64x128xf32>
    tpu.vector_store %arg11[%c0_19, %c0_20, %c0_21], %28 {strides = array<i32>} : memref<1x64x128xf32, #tpu.memory_space<vmem>>, vector<1x64x128xf32>,
    return
  }
  func.func @transform_0(%arg0: i32, %arg1: i32) -> (i32, i32, i32) {
    %c0_i32 = arith.constant 0 : i32
    %c0_i32_0 = arith.constant 0 : i32
    %c0_i32_1 = arith.constant 0 : i32
    return %arg0, %c0_i32, %c0_i32_0 : i32, i32, i32
  }
  func.func @transform_1(%arg0: i32, %arg1: i32) -> (i32, i32) {
    %c0_i32 = arith.constant 0 : i32
    %c0_i32_0 = arith.constant 0 : i32
    %c0_i32_1 = arith.constant 0 : i32
    return %c0_i32, %c0_i32_0 : i32, i32
  }
  func.func @transform_2(%arg0: i32, %arg1: i32) -> (i32, i32) {
    %c0_i32 = arith.constant 0 : i32
    %c0_i32_0 = arith.constant 0 : i32
    %c0_i32_1 = arith.constant 0 : i32
    return %c0_i32, %c0_i32_0 : i32, i32
  }
  func.func @transform_3(%arg0: i32, %arg1: i32) -> (i32, i32) {
    %c0_i32 = arith.constant 0 : i32
    %c0_i32_0 = arith.constant 0 : i32
    %c0_i32_1 = arith.constant 0 : i32
    return %c0_i32, %c0_i32_0 : i32, i32
  }
  func.func @transform_4(%arg0: i32, %arg1: i32) -> (i32, i32) {
    %c0_i32 = arith.constant 0 : i32
    %c0_i32_0 = arith.constant 0 : i32
    %c0_i32_1 = arith.constant 0 : i32
    return %c0_i32, %c0_i32_0 : i32, i32
  }
  func.func @transform_5(%arg0: i32, %arg1: i32) -> (i32, i32) {
    %c0_i32 = arith.constant 0 : i32
    %c0_i32_0 = arith.constant 0 : i32
    %c0_i32_1 = arith.constant 0 : i32
    return %c0_i32, %c0_i32_0 : i32, i32
  }
  func.func @transform_6(%arg0: i32, %arg1: i32) -> (i32, i32) {
    %c0_i32 = arith.constant 0 : i32
    %c0_i32_0 = arith.constant 0 : i32
    %c0_i32_1 = arith.constant 0 : i32
    return %c0_i32, %c0_i32_0 : i32, i32
  }
  func.func @transform_7(%arg0: i32, %arg1: i32) -> (i32, i32) {
    %c0_i32 = arith.constant 0 : i32
    %c0_i32_0 = arith.constant 0 : i32
    %c0_i32_1 = arith.constant 0 : i32
    return %c0_i32, %c0_i32_0 : i32, i32
  }
  func.func @transform_8(%arg0: i32, %arg1: i32) -> (i32, i32) {
    %c0_i32 = arith.constant 0 : i32
    %c0_i32_0 = arith.constant 0 : i32
    %c0_i32_1 = arith.constant 0 : i32
    return %c0_i32, %c0_i32_0 : i32, i32
  }
  func.func @transform_9(%arg0: i32, %arg1: i32) -> (i32, i32, i32) {
    %c0_i32 = arith.constant 0 : i32
    %c0_i32_0 = arith.constant 0 : i32
    return %arg0, %c0_i32, %arg1 : i32, i32, i32
  }
}

</mosaic_0001>

<llo_original>
// kernel: tpu_custom_call.1
$region0: #{tpu_custom_call.1}
  #allocation0 [shape = 'u32[]', space=smem, size = 0x4, offset = 0x4, fixed_abs, tag = 'smem constant byte address 0x4 - core index']
  #allocation1 [shape = 'u32[144,128]{1,0:T(1,128)}', space=vmem, size = 0x12000, scoped, tag = 'internal scratch']
  #allocation2 [shape = 'bf16[4,16,256]{2,1,0:T(16,128)(2,1)}', space=vmem, size = 0x8000, scoped, tag = 'scratch operand']
  #allocation3 [shape = 'bf16[4,16,256]{2,1,0:T(16,128)(2,1)}', space=vmem, size = 0x8000, scoped, tag = 'scratch operand']
  #allocation4 [shape = 'bf16[64,256]{1,0:T(16,128)(2,1)}', space=vmem, size = 0x8000, scoped, tag = 'scratch operand']
  #allocation5 [shape = 'bf16[4,16,128]{2,1,0:T(16,128)(2,1)}', space=vmem, size = 0x4000, scoped, tag = 'scratch operand']
  #allocation6 [shape = 'bf16[64,128]{1,0:T(16,128)(2,1)}', space=vmem, size = 0x4000, scoped, tag = 'scratch operand']
  %s0 = inlined_call_operand.hbm [shape: f32[2,64,256], index: 0, kind: input, shape index: {}]
  %s1 = inlined_call_operand.vmem [shape: f32[64,1], index: 1, kind: input, shape index: {}]
  %s2 = inlined_call_operand.vmem [shape: f32[64,1], index: 2, kind: input, shape index: {}]
  %s3 = inlined_call_operand.vmem [shape: bf16[64,64], index: 3, kind: input, shape index: {}]
  %s4 = inlined_call_operand.vmem [shape: f32[64,1], index: 4, kind: input, shape index: {}]
  %s5 = inlined_call_operand.vmem [shape: bf16[128,64], index: 5, kind: input, shape index: {}]
  %s6 = inlined_call_operand.vmem [shape: f32[128,1], index: 6, kind: input, shape index: {}]
  %s7 = inlined_call_operand.vmem [shape: bf16[64,64], index: 7, kind: input, shape index: {}]
  %s8 = inlined_call_operand.vmem [shape: f32[64,1], index: 8, kind: input, shape index: {}]
  %s9 = inlined_call_operand.hbm [shape: f32[2,64,256], index: 9, kind: output, shape index: {}]
  %s10 = sld [smem:[#allocation0]]
  $region91: #{tpu_custom_call.1} parent=0
    _
  %s12 = ssub.s32 1, %s10
  %s13 = scalar_select 0, %s12, %s10
  $region1: #{tpu_custom_call.1} parent=0
    #allocation7 [shape = 'u8[131072]{0}', space=vmem, size = 0x20000, scoped, tag = 'input window, operand 0']
    #allocation8 [shape = 's32[2]{0}', space=sflag, size = 0x8, scoped, tag = 'scoped memory for tpu_custom_call.1']
    #allocation9 [shape = 's32[2]{0}', space=sflag, size = 0x8, scoped, tag = 'scoped memory for tpu_custom_call.1']
    #allocation10 [shape = 'u8[65536]{0}', space=vmem, size = 0x10000, scoped, tag = 'output window, operand 0']
    %14 = vsyncpa [#allocation8], 0
    %s15 = scalar_lea.sflag [#allocation8], 1
    %16 = vsyncpa %s15, 0
    %17 = vsyncpa [#allocation9], 0
    %s18 = scalar_lea.sflag [#allocation9], 1
    %19 = vsyncpa %s18, 0
    loop: start=0, step=1, limit=6
    $region2: #{tpu_custom_call.1} parent=1 // loop_pre_header
      _
    $region3: #{tpu_custom_call.1} parent=1 // loop_header
      %s21 = sphi 0, %s25
      %p22 = scmp.ge.s32.totalorder %s21, 6
      %s28 = sphi 0, %s40
      %s29 = sphi 0, %s36
      %s30 = sphi 0, %s28
      %s31 = sphi 0, %s29
      %s32 = sphi 0, %s30
      %s33 = sphi 0, %s31
      %s43 = sphi 0, %s45
      %s46 = sphi 0, %s43
      %s47 = sphi 0, %s46
      %s63 = sphi 0, %s47
      %s67 = sphi 0, %s67
      %s69 = sphi 0, %s67
      %s70 = sphi 0, %s69
      %s84 = sphi 0, %s70
      %s88 = sphi 0, %s88
      %s90 = sphi 0, %s88
      %s91 = sphi 0, %s90
      %s105 = sphi 0, %s91
      %s109 = sphi 0, %s109
      %s111 = sphi 0, %s109
      %s112 = sphi 0, %s111
      %s126 = sphi 0, %s112
      %s130 = sphi 0, %s130
      %s132 = sphi 0, %s130
      %s133 = sphi 0, %s132
      %s147 = sphi 0, %s133
      %s151 = sphi 0, %s151
      %s153 = sphi 0, %s151
      %s154 = sphi 0, %s153
      %s168 = sphi 0, %s154
      %s172 = sphi 0, %s172
      %s174 = sphi 0, %s172
      %s175 = sphi 0, %s174
      %s189 = sphi 0, %s175
      %s193 = sphi 0, %s193
      %s195 = sphi 0, %s193
      %s196 = sphi 0, %s195
      %s210 = sphi 0, %s196
      %s214 = sphi 0, %s214
      %s216 = sphi 0, %s214
      %s217 = sphi 0, %s216
      %s231 = sphi 0, %s217
      %s239 = sphi 0, %s241
      %s242 = sphi 0, %s239
      %s243 = sphi 0, %s242
      %s259 = sphi 0, %s243
    $region4: #{tpu_custom_call.1} parent=1 // loop_header_branch
      %24 = sbr.rel (%p22) target = $region8
    $region5: #{tpu_custom_call.1} parent=1 // loop_body
      %s26 = ssub.s32 %s21, 1
      %s27 = ssub.s32 %s21, 2
      %s34 = sadd.s32 1, %s29
      %p35 = scmp.ge.s32.totalorder %s34, 2
      %s36 = scalar_select %p35, 0, %s34
      %s37 = sadd.s32 1, %s28
      %s38 = scalar_select %p35, %s37, %s28
      %p39 = scmp.ge.s32.totalorder %s38, 2
      %s40 = scalar_select %p39, 0, %s38
      %s41 = ssub.s32 %s28, %s40
      %p42 = scmp.eq.s32.totalorder %s41, 0
      %s44 = sadd.s32 %s43, 1
      %s45 = scalar_select %p42, %s43, %s44
      %p48 = pneg %p42
      %p49 = scmp.eq.s32.totalorder %s21, 3
      %p50 = por %p48, %p49
      %p51 = scmp.ne.s32.totalorder %s43, %s46
      %p52 = scmp.eq.s32.totalorder %s21, 0
      %p53 = por %p51, %p52
      %p54 = scmp.ne.s32.totalorder %s43, %s46
      %p55 = scmp.eq.s32.totalorder %s26, 3
      %p56 = por %p54, %p55
      %p57 = scmp.ne.s32.totalorder %s46, %s47
      %p58 = scmp.eq.s32.totalorder %s26, 0
      %p59 = por %p57, %p58
      %p60 = scmp.ne.s32.totalorder %s46, %s47
      %p61 = scmp.eq.s32.totalorder %s27, 3
      %p62 = por %p60, %p61
      %p64 = scmp.ne.s32.totalorder %s47, %s63
      %p65 = scmp.eq.s32.totalorder %s27, 0
      %p66 = por %p64, %p65
      %s68 = sadd.s32 %s67, 1
      %p71 = scmp.eq.s32.totalorder %s21, 3
      %p72 = scmp.ne.s32.totalorder %s67, %s69
      %p73 = scmp.eq.s32.totalorder %s21, 0
      %p74 = por %p72, %p73
      %p75 = scmp.ne.s32.totalorder %s67, %s69
      %p76 = scmp.eq.s32.totalorder %s26, 3
      %p77 = por %p75, %p76
      %p78 = scmp.ne.s32.totalorder %s69, %s70
      %p79 = scmp.eq.s32.totalorder %s26, 0
      %p80 = por %p78, %p79
      %p81 = scmp.ne.s32.totalorder %s69, %s70
      %p82 = scmp.eq.s32.totalorder %s27, 3
      %p83 = por %p81, %p82
      %p85 = scmp.ne.s32.totalorder %s70, %s84
      %p86 = scmp.eq.s32.totalorder %s27, 0
      %p87 = por %p85, %p86
      %s89 = sadd.s32 %s88, 1
      %p92 = scmp.eq.s32.totalorder %s21, 3
      %p93 = scmp.ne.s32.totalorder %s88, %s90
      %p94 = scmp.eq.s32.totalorder %s21, 0
      %p95 = por %p93, %p94
      %p96 = scmp.ne.s32.totalorder %s88, %s90
      %p97 = scmp.eq.s32.totalorder %s26, 3
      %p98 = por %p96, %p97
      %p99 = scmp.ne.s32.totalorder %s90, %s91
      %p100 = scmp.eq.s32.totalorder %s26, 0
      %p101 = por %p99, %p100
      %p102 = scmp.ne.s32.totalorder %s90, %s91
      %p103 = scmp.eq.s32.totalorder %s27, 3
      %p104 = por %p102, %p103
      %p106 = scmp.ne.s32.totalorder %s91, %s105
      %p107 = scmp.eq.s32.totalorder %s27, 0
      %p108 = por %p106, %p107
      %s110 = sadd.s32 %s109, 1
      %p113 = scmp.eq.s32.totalorder %s21, 3
      %p114 = scmp.ne.s32.totalorder %s109, %s111
      %p115 = scmp.eq.s32.totalorder %s21, 0
      %p116 = por %p114, %p115
      %p117 = scmp.ne.s32.totalorder %s109, %s111
      %p118 = scmp.eq.s32.totalorder %s26, 3
      %p119 = por %p117, %p118
      %p120 = scmp.ne.s32.totalorder %s111, %s112
      %p121 = scmp.eq.s32.totalorder %s26, 0
      %p122 = por %p120, %p121
      %p123 = scmp.ne.s32.totalorder %s111, %s112
      %p124 = scmp.eq.s32.totalorder %s27, 3
      %p125 = por %p123, %p124
      %p127 = scmp.ne.s32.totalorder %s112, %s126
      %p128 = scmp.eq.s32.totalorder %s27, 0
      %p129 = por %p127, %p128
      %s131 = sadd.s32 %s130, 1
      %p134 = scmp.eq.s32.totalorder %s21, 3
      %p135 = scmp.ne.s32.totalorder %s130, %s132
      %p136 = scmp.eq.s32.totalorder %s21, 0
      %p137 = por %p135, %p136
      %p138 = scmp.ne.s32.totalorder %s130, %s132
      %p139 = scmp.eq.s32.totalorder %s26, 3
      %p140 = por %p138, %p139
      %p141 = scmp.ne.s32.totalorder %s132, %s133
      %p142 = scmp.eq.s32.totalorder %s26, 0
      %p143 = por %p141, %p142
      %p144 = scmp.ne.s32.totalorder %s132, %s133
      %p145 = scmp.eq.s32.totalorder %s27, 3
      %p146 = por %p144, %p145
      %p148 = scmp.ne.s32.totalorder %s133, %s147
      %p149 = scmp.eq.s32.totalorder %s27, 0
      %p150 = por %p148, %p149
      %s152 = sadd.s32 %s151, 1
      %p155 = scmp.eq.s32.totalorder %s21, 3
      %p156 = scmp.ne.s32.totalorder %s151, %s153
      %p157 = scmp.eq.s32.totalorder %s21, 0
      %p158 = por %p156, %p157
      %p159 = scmp.ne.s32.totalorder %s151, %s153
      %p160 = scmp.eq.s32.totalorder %s26, 3
      %p161 = por %p159, %p160
      %p162 = scmp.ne.s32.totalorder %s153, %s154
      %p163 = scmp.eq.s32.totalorder %s26, 0
      %p164 = por %p162, %p163
      %p165 = scmp.ne.s32.totalorder %s153, %s154
      %p166 = scmp.eq.s32.totalorder %s27, 3
      %p167 = por %p165, %p166
      %p169 = scmp.ne.s32.totalorder %s154, %s168
      %p170 = scmp.eq.s32.totalorder %s27, 0
      %p171 = por %p169, %p170
      %s173 = sadd.s32 %s172, 1
      %p176 = scmp.eq.s32.totalorder %s21, 3
      %p177 = scmp.ne.s32.totalorder %s172, %s174
      %p178 = scmp.eq.s32.totalorder %s21, 0
      %p179 = por %p177, %p178
      %p180 = scmp.ne.s32.totalorder %s172, %s174
      %p181 = scmp.eq.s32.totalorder %s26, 3
      %p182 = por %p180, %p181
      %p183 = scmp.ne.s32.totalorder %s174, %s175
      %p184 = scmp.eq.s32.totalorder %s26, 0
      %p185 = por %p183, %p184
      %p186 = scmp.ne.s32.totalorder %s174, %s175
      %p187 = scmp.eq.s32.totalorder %s27, 3
      %p188 = por %p186, %p187
      %p190 = scmp.ne.s32.totalorder %s175, %s189
      %p191 = scmp.eq.s32.totalorder %s27, 0
      %p192 = por %p190, %p191
      %s194 = sadd.s32 %s193, 1
      %p197 = scmp.eq.s32.totalorder %s21, 3
      %p198 = scmp.ne.s32.totalorder %s193, %s195
      %p199 = scmp.eq.s32.totalorder %s21, 0
      %p200 = por %p198, %p199
      %p201 = scmp.ne.s32.totalorder %s193, %s195
      %p202 = scmp.eq.s32.totalorder %s26, 3
      %p203 = por %p201, %p202
      %p204 = scmp.ne.s32.totalorder %s195, %s196
      %p205 = scmp.eq.s32.totalorder %s26, 0
      %p206 = por %p204, %p205
      %p207 = scmp.ne.s32.totalorder %s195, %s196
      %p208 = scmp.eq.s32.totalorder %s27, 3
      %p209 = por %p207, %p208
      %p211 = scmp.ne.s32.totalorder %s196, %s210
      %p212 = scmp.eq.s32.totalorder %s27, 0
      %p213 = por %p211, %p212
      %s215 = sadd.s32 %s214, 1
      %p218 = scmp.eq.s32.totalorder %s21, 3
      %p219 = scmp.ne.s32.totalorder %s214, %s216
      %p220 = scmp.eq.s32.totalorder %s21, 0
      %p221 = por %p219, %p220
      %p222 = scmp.ne.s32.totalorder %s214, %s216
      %p223 = scmp.eq.s32.totalorder %s26, 3
      %p224 = por %p222, %p223
      %p225 = scmp.ne.s32.totalorder %s216, %s217
      %p226 = scmp.eq.s32.totalorder %s26, 0
      %p227 = por %p225, %p226
      %p228 = scmp.ne.s32.totalorder %s216, %s217
      %p229 = scmp.eq.s32.totalorder %s27, 3
      %p230 = por %p228, %p229
      %p232 = scmp.ne.s32.totalorder %s217, %s231
      %p233 = scmp.eq.s32.totalorder %s27, 0
      %p234 = por %p232, %p233
      %s235 = ssub.s32 %s28, %s40
      %s236 = ssub.s32 %s29, %s36
      %s237 = sor.u32 %s235, %s236
      %p238 = scmp.eq.s32.totalorder %s237, 0
      %s240 = sadd.s32 %s239, 1
      %s241 = scalar_select %p238, %s239, %s240
      %p244 = pneg %p238
      %p245 = scmp.eq.s32.totalorder %s21, 3
      %p246 = por %p244, %p245
      %p247 = scmp.ne.s32.totalorder %s239, %s242
      %p248 = scmp.eq.s32.totalorder %s21, 0
      %p249 = por %p247, %p248
      %p250 = scmp.ne.s32.totalorder %s239, %s242
      %p251 = scmp.eq.s32.totalorder %s26, 3
      %p252 = por %p250, %p251
      %p253 = scmp.ne.s32.totalorder %s242, %s243
      %p254 = scmp.eq.s32.totalorder %s26, 0
      %p255 = por %p253, %p254
      %p256 = scmp.ne.s32.totalorder %s242, %s243
      %p257 = scmp.eq.s32.totalorder %s27, 3
      %p258 = por %p256, %p257
      %p260 = scmp.ne.s32.totalorder %s243, %s259
      %p261 = scmp.eq.s32.totalorder %s27, 0
      %p262 = por %p260, %p261
      %p263 = scmp.le.s32.totalorder 1, %s21
      %p264 = scmp.lt.s32.totalorder %s21, 5
      %p265 = pnand %p263, %p264
      %p266 = pneg %p265
      // Predicated region
      $region9: #{tpu_custom_call.1} parent=5 // pred_check
        _
      $region10: #{tpu_custom_call.1} parent=5 // pred_check_branch
        %268 = sbr.rel (%p265) target = $region12
      $region11: #{tpu_custom_call.1} parent=5 // pred_region
        %s269 = ssub.s32 %s21, 1
        // Predicated region
        $region13: #{tpu_custom_call.1} parent=11 // pred_check
          %p270 = pneg %p80
        $region14: #{tpu_custom_call.1} parent=11 // pred_check_branch
          %272 = sbr.rel (%p270) target = $region16
        $region15: #{tpu_custom_call.1} parent=11 // pred_region
          _
        $region16: #{tpu_custom_call.1} parent=11 // pred_fallthru
          _
        // Predicated region
        $region17: #{tpu_custom_call.1} parent=11 // pred_check
          %p273 = pneg %p101
        $region18: #{tpu_custom_call.1} parent=11 // pred_check_branch
          %275 = sbr.rel (%p273) target = $region20
        $region19: #{tpu_custom_call.1} parent=11 // pred_region
          _
        $region20: #{tpu_custom_call.1} parent=11 // pred_fallthru
          _
        // Predicated region
        $region21: #{tpu_custom_call.1} parent=11 // pred_check
          %p276 = pneg %p122
        $region22: #{tpu_custom_call.1} parent=11 // pred_check_branch
          %278 = sbr.rel (%p276) target = $region24
        $region23: #{tpu_custom_call.1} parent=11 // pred_region
          _
        $region24: #{tpu_custom_call.1} parent=11 // pred_fallthru
          _
        // Predicated region
        $region25: #{tpu_custom_call.1} parent=11 // pred_check
          %p279 = pneg %p143
        $region26: #{tpu_custom_call.1} parent=11 // pred_check_branch
          %281 = sbr.rel (%p279) target = $region28
        $region27: #{tpu_custom_call.1} parent=11 // pred_region
          _
        $region28: #{tpu_custom_call.1} parent=11 // pred_fallthru
          _
        // Predicated region
        $region29: #{tpu_custom_call.1} parent=11 // pred_check
          %p282 = pneg %p164
        $region30: #{tpu_custom_call.1} parent=11 // pred_check_branch
          %284 = sbr.rel (%p282) target = $region32
        $region31: #{tpu_custom_call.1} parent=11 // pred_region
          _
        $region32: #{tpu_custom_call.1} parent=11 // pred_fallthru
          _
        // Predicated region
        $region33: #{tpu_custom_call.1} parent=11 // pred_check
          %p285 = pneg %p185
        $region34: #{tpu_custom_call.1} parent=11 // pred_check_branch
          %287 = sbr.rel (%p285) target = $region36
        $region35: #{tpu_custom_call.1} parent=11 // pred_region
          _
        $region36: #{tpu_custom_call.1} parent=11 // pred_fallthru
          _
        // Predicated region
        $region37: #{tpu_custom_call.1} parent=11 // pred_check
          %p288 = pneg %p206
        $region38: #{tpu_custom_call.1} parent=11 // pred_check_branch
          %290 = sbr.rel (%p288) target = $region40
        $region39: #{tpu_custom_call.1} parent=11 // pred_region
          _
        $region40: #{tpu_custom_call.1} parent=11 // pred_fallthru
          _
        // Predicated region
        $region41: #{tpu_custom_call.1} parent=11 // pred_check
          %p291 = pneg %p227
        $region42: #{tpu_custom_call.1} parent=11 // pred_check_branch
          %293 = sbr.rel (%p291) target = $region44
        $region43: #{tpu_custom_call.1} parent=11 // pred_region
          _
        $region44: #{tpu_custom_call.1} parent=11 // pred_fallthru
          _
      $region12: #{tpu_custom_call.1} parent=5 // pred_fallthru
        _
      %p294 = scmp.lt.s32.totalorder %s21, 4
      // Predicated region
      $region45: #{tpu_custom_call.1} parent=5 // pred_check
        %p295 = pneg %p294
      $region46: #{tpu_custom_call.1} parent=5 // pred_check_branch
        %297 = sbr.rel (%p295) target = $region48
      $region47: #{tpu_custom_call.1} parent=5 // pred_region
        // Predicated region
        $region49: #{tpu_custom_call.1} parent=47 // pred_check
          %p298 = pneg %p53
        $region50: #{tpu_custom_call.1} parent=47 // pred_check_branch
          %300 = sbr.rel (%p298) target = $region52
        $region51: #{tpu_custom_call.1} parent=47 // pred_region
          %s301 = sand.u32 %s43, 1
          %s302 = scalar_lea.sflag [#allocation8], %s301
          %s303 = sand.u32 %s43, 1
          %s304 = smul.addr %s303, 128
          %s305 = scalar_lea.vmem [#allocation7], %s304
          %s307 = ssub.s32 2048, 2048
          %308 = vsyncadd %s302, %s307
          %s309 = smul.addr %s28, 16
          %s310 = smul.addr %s309, 128
          %s311 = scalar_lea.hbm %s0, %s310
          %s312 = sshll.u32 %s305, 4
          %s313 = int_to_ptr.vmem [resolvable:$true] %s312
          %318 = dma.hbm_to_vmem [thread:$0]  %s311, 2048, %s313, %s302, 256, 256, 16
        $region52: #{tpu_custom_call.1} parent=47 // pred_fallthru
          _
      $region48: #{tpu_custom_call.1} parent=5 // pred_fallthru
        _
      %p319 = scmp.le.s32.totalorder 1, %s21
      %p320 = scmp.lt.s32.totalorder %s21, 5
      %p321 = pnand %p319, %p320
      %p322 = pneg %p321
      // Predicated region
      $region53: #{tpu_custom_call.1} parent=5 // pred_check
        _
      $region54: #{tpu_custom_call.1} parent=5 // pred_check_branch
        %324 = sbr.rel (%p321) target = $region56
      $region55: #{tpu_custom_call.1} parent=5 // pred_region
        %s325 = ssub.s32 %s21, 1
        %s326 = sand.u32 %s46, 1
        %s327 = scalar_lea.sflag [#allocation8], %s326
        %s328 = sand.u32 %s46, 1
        %s329 = smul.addr %s328, 128
        %s330 = scalar_lea.vmem [#allocation7], %s329
        // Predicated region
        $region57: #{tpu_custom_call.1} parent=55 // pred_check
          %p331 = pneg %p59
        $region58: #{tpu_custom_call.1} parent=55 // pred_check_branch
          %333 = sbr.rel (%p331) target = $region60
        $region59: #{tpu_custom_call.1} parent=55 // pred_region
          %334 = dma.done %s327, 2048
        $region60: #{tpu_custom_call.1} parent=55 // pred_fallthru
          _
        %s335 = sand.u32 %s46, 1
        %s336 = scalar_lea.sflag [#allocation8], %s335
        %s337 = sand.u32 %s46, 1
        %s338 = smul.addr %s337, 128
        %s339 = scalar_lea.vmem [#allocation7], %s338
        %p340 = pneg %p59
        %p341 = pneg %p56
        %p342 = pneg %p80
        %p343 = pneg %p77
        %p344 = pneg %p101
        %p345 = pneg %p98
        %p346 = pneg %p122
        %p347 = pneg %p119
        %p348 = pneg %p143
        %p349 = pneg %p140
        %p350 = pneg %p164
        %p351 = pneg %p161
        %p352 = pneg %p185
        %p353 = pneg %p182
        %p354 = pneg %p206
        %p355 = pneg %p203
        %p356 = pneg %p227
        %p357 = pneg %p224
        %p358 = pneg %p255
        %p359 = pneg %p252
        %s360 = sand.u32 %s242, 1
        %s361 = scalar_lea.sflag [#allocation9], %s360
        %s362 = sand.u32 %s242, 1
        %s363 = smul.addr %s362, 64
        %s364 = scalar_lea.vmem [#allocation10], %s363
        %p366 = scmp.eq.s32.totalorder %s31, 0
        // Predicated region
        $region61: #{tpu_custom_call.1} parent=55 // pred_check
          %p367 = pneg %p366
        $region62: #{tpu_custom_call.1} parent=55 // pred_check_branch
          %369 = sbr.rel (%p367) target = $region64
        $region63: #{tpu_custom_call.1} parent=55 // pred_region
          %v370 = vld [vmem:[%s330] sm:$0xff]
          %v371 = vld [vmem:[%s330 + $0x8] sm:$0xff]
          %v372 = vld [vmem:[%s330 + $0x10] sm:$0xff]
          %v373 = vld [vmem:[%s330 + $0x18] sm:$0xff]
          %v374 = vld [vmem:[%s330 + $0x20] sm:$0xff]
          %v375 = vld [vmem:[%s330 + $0x28] sm:$0xff]
          %v376 = vld [vmem:[%s330 + $0x30] sm:$0xff]
          %v377 = vld [vmem:[%s330 + $0x38] sm:$0xff]
          %v378 = vld [vmem:[%s330 + $0x40] sm:$0xff]
          %v379 = vld [vmem:[%s330 + $0x48] sm:$0xff]
          %v380 = vld [vmem:[%s330 + $0x50] sm:$0xff]
          %v381 = vld [vmem:[%s330 + $0x58] sm:$0xff]
          %v382 = vld [vmem:[%s330 + $0x60] sm:$0xff]
          %v383 = vld [vmem:[%s330 + $0x68] sm:$0xff]
          %v384 = vld [vmem:[%s330 + $0x70] sm:$0xff]
          %v385 = vld [vmem:[%s330 + $0x78] sm:$0xff]
          %v386 = vadd.f32 %v370, %v371
          %v387 = vadd.f32 %v386, %v372
          %v388 = vadd.f32 %v387, %v373
          %v389 = vadd.f32 %v388, %v374
          %v390 = vadd.f32 %v389, %v375
          %v391 = vadd.f32 %v390, %v376
          %v392 = vadd.f32 %v391, %v377
          %v393 = vadd.f32 %v392, %v378
          %v394 = vadd.f32 %v393, %v379
          %v395 = vadd.f32 %v394, %v380
          %v396 = vadd.f32 %v395, %v381
          %v397 = vadd.f32 %v396, %v382
          %v398 = vadd.f32 %v397, %v383
          %v399 = vadd.f32 %v398, %v384
          %v400 = vadd.f32 %v399, %v385
          %401 = vadd.xlane.f32.xlu0 %v400
          %v402 = vpop.xlane.xlu0 %401
          %v403 = vrot.slane %v402, 4
          %v404 = vadd.f32 %v402, %v403
          %v405 = vrot.slane %v404, 2
          %v406 = vadd.f32 %v404, %v405
          %v407 = vrot.slane %v406, 1
          %v408 = vadd.f32 %v406, %v407
          %s409 = vtos %v408
          %s410 = smul.f32 %s409, 6.1035156e-05
          %v411 = vstv %s410
          %v412 = vsub.f32 %v370, %v411
          %v413 = vsub.f32 %v371, %v411
          %v414 = vsub.f32 %v372, %v411
          %v415 = vsub.f32 %v373, %v411
          %v416 = vsub.f32 %v374, %v411
          %v417 = vsub.f32 %v375, %v411
          %v418 = vsub.f32 %v376, %v411
          %v419 = vsub.f32 %v377, %v411
          %v420 = vsub.f32 %v378, %v411
          %v421 = vsub.f32 %v379, %v411
          %v422 = vsub.f32 %v380, %v411
          %v423 = vsub.f32 %v381, %v411
          %v424 = vsub.f32 %v382, %v411
          %v425 = vsub.f32 %v383, %v411
          %v426 = vsub.f32 %v384, %v411
          %v427 = vsub.f32 %v385, %v411
          %v428 = vmul.f32 %v412, %v412
          %v429 = vmul.f32 %v413, %v413
          %v430 = vmul.f32 %v414, %v414
          %v431 = vmul.f32 %v415, %v415
          %v432 = vmul.f32 %v416, %v416
          %v433 = vmul.f32 %v417, %v417
          %v434 = vmul.f32 %v418, %v418
          %v435 = vmul.f32 %v419, %v419
          %v436 = vmul.f32 %v420, %v420
          %v437 = vmul.f32 %v421, %v421
          %v438 = vmul.f32 %v422, %v422
          %v439 = vmul.f32 %v423, %v423
          %v440 = vmul.f32 %v424, %v424
          %v441 = vmul.f32 %v425, %v425
          %v442 = vmul.f32 %v426, %v426
          %v443 = vmul.f32 %v427, %v427
          %v444 = vadd.f32 %v428, %v429
          %v445 = vadd.f32 %v444, %v430
          %v446 = vadd.f32 %v445, %v431
          %v447 = vadd.f32 %v446, %v432
          %v448 = vadd.f32 %v447, %v433
          %v449 = vadd.f32 %v448, %v434
          %v450 = vadd.f32 %v449, %v435
          %v451 = vadd.f32 %v450, %v436
          %v452 = vadd.f32 %v451, %v437
          %v453 = vadd.f32 %v452, %v438
          %v454 = vadd.f32 %v453, %v439
          %v455 = vadd.f32 %v454, %v440
          %v456 = vadd.f32 %v455, %v441
          %v457 = vadd.f32 %v456, %v442
          %v458 = vadd.f32 %v457, %v443
          %459 = vadd.xlane.f32.xlu0 %v458
          %v460 = vpop.xlane.xlu0 %459
          %v461 = vrot.slane %v460, 4
          %v462 = vadd.f32 %v460, %v461
          %v463 = vrot.slane %v462, 2
          %v464 = vadd.f32 %v462, %v463
          %v465 = vrot.slane %v464, 1
          %v466 = vadd.f32 %v464, %v465
          %s467 = vtos %v466
          %s468 = smul.f32 %s467, 6.1035156e-05
          %s469 = sadd.f32 %s468, 1e-05
          %v470 = vstv %s469
          %v471 = vrsqrt.pop %v470
          %s472 = vtos %v471
          %v473 = vld [vmem:[%s1] sm:$0xff]
          %v474 = vld [vmem:[%s1 + $0x8] sm:$0xff]
          %v475 = vld [vmem:[%s1 + $0x10] sm:$0xff]
          %v476 = vld [vmem:[%s1 + $0x18] sm:$0xff]
          %v477 = vld [vmem:[%s1 + $0x20] sm:$0xff]
          %v478 = vld [vmem:[%s1 + $0x28] sm:$0xff]
          %v479 = vld [vmem:[%s1 + $0x30] sm:$0xff]
          %v480 = vld [vmem:[%s1 + $0x38] sm:$0xff]
          %v481 = vstv %s472
          %v482 = vmul.f32 %v473, %v481
          %v483 = vmul.f32 %v474, %v481
          %v484 = vmul.f32 %v475, %v481
          %v485 = vmul.f32 %v476, %v481
          %v486 = vmul.f32 %v477, %v481
          %v487 = vmul.f32 %v478, %v481
          %v488 = vmul.f32 %v479, %v481
          %v489 = vmul.f32 %v480, %v481
          %491 = vset.pattern.permute.xlu0 0
          %492 = vperm.xlu0 %491, %v482
          %v493 = vpop.permute.xlu0 %492
          %496 = vset.pattern.permute.xlu0 0
          %497 = vperm.xlu0 %496, %v483
          %v498 = vpop.permute.xlu0 %497
          %501 = vset.pattern.permute.xlu0 0
          %502 = vperm.xlu0 %501, %v484
          %v503 = vpop.permute.xlu0 %502
          %506 = vset.pattern.permute.xlu0 0
          %507 = vperm.xlu0 %506, %v485
          %v508 = vpop.permute.xlu0 %507
          %511 = vset.pattern.permute.xlu0 0
          %512 = vperm.xlu0 %511, %v486
          %v513 = vpop.permute.xlu0 %512
          %516 = vset.pattern.permute.xlu0 0
          %517 = vperm.xlu0 %516, %v487
          %v518 = vpop.permute.xlu0 %517
          %521 = vset.pattern.permute.xlu0 0
          %522 = vperm.xlu0 %521, %v488
          %v523 = vpop.permute.xlu0 %522
          %526 = vset.pattern.permute.xlu0 0
          %527 = vperm.xlu0 %526, %v489
          %v528 = vpop.permute.xlu0 %527
          %v530 = vmul.f32 %v412, %v493
          %v531 = vmul.f32 %v413, %v493
          %v532 = vmul.f32 %v414, %v498
          %v533 = vmul.f32 %v415, %v498
          %v534 = vmul.f32 %v416, %v503
          %v535 = vmul.f32 %v417, %v503
          %v536 = vmul.f32 %v418, %v508
          %v537 = vmul.f32 %v419, %v508
          %v538 = vmul.f32 %v420, %v513
          %v539 = vmul.f32 %v421, %v513
          %v540 = vmul.f32 %v422, %v518
          %v541 = vmul.f32 %v423, %v518
          %v542 = vmul.f32 %v424, %v523
          %v543 = vmul.f32 %v425, %v523
          %v544 = vmul.f32 %v426, %v528
          %v545 = vmul.f32 %v427, %v528
          %v546 = vld [vmem:[%s2] sm:$0xff]
          %v547 = vld [vmem:[%s2 + $0x8] sm:$0xff]
          %v548 = vld [vmem:[%s2 + $0x10] sm:$0xff]
          %v549 = vld [vmem:[%s2 + $0x18] sm:$0xff]
          %v550 = vld [vmem:[%s2 + $0x20] sm:$0xff]
          %v551 = vld [vmem:[%s2 + $0x28] sm:$0xff]
          %v552 = vld [vmem:[%s2 + $0x30] sm:$0xff]
          %v553 = vld [vmem:[%s2 + $0x38] sm:$0xff]
          %555 = vset.pattern.permute.xlu0 0
          %556 = vperm.xlu0 %555, %v546
          %v557 = vpop.permute.xlu0 %556
          %560 = vset.pattern.permute.xlu0 0
          %561 = vperm.xlu0 %560, %v547
          %v562 = vpop.permute.xlu0 %561
          %565 = vset.pattern.permute.xlu0 0
          %566 = vperm.xlu0 %565, %v548
          %v567 = vpop.permute.xlu0 %566
          %570 = vset.pattern.permute.xlu0 0
          %571 = vperm.xlu0 %570, %v549
          %v572 = vpop.permute.xlu0 %571
          %575 = vset.pattern.permute.xlu0 0
          %576 = vperm.xlu0 %575, %v550
          %v577 = vpop.permute.xlu0 %576
          %580 = vset.pattern.permute.xlu0 0
          %581 = vperm.xlu0 %580, %v551
          %v582 = vpop.permute.xlu0 %581
          %585 = vset.pattern.permute.xlu0 0
          %586 = vperm.xlu0 %585, %v552
          %v587 = vpop.permute.xlu0 %586
          %590 = vset.pattern.permute.xlu0 0
          %591 = vperm.xlu0 %590, %v553
          %v592 = vpop.permute.xlu0 %591
          %v594 = vadd.f32 %v530, %v557
          %v595 = vadd.f32 %v531, %v557
          %v596 = vadd.f32 %v532, %v562
          %v597 = vadd.f32 %v533, %v562
          %v598 = vadd.f32 %v534, %v567
          %v599 = vadd.f32 %v535, %v567
          %v600 = vadd.f32 %v536, %v572
          %v601 = vadd.f32 %v537, %v572
          %v602 = vadd.f32 %v538, %v577
          %v603 = vadd.f32 %v539, %v577
          %v604 = vadd.f32 %v540, %v582
          %v605 = vadd.f32 %v541, %v582
          %v606 = vadd.f32 %v542, %v587
          %v607 = vadd.f32 %v543, %v587
          %v608 = vadd.f32 %v544, %v592
          %v609 = vadd.f32 %v545, %v592
          %v610 = vpack.c.bf16 %v596, %v594
          %v611 = vpack.c.bf16 %v597, %v595
          %v612 = vpack.c.bf16 %v600, %v598
          %v613 = vpack.c.bf16 %v601, %v599
          %v614 = vpack.c.bf16 %v604, %v602
          %v615 = vpack.c.bf16 %v605, %v603
          %v616 = vpack.c.bf16 %v608, %v606
          %v617 = vpack.c.bf16 %v609, %v607
          %618 = vst [vmem:[#allocation4] sm:$0xff] %v610
          %619 = vst [vmem:[#allocation4 + $0x8] sm:$0xff] %v611
          %620 = vst [vmem:[#allocation4 + $0x10] sm:$0xff] %v612
          %621 = vst [vmem:[#allocation4 + $0x18] sm:$0xff] %v613
          %622 = vst [vmem:[#allocation4 + $0x20] sm:$0xff] %v614
          %623 = vst [vmem:[#allocation4 + $0x28] sm:$0xff] %v615
          %624 = vst [vmem:[#allocation4 + $0x30] sm:$0xff] %v616
          %625 = vst [vmem:[#allocation4 + $0x38] sm:$0xff] %v617
          loop: start=0, step=1, limit=2
          $region65: #{tpu_custom_call.1} parent=63 // loop_pre_header
            _
          $region66: #{tpu_custom_call.1} parent=63 // loop_header
            %s627 = sphi 0, %s631
            %p628 = scmp.ge.s32.totalorder %s627, 2
          $region67: #{tpu_custom_call.1} parent=63 // loop_header_branch
            %630 = sbr.rel (%p628) target = $region71
          $region68: #{tpu_custom_call.1} parent=63 // loop_body
            %s632 = smul.u32 %s627, 128
            %s633 = sshra.s32 %s632, 7
            %s634 = sand.u32 %s632, 127
            %s635 = smul.addr %s633, 8
            %s636 = scalar_lea.vmem [#allocation4], %s635
            %v637 = vld [vmem:[%s636] sm:$0xff]
            %v638 = vld [vmem:[%s636 + $0x10] sm:$0xff]
            %v639 = vld [vmem:[%s636 + $0x20] sm:$0xff]
            %v640 = vld [vmem:[%s636 + $0x30] sm:$0xff]
            %v641 = vld [vmem:[%s5] sm:$0xf]
            %v642 = vld [vmem:[%s5 + $0x4] sm:$0xf]
            %v643 = vld [vmem:[%s5 + $0x8] sm:$0xf]
            %v644 = vld [vmem:[%s5 + $0xc] sm:$0xf]
            %v645 = vld [vmem:[%s5 + $0x10] sm:$0xf]
            %v646 = vld [vmem:[%s5 + $0x14] sm:$0xf]
            %v647 = vld [vmem:[%s5 + $0x18] sm:$0xf]
            %v648 = vld [vmem:[%s5 + $0x1c] sm:$0xf]
            %v649 = vld [vmem:[%s5 + $0x20] sm:$0xf]
            %v650 = vld [vmem:[%s5 + $0x24] sm:$0xf]
            %v651 = vld [vmem:[%s5 + $0x28] sm:$0xf]
            %v652 = vld [vmem:[%s5 + $0x2c] sm:$0xf]
            %v653 = vld [vmem:[%s5 + $0x30] sm:$0xf]
            %v654 = vld [vmem:[%s5 + $0x34] sm:$0xf]
            %v655 = vld [vmem:[%s5 + $0x38] sm:$0xf]
            %v656 = vld [vmem:[%s5 + $0x3c] sm:$0xf]
            %v657 = vld [vmem:[%s6] sm:$0xff]
            %v658 = vld [vmem:[%s6 + $0x8] sm:$0xff]
            %v659 = vld [vmem:[%s6 + $0x10] sm:$0xff]
            %v660 = vld [vmem:[%s6 + $0x18] sm:$0xff]
            %v661 = vld [vmem:[%s6 + $0x20] sm:$0xff]
            %v662 = vld [vmem:[%s6 + $0x28] sm:$0xff]
            %v663 = vld [vmem:[%s6 + $0x30] sm:$0xff]
            %v664 = vld [vmem:[%s6 + $0x38] sm:$0xff]
            %v665 = vld [vmem:[%s6 + $0x40] sm:$0xff]
            %v666 = vld [vmem:[%s6 + $0x48] sm:$0xff]
            %v667 = vld [vmem:[%s6 + $0x50] sm:$0xff]
            %v668 = vld [vmem:[%s6 + $0x58] sm:$0xff]
            %v669 = vld [vmem:[%s6 + $0x60] sm:$0xff]
            %v670 = vld [vmem:[%s6 + $0x68] sm:$0xff]
            %v671 = vld [vmem:[%s6 + $0x70] sm:$0xff]
            %v672 = vld [vmem:[%s6 + $0x78] sm:$0xff]
            %674 = vset.pattern.permute.xlu0 0
            %675 = vperm.xlu0 %674, %v657
            %v676 = vpop.permute.xlu0 %675
            %679 = vset.pattern.permute.xlu0 0
            %680 = vperm.xlu0 %679, %v658
            %v681 = vpop.permute.xlu0 %680
            %684 = vset.pattern.permute.xlu0 0
            %685 = vperm.xlu0 %684, %v659
            %v686 = vpop.permute.xlu0 %685
            %689 = vset.pattern.permute.xlu0 0
            %690 = vperm.xlu0 %689, %v660
            %v691 = vpop.permute.xlu0 %690
            %694 = vset.pattern.permute.xlu0 0
            %695 = vperm.xlu0 %694, %v661
            %v696 = vpop.permute.xlu0 %695
            %699 = vset.pattern.permute.xlu0 0
            %700 = vperm.xlu0 %699, %v662
            %v701 = vpop.permute.xlu0 %700
            %704 = vset.pattern.permute.xlu0 0
            %705 = vperm.xlu0 %704, %v663
            %v706 = vpop.permute.xlu0 %705
            %709 = vset.pattern.permute.xlu0 0
            %710 = vperm.xlu0 %709, %v664
            %v711 = vpop.permute.xlu0 %710
            %714 = vset.pattern.permute.xlu0 0
            %715 = vperm.xlu0 %714, %v665
            %v716 = vpop.permute.xlu0 %715
            %719 = vset.pattern.permute.xlu0 0
            %720 = vperm.xlu0 %719, %v666
            %v721 = vpop.permute.xlu0 %720
            %724 = vset.pattern.permute.xlu0 0
            %725 = vperm.xlu0 %724, %v667
            %v726 = vpop.permute.xlu0 %725
            %729 = vset.pattern.permute.xlu0 0
            %730 = vperm.xlu0 %729, %v668
            %v731 = vpop.permute.xlu0 %730
            %734 = vset.pattern.permute.xlu0 0
            %735 = vperm.xlu0 %734, %v669
            %v736 = vpop.permute.xlu0 %735
            %739 = vset.pattern.permute.xlu0 0
            %740 = vperm.xlu0 %739, %v670
            %v741 = vpop.permute.xlu0 %740
            %744 = vset.pattern.permute.xlu0 0
            %745 = vperm.xlu0 %744, %v671
            %v746 = vpop.permute.xlu0 %745
            %749 = vset.pattern.permute.xlu0 0
            %750 = vperm.xlu0 %749, %v672
            %v751 = vpop.permute.xlu0 %750
            %v769 = vunpack.c.l.b16 %v641
            %v770 = vunpack.c.l.b16 %v642
            %v771 = vunpack.c.l.b16 %v643
            %v772 = vunpack.c.l.b16 %v644
            %v773 = vunpack.c.l.b16 %v645
            %v774 = vunpack.c.l.b16 %v646
            %v775 = vunpack.c.l.b16 %v647
            %v776 = vunpack.c.l.b16 %v648
            %v777 = vunpack.c.l.b16 %v649
            %v778 = vunpack.c.l.b16 %v650
            %v779 = vunpack.c.l.b16 %v651
            %v780 = vunpack.c.l.b16 %v652
            %v781 = vunpack.c.l.b16 %v653
            %v782 = vunpack.c.l.b16 %v654
            %v783 = vunpack.c.l.b16 %v655
            %v784 = vunpack.c.l.b16 %v656
            %v785 = vpack.c.b16 %v770, %v769
            %v786 = vpack.c.b16 %v772, %v771
            %v787 = vpack.c.b16 %v774, %v773
            %v788 = vpack.c.b16 %v776, %v775
            %v789 = vpack.c.b16 %v778, %v777
            %v790 = vpack.c.b16 %v780, %v779
            %v791 = vpack.c.b16 %v782, %v781
            %v792 = vpack.c.b16 %v784, %v783
            %vm793 = vcmask 523264
            %v795 = vsel %vm793, %v785, 0
            %v798 = vsel %vm793, %v786, 0
            %v801 = vsel %vm793, %v787, 0
            %v804 = vsel %vm793, %v788, 0
            %v807 = vsel %vm793, %v789, 0
            %v810 = vsel %vm793, %v790, 0
            %v813 = vsel %vm793, %v791, 0
            %v816 = vsel %vm793, %v792, 0
            %818 = vmatprep.subr.bf16.mxu0 0
            %819 = vmatpush1.bf16.msra.mxu0 %v637
            %820 = vmatprep.subr.bf16.mxu0 0
            %821 = vmatpush1.bf16.msra.mxu0 %v638
            %822 = vmatprep.subr.bf16.mxu0 0
            %823 = vmatpush1.bf16.msra.mxu0 %v639
            %824 = vmatprep.subr.bf16.mxu0 0
            %825 = vmatpush1.bf16.msra.mxu0 %v640
            %826 = vmatprep.subr.bf16.mxu0 0
            %827 = vmatpush1.bf16.msra.mxu0 0
            %828 = vmatprep.subr.bf16.mxu0 0
            %829 = vmatpush1.bf16.msra.mxu0 0
            %830 = vmatprep.subr.bf16.mxu0 0
            %831 = vmatpush1.bf16.msra.mxu0 0
            %832 = vmatprep.subr.bf16.mxu0 0
            %833 = vmatpush1.bf16.msra.mxu0 0
            %834 = vmatprep.subr.bf16.mxu0 0
            %835 = vmatpush1.bf16.msra.mxu0 0
            %836 = vmatprep.subr.bf16.mxu0 0
            %837 = vmatpush1.bf16.msra.mxu0 0
            %838 = vmatprep.subr.bf16.mxu0 0
            %839 = vmatpush1.bf16.msra.mxu0 0
            %840 = vmatprep.subr.bf16.mxu0 0
            %841 = vmatpush1.bf16.msra.mxu0 0
            %842 = vmatprep.subr.bf16.mxu0 0
            %843 = vmatpush1.bf16.msra.mxu0 0
            %844 = vmatprep.subr.bf16.mxu0 0
            %845 = vmatpush1.bf16.msra.mxu0 0
            %846 = vmatprep.subr.bf16.mxu0 0
            %847 = vmatpush1.bf16.msra.mxu0 0
            %848 = vmatprep.subr.bf16.mxu0 0
            %849 = vmatpush1.bf16.msra.mxu0 0
            %850 = vmatprep.mubr.bf16.mxu0 0
            %851 = vmatmul.mubr.bf16.gmra.mrb[0].mxu0 %v795
            %v852 = vpop.f32.mrb[0].mxu0
            %v853 = vadd.f32 %v676, %v852
            %v854 = vpop.f32.mrb[0].mxu0
            %v855 = vpop.f32.mrb[0].mxu0
            %v856 = vadd.f32 %v681, %v855
            %v857 = vpop.f32.mrb[0].mxu0
            %858 = vmatprep.mubr.bf16.mxu0 0
            %859 = vmatmul.mubr.bf16.gmra.mrb[0].mxu0 %v798
            %v860 = vpop.f32.mrb[0].mxu0
            %v861 = vadd.f32 %v686, %v860
            %v862 = vpop.f32.mrb[0].mxu0
            %v863 = vpop.f32.mrb[0].mxu0
            %v864 = vadd.f32 %v691, %v863
            %v865 = vpop.f32.mrb[0].mxu0
            %866 = vmatprep.mubr.bf16.mxu0 0
            %867 = vmatmul.mubr.bf16.gmra.mrb[0].mxu0 %v801
            %v868 = vpop.f32.mrb[0].mxu0
            %v869 = vadd.f32 %v696, %v868
            %v870 = vpop.f32.mrb[0].mxu0
            %v871 = vpop.f32.mrb[0].mxu0
            %v872 = vadd.f32 %v701, %v871
            %v873 = vpop.f32.mrb[0].mxu0
            %874 = vmatprep.mubr.bf16.mxu0 0
            %875 = vmatmul.mubr.bf16.gmra.mrb[0].mxu0 %v804
            %v876 = vpop.f32.mrb[0].mxu0
            %v877 = vadd.f32 %v706, %v876
            %v878 = vpop.f32.mrb[0].mxu0
            %v879 = vpop.f32.mrb[0].mxu0
            %v880 = vadd.f32 %v711, %v879
            %v881 = vpop.f32.mrb[0].mxu0
            %882 = vmatprep.mubr.bf16.mxu0 0
            %883 = vmatmul.mubr.bf16.gmra.mrb[0].mxu0 %v807
            %v884 = vpop.f32.mrb[0].mxu0
            %v885 = vadd.f32 %v716, %v884
            %v886 = vpop.f32.mrb[0].mxu0
            %v887 = vpop.f32.mrb[0].mxu0
            %v888 = vadd.f32 %v721, %v887
            %v889 = vpop.f32.mrb[0].mxu0
            %890 = vmatprep.mubr.bf16.mxu0 0
            %891 = vmatmul.mubr.bf16.gmra.mrb[0].mxu0 %v810
            %v892 = vpop.f32.mrb[0].mxu0
            %v893 = vadd.f32 %v726, %v892
            %v894 = vpop.f32.mrb[0].mxu0
            %v895 = vpop.f32.mrb[0].mxu0
            %v896 = vadd.f32 %v731, %v895
            %v897 = vpop.f32.mrb[0].mxu0
            %898 = vmatprep.mubr.bf16.mxu0 0
            %899 = vmatmul.mubr.bf16.gmra.mrb[0].mxu0 %v813
            %v900 = vpop.f32.mrb[0].mxu0
            %v901 = vadd.f32 %v736, %v900
            %v902 = vpop.f32.mrb[0].mxu0
            %v903 = vpop.f32.mrb[0].mxu0
            %v904 = vadd.f32 %v741, %v903
            %v905 = vpop.f32.mrb[0].mxu0
            %906 = vmatprep.mubr.bf16.mxu0 0
            %907 = vmatmul.mubr.bf16.gmra.mrb[0].mxu0 %v816
            %v908 = vpop.f32.mrb[0].mxu0
            %v909 = vadd.f32 %v746, %v908
            %v910 = vpop.f32.mrb[0].mxu0
            %v911 = vpop.f32.mrb[0].mxu0
            %v912 = vadd.f32 %v751, %v911
            %v913 = vpop.f32.mrb[0].mxu0
            %914 = vdwg.mxu0
            %v915 = vpack.c.bf16 %v856, %v853
            %v916 = vpack.c.bf16 %v864, %v861
            %v917 = vpack.c.bf16 %v872, %v869
            %v918 = vpack.c.bf16 %v880, %v877
            %s919 = smul.addr %s633, 8
            %s920 = scalar_lea.vmem [#allocation2], %s919
            %921 = vst [vmem:[%s920] sm:$0xff] %v915
            %922 = vst [vmem:[%s920 + $0x10] sm:$0xff] %v916
            %923 = vst [vmem:[%s920 + $0x20] sm:$0xff] %v917
            %924 = vst [vmem:[%s920 + $0x30] sm:$0xff] %v918
            %v925 = vpack.c.bf16 %v888, %v885
            %v926 = vpack.c.bf16 %v896, %v893
            %v927 = vpack.c.bf16 %v904, %v901
            %v928 = vpack.c.bf16 %v912, %v909
            %s929 = smul.addr %s633, 8
            %s930 = scalar_lea.vmem [#allocation3], %s929
            %931 = vst [vmem:[%s930] sm:$0xff] %v925
            %932 = vst [vmem:[%s930 + $0x10] sm:$0xff] %v926
            %933 = vst [vmem:[%s930 + $0x20] sm:$0xff] %v927
            %934 = vst [vmem:[%s930 + $0x30] sm:$0xff] %v928
          $region69: #{tpu_custom_call.1} parent=63 // loop_footer
            %s631 = sadd.s32 1, %s627
          $region70: #{tpu_custom_call.1} parent=63 // loop_footer_branch
            %626 = sbr.rel target = $region66
          $region71: #{tpu_custom_call.1} parent=63 // loop_exit
            _
        $region64: #{tpu_custom_call.1} parent=55 // pred_fallthru
          _
        %s935 = smul.u32 %s31, 128
        %s936 = sshra.s32 %s935, 7
        %s937 = sand.u32 %s935, 127
        %s938 = smul.addr %s936, 8
        %s939 = scalar_lea.vmem [#allocation4], %s938
        %v940 = vld [vmem:[%s939] sm:$0xff]
        %v941 = vld [vmem:[%s939 + $0x10] sm:$0xff]
        %v942 = vld [vmem:[%s939 + $0x20] sm:$0xff]
        %v943 = vld [vmem:[%s939 + $0x30] sm:$0xff]
        %v944 = vld [vmem:[%s3] sm:$0xf]
        %v945 = vld [vmem:[%s3 + $0x4] sm:$0xf]
        %v946 = vld [vmem:[%s3 + $0x8] sm:$0xf]
        %v947 = vld [vmem:[%s3 + $0xc] sm:$0xf]
        %v948 = vld [vmem:[%s3 + $0x10] sm:$0xf]
        %v949 = vld [vmem:[%s3 + $0x14] sm:$0xf]
        %v950 = vld [vmem:[%s3 + $0x18] sm:$0xf]
        %v951 = vld [vmem:[%s3 + $0x1c] sm:$0xf]
        %v952 = vld [vmem:[%s4] sm:$0xff]
        %v953 = vld [vmem:[%s4 + $0x8] sm:$0xff]
        %v954 = vld [vmem:[%s4 + $0x10] sm:$0xff]
        %v955 = vld [vmem:[%s4 + $0x18] sm:$0xff]
        %v956 = vld [vmem:[%s4 + $0x20] sm:$0xff]
        %v957 = vld [vmem:[%s4 + $0x28] sm:$0xff]
        %v958 = vld [vmem:[%s4 + $0x30] sm:$0xff]
        %v959 = vld [vmem:[%s4 + $0x38] sm:$0xff]
        %961 = vset.pattern.permute.xlu0 0
        %962 = vperm.xlu0 %961, %v952
        %v963 = vpop.permute.xlu0 %962
        %966 = vset.pattern.permute.xlu0 0
        %967 = vperm.xlu0 %966, %v953
        %v968 = vpop.permute.xlu0 %967
        %971 = vset.pattern.permute.xlu0 0
        %972 = vperm.xlu0 %971, %v954
        %v973 = vpop.permute.xlu0 %972
        %976 = vset.pattern.permute.xlu0 0
        %977 = vperm.xlu0 %976, %v955
        %v978 = vpop.permute.xlu0 %977
        %981 = vset.pattern.permute.xlu0 0
        %982 = vperm.xlu0 %981, %v956
        %v983 = vpop.permute.xlu0 %982
        %986 = vset.pattern.permute.xlu0 0
        %987 = vperm.xlu0 %986, %v957
        %v988 = vpop.permute.xlu0 %987
        %991 = vset.pattern.permute.xlu0 0
        %992 = vperm.xlu0 %991, %v958
        %v993 = vpop.permute.xlu0 %992
        %996 = vset.pattern.permute.xlu0 0
        %997 = vperm.xlu0 %996, %v959
        %v998 = vpop.permute.xlu0 %997
        %v1008 = vunpack.c.l.b16 %v944
        %v1009 = vunpack.c.l.b16 %v945
        %v1010 = vunpack.c.l.b16 %v946
        %v1011 = vunpack.c.l.b16 %v947
        %v1012 = vunpack.c.l.b16 %v948
        %v1013 = vunpack.c.l.b16 %v949
        %v1014 = vunpack.c.l.b16 %v950
        %v1015 = vunpack.c.l.b16 %v951
        %v1016 = vpack.c.b16 %v1009, %v1008
        %v1017 = vpack.c.b16 %v1011, %v1010
        %v1018 = vpack.c.b16 %v1013, %v1012
        %v1019 = vpack.c.b16 %v1015, %v1014
        %vm1020 = vcmask 523264
        %v1022 = vsel %vm1020, %v1016, 0
        %v1025 = vsel %vm1020, %v1017, 0
        %v1028 = vsel %vm1020, %v1018, 0
        %v1031 = vsel %vm1020, %v1019, 0
        %1033 = vmatprep.subr.bf16.mxu0 0
        %1034 = vmatpush1.bf16.msra.mxu0 %v940
        %1035 = vmatprep.subr.bf16.mxu0 0
        %1036 = vmatpush1.bf16.msra.mxu0 %v941
        %1037 = vmatprep.subr.bf16.mxu0 0
        %1038 = vmatpush1.bf16.msra.mxu0 %v942
        %1039 = vmatprep.subr.bf16.mxu0 0
        %1040 = vmatpush1.bf16.msra.mxu0 %v943
        %1041 = vmatprep.subr.bf16.mxu0 0
        %1042 = vmatpush1.bf16.msra.mxu0 0
        %1043 = vmatprep.subr.bf16.mxu0 0
        %1044 = vmatpush1.bf16.msra.mxu0 0
        %1045 = vmatprep.subr.bf16.mxu0 0
        %1046 = vmatpush1.bf16.msra.mxu0 0
        %1047 = vmatprep.subr.bf16.mxu0 0
        %1048 = vmatpush1.bf16.msra.mxu0 0
        %1049 = vmatprep.subr.bf16.mxu0 0
        %1050 = vmatpush1.bf16.msra.mxu0 0
        %1051 = vmatprep.subr.bf16.mxu0 0
        %1052 = vmatpush1.bf16.msra.mxu0 0
        %1053 = vmatprep.subr.bf16.mxu0 0
        %1054 = vmatpush1.bf16.msra.mxu0 0
        %1055 = vmatprep.subr.bf16.mxu0 0
        %1056 = vmatpush1.bf16.msra.mxu0 0
        %1057 = vmatprep.subr.bf16.mxu0 0
        %1058 = vmatpush1.bf16.msra.mxu0 0
        %1059 = vmatprep.subr.bf16.mxu0 0
        %1060 = vmatpush1.bf16.msra.mxu0 0
        %1061 = vmatprep.subr.bf16.mxu0 0
        %1062 = vmatpush1.bf16.msra.mxu0 0
        %1063 = vmatprep.subr.bf16.mxu0 0
        %1064 = vmatpush1.bf16.msra.mxu0 0
        %1065 = vmatprep.mubr.bf16.mxu0 0
        %1066 = vmatmul.mubr.bf16.gmra.mrb[0].mxu0 %v1022
        %v1067 = vpop.f32.mrb[0].mxu0
        %v1068 = vadd.f32 %v963, %v1067
        %v1069 = vpop.f32.mrb[0].mxu0
        %v1070 = vpop.f32.mrb[0].mxu0
        %v1071 = vadd.f32 %v968, %v1070
        %v1072 = vpop.f32.mrb[0].mxu0
        %1073 = vmatprep.mubr.bf16.mxu0 0
        %1074 = vmatmul.mubr.bf16.gmra.mrb[0].mxu0 %v1025
        %v1075 = vpop.f32.mrb[0].mxu0
        %v1076 = vadd.f32 %v973, %v1075
        %v1077 = vpop.f32.mrb[0].mxu0
        %v1078 = vpop.f32.mrb[0].mxu0
        %v1079 = vadd.f32 %v978, %v1078
        %v1080 = vpop.f32.mrb[0].mxu0
        %1081 = vmatprep.mubr.bf16.mxu0 0
        %1082 = vmatmul.mubr.bf16.gmra.mrb[0].mxu0 %v1028
        %v1083 = vpop.f32.mrb[0].mxu0
        %v1084 = vadd.f32 %v983, %v1083
        %v1085 = vpop.f32.mrb[0].mxu0
        %v1086 = vpop.f32.mrb[0].mxu0
        %v1087 = vadd.f32 %v988, %v1086
        %v1088 = vpop.f32.mrb[0].mxu0
        %1089 = vmatprep.mubr.bf16.mxu0 0
        %1090 = vmatmul.mubr.bf16.gmra.mrb[0].mxu0 %v1031
        %v1091 = vpop.f32.mrb[0].mxu0
        %v1092 = vadd.f32 %v993, %v1091
        %v1093 = vpop.f32.mrb[0].mxu0
        %v1094 = vpop.f32.mrb[0].mxu0
        %v1095 = vadd.f32 %v998, %v1094
        %v1096 = vpop.f32.mrb[0].mxu0
        %1097 = vdwg.mxu0
        %v1098 = vpack.c.bf16 %v1071, %v1068
        %v1099 = vpack.c.bf16 %v1079, %v1076
        %v1100 = vpack.c.bf16 %v1087, %v1084
        %v1101 = vpack.c.bf16 %v1095, %v1092
        %1102 = vst [vmem:[#allocation5] sm:$0xff] %v1098
        %1103 = vst [vmem:[#allocation5 + $0x8] sm:$0xff] %v1099
        %1104 = vst [vmem:[#allocation5 + $0x10] sm:$0xff] %v1100
        %1105 = vst [vmem:[#allocation5 + $0x18] sm:$0xff] %v1101
        loop: start=0, step=1, limit=2
        $region72: #{tpu_custom_call.1} parent=55 // loop_pre_header
          _
        $region73: #{tpu_custom_call.1} parent=55 // loop_header
          %s1107 = sphi 0, %s1111
          %p1108 = scmp.ge.s32.totalorder %s1107, 2
        $region74: #{tpu_custom_call.1} parent=55 // loop_header_branch
          %1110 = sbr.rel (%p1108) target = $region78
        $region75: #{tpu_custom_call.1} parent=55 // loop_body
          %s1112 = smul.u32 %s1107, 2
          %s1113 = smul.addr %s1112, 8
          %s1114 = scalar_lea.vmem [#allocation5], %s1113
          %v1115 = vld [vmem:[%s1114] sm:$0xff]
          %v1116 = vld [vmem:[%s1114 + $0x8] sm:$0xff]
          %s1117 = smul.u32 %s1112, 2
          %s1118 = smul.addr %s1117, 8
          %s1119 = scalar_lea.vmem [#allocation2], %s1118
          %v1120 = vld [vmem:[%s1119] sm:$0xff]
          %v1121 = vld [vmem:[%s1119 + $0x8] sm:$0xff]
          %v1122 = vld [vmem:[%s1119 + $0x10] sm:$0xff]
          %v1123 = vld [vmem:[%s1119 + $0x18] sm:$0xff]
          %s1124 = smul.addr %s1117, 8
          %s1125 = scalar_lea.vmem [#allocation3], %s1124
          %v1126 = vld [vmem:[%s1125] sm:$0xff]
          %v1127 = vld [vmem:[%s1125 + $0x8] sm:$0xff]
          %v1128 = vld [vmem:[%s1125 + $0x10] sm:$0xff]
          %v1129 = vld [vmem:[%s1125 + $0x18] sm:$0xff]
          %1130 = vxpose.xlu0.c.b16.start [1/8] %v1115, 128
          %1131 = vxpose.xlu0.c.b16.cont [2/8] 0, 128
          %1132 = vxpose.xlu0.c.b16.cont [3/8] 0, 128
          %1133 = vxpose.xlu0.c.b16.cont [4/8] 0, 128
          %1134 = vxpose.xlu0.c.b16.cont [5/8] 0, 128
          %1135 = vxpose.xlu0.c.b16.cont [6/8] 0, 128
          %1136 = vxpose.xlu0.c.b16.cont [7/8] 0, 128
          %1137 = vxpose.xlu0.c.b16.end [8/8] 0, 128
          %v1138 = vpop.trf.xlu0
          %v1139 = vpop.trf.xlu0
          %v1140 = vpop.trf.xlu0
          %v1141 = vpop.trf.xlu0
          %v1142 = vpop.trf.xlu0
          %v1143 = vpop.trf.xlu0
          %v1144 = vpop.trf.xlu0
          %v1145 = vpop.trf.xlu0
          %vm1146 = vcmask 130048
          %v1148 = vsel %vm1146, %v1138, 0
          %v1151 = vsel %vm1146, %v1139, 0
          %v1154 = vsel %vm1146, %v1140, 0
          %v1157 = vsel %vm1146, %v1141, 0
          %v1160 = vsel %vm1146, %v1142, 0
          %v1163 = vsel %vm1146, %v1143, 0
          %v1166 = vsel %vm1146, %v1144, 0
          %v1169 = vsel %vm1146, %v1145, 0
          %1171 = vmatprep.subr.bf16.mxu0 %v1121
          %1172 = vmatpush1.bf16.msra.mxu0 %v1120
          %1173 = vmatprep.subr.bf16.mxu0 0
          %1174 = vmatpush1.bf16.msra.mxu0 0
          %1175 = vmatprep.subr.bf16.mxu0 0
          %1176 = vmatpush1.bf16.msra.mxu0 0
          %1177 = vmatprep.subr.bf16.mxu0 0
          %1178 = vmatpush1.bf16.msra.mxu0 0
          %1179 = vmatprep.subr.bf16.mxu0 0
          %1180 = vmatpush1.bf16.msra.mxu0 0
          %1181 = vmatprep.subr.bf16.mxu0 0
          %1182 = vmatpush1.bf16.msra.mxu0 0
          %1183 = vmatprep.subr.bf16.mxu0 0
          %1184 = vmatpush1.bf16.msra.mxu0 0
          %1185 = vmatprep.subr.bf16.mxu0 0
          %1186 = vmatpush1.bf16.msra.mxu0 0
          %1187 = vmatprep.subr.bf16.mxu0 0
          %1188 = vmatpush1.bf16.msra.mxu0 0
          %1189 = vmatprep.subr.bf16.mxu0 0
          %1190 = vmatpush1.bf16.msra.mxu0 0
          %1191 = vmatprep.subr.bf16.mxu0 0
          %1192 = vmatpush1.bf16.msra.mxu0 0
          %1193 = vmatprep.subr.bf16.mxu0 0
          %1194 = vmatpush1.bf16.msra.mxu0 0
          %1195 = vmatprep.subr.bf16.mxu0 0
          %1196 = vmatpush1.bf16.msra.mxu0 0
          %1197 = vmatprep.subr.bf16.mxu0 0
          %1198 = vmatpush1.bf16.msra.mxu0 0
          %1199 = vmatprep.subr.bf16.mxu0 0
          %1200 = vmatpush1.bf16.msra.mxu0 0
          %1201 = vmatprep.subr.bf16.mxu0 0
          %1202 = vmatpush1.bf16.msra.mxu0 0
          %1203 = vmatprep.mubr.bf16.mxu0 0
          %1204 = vmatmul.mubr.bf16.gmra.mrb[0].mxu0 %v1148
          %v1205 = vpop.f32.mrb[0].mxu0
          %v1206 = vadd.f32 0.0, %v1205
          %v1207 = vpop.f32.mrb[0].mxu0
          %v1208 = vadd.f32 0.0, %v1207
          %v1209 = vpop.f32.mrb[0].mxu0
          %v1210 = vadd.f32 0.0, %v1209
          %v1211 = vpop.f32.mrb[0].mxu0
          %v1212 = vadd.f32 0.0, %v1211
          %1213 = vmatprep.mubr.bf16.mxu0 0
          %1214 = vmatmul.mubr.bf16.gmra.mrb[0].mxu0 %v1151
          %v1215 = vpop.f32.mrb[0].mxu0
          %v1216 = vadd.f32 0.0, %v1215
          %v1217 = vpop.f32.mrb[0].mxu0
          %v1218 = vadd.f32 0.0, %v1217
          %v1219 = vpop.f32.mrb[0].mxu0
          %v1220 = vadd.f32 0.0, %v1219
          %v1221 = vpop.f32.mrb[0].mxu0
          %v1222 = vadd.f32 0.0, %v1221
          %1223 = vmatprep.mubr.bf16.mxu0 0
          %1224 = vmatmul.mubr.bf16.gmra.mrb[0].mxu0 %v1154
          %v1225 = vpop.f32.mrb[0].mxu0
          %v1226 = vadd.f32 0.0, %v1225
          %v1227 = vpop.f32.mrb[0].mxu0
          %v1228 = vadd.f32 0.0, %v1227
          %v1229 = vpop.f32.mrb[0].mxu0
          %v1230 = vadd.f32 0.0, %v1229
          %v1231 = vpop.f32.mrb[0].mxu0
          %v1232 = vadd.f32 0.0, %v1231
          %1233 = vmatprep.mubr.bf16.mxu0 0
          %1234 = vmatmul.mubr.bf16.gmra.mrb[0].mxu0 %v1157
          %v1235 = vpop.f32.mrb[0].mxu0
          %v1236 = vadd.f32 0.0, %v1235
          %v1237 = vpop.f32.mrb[0].mxu0
          %v1238 = vadd.f32 0.0, %v1237
          %v1239 = vpop.f32.mrb[0].mxu0
          %v1240 = vadd.f32 0.0, %v1239
          %v1241 = vpop.f32.mrb[0].mxu0
          %v1242 = vadd.f32 0.0, %v1241
          %1243 = vmatprep.mubr.bf16.mxu0 0
          %1244 = vmatmul.mubr.bf16.gmra.mrb[0].mxu0 %v1160
          %v1245 = vpop.f32.mrb[0].mxu0
          %v1246 = vadd.f32 0.0, %v1245
          %v1247 = vpop.f32.mrb[0].mxu0
          %v1248 = vadd.f32 0.0, %v1247
          %v1249 = vpop.f32.mrb[0].mxu0
          %v1250 = vadd.f32 0.0, %v1249
          %v1251 = vpop.f32.mrb[0].mxu0
          %v1252 = vadd.f32 0.0, %v1251
          %1253 = vmatprep.mubr.bf16.mxu0 0
          %1254 = vmatmul.mubr.bf16.gmra.mrb[0].mxu0 %v1163
          %v1255 = vpop.f32.mrb[0].mxu0
          %v1256 = vadd.f32 0.0, %v1255
          %v1257 = vpop.f32.mrb[0].mxu0
          %v1258 = vadd.f32 0.0, %v1257
          %v1259 = vpop.f32.mrb[0].mxu0
          %v1260 = vadd.f32 0.0, %v1259
          %v1261 = vpop.f32.mrb[0].mxu0
          %v1262 = vadd.f32 0.0, %v1261
          %1263 = vmatprep.mubr.bf16.mxu0 0
          %1264 = vmatmul.mubr.bf16.gmra.mrb[0].mxu0 %v1166
          %v1265 = vpop.f32.mrb[0].mxu0
          %v1266 = vadd.f32 0.0, %v1265
          %v1267 = vpop.f32.mrb[0].mxu0
          %v1268 = vadd.f32 0.0, %v1267
          %v1269 = vpop.f32.mrb[0].mxu0
          %v1270 = vadd.f32 0.0, %v1269
          %v1271 = vpop.f32.mrb[0].mxu0
          %v1272 = vadd.f32 0.0, %v1271
          %1273 = vmatprep.mubr.bf16.mxu0 0
          %1274 = vmatmul.mubr.bf16.gmra.mrb[0].mxu0 %v1169
          %v1275 = vpop.f32.mrb[0].mxu0
          %v1276 = vadd.f32 0.0, %v1275
          %v1277 = vpop.f32.mrb[0].mxu0
          %v1278 = vadd.f32 0.0, %v1277
          %v1279 = vpop.f32.mrb[0].mxu0
          %v1280 = vadd.f32 0.0, %v1279
          %v1281 = vpop.f32.mrb[0].mxu0
          %v1282 = vadd.f32 0.0, %v1281
          %1283 = vdwg.mxu0
          %1284 = vxpose.xlu0.c.b16.start [1/8] %v1116, 128
          %1285 = vxpose.xlu0.c.b16.cont [2/8] 0, 128
          %1286 = vxpose.xlu0.c.b16.cont [3/8] 0, 128
          %1287 = vxpose.xlu0.c.b16.cont [4/8] 0, 128
          %1288 = vxpose.xlu0.c.b16.cont [5/8] 0, 128
          %1289 = vxpose.xlu0.c.b16.cont [6/8] 0, 128
          %1290 = vxpose.xlu0.c.b16.cont [7/8] 0, 128
          %1291 = vxpose.xlu0.c.b16.end [8/8] 0, 128
          %v1292 = vpop.trf.xlu0
          %v1293 = vpop.trf.xlu0
          %v1294 = vpop.trf.xlu0
          %v1295 = vpop.trf.xlu0
          %v1296 = vpop.trf.xlu0
          %v1297 = vpop.trf.xlu0
          %v1298 = vpop.trf.xlu0
          %v1299 = vpop.trf.xlu0
          %v1301 = vsel %vm1146, %v1292, 0
          %v1304 = vsel %vm1146, %v1293, 0
          %v1307 = vsel %vm1146, %v1294, 0
          %v1310 = vsel %vm1146, %v1295, 0
          %v1313 = vsel %vm1146, %v1296, 0
          %v1316 = vsel %vm1146, %v1297, 0
          %v1319 = vsel %vm1146, %v1298, 0
          %v1322 = vsel %vm1146, %v1299, 0
          %1324 = vmatprep.subr.bf16.mxu0 %v1123
          %1325 = vmatpush1.bf16.msra.mxu0 %v1122
          %1326 = vmatprep.subr.bf16.mxu0 0
          %1327 = vmatpush1.bf16.msra.mxu0 0
          %1328 = vmatprep.subr.bf16.mxu0 0
          %1329 = vmatpush1.bf16.msra.mxu0 0
          %1330 = vmatprep.subr.bf16.mxu0 0
          %1331 = vmatpush1.bf16.msra.mxu0 0
          %1332 = vmatprep.subr.bf16.mxu0 0
          %1333 = vmatpush1.bf16.msra.mxu0 0
          %1334 = vmatprep.subr.bf16.mxu0 0
          %1335 = vmatpush1.bf16.msra.mxu0 0
          %1336 = vmatprep.subr.bf16.mxu0 0
          %1337 = vmatpush1.bf16.msra.mxu0 0
          %1338 = vmatprep.subr.bf16.mxu0 0
          %1339 = vmatpush1.bf16.msra.mxu0 0
          %1340 = vmatprep.subr.bf16.mxu0 0
          %1341 = vmatpush1.bf16.msra.mxu0 0
          %1342 = vmatprep.subr.bf16.mxu0 0
          %1343 = vmatpush1.bf16.msra.mxu0 0
          %1344 = vmatprep.subr.bf16.mxu0 0
          %1345 = vmatpush1.bf16.msra.mxu0 0
          %1346 = vmatprep.subr.bf16.mxu0 0
          %1347 = vmatpush1.bf16.msra.mxu0 0
          %1348 = vmatprep.subr.bf16.mxu0 0
          %1349 = vmatpush1.bf16.msra.mxu0 0
          %1350 = vmatprep.subr.bf16.mxu0 0
          %1351 = vmatpush1.bf16.msra.mxu0 0
          %1352 = vmatprep.subr.bf16.mxu0 0
          %1353 = vmatpush1.bf16.msra.mxu0 0
          %1354 = vmatprep.subr.bf16.mxu0 0
          %1355 = vmatpush1.bf16.msra.mxu0 0
          %1356 = vmatprep.mubr.bf16.mxu0 0
          %1357 = vmatmul.mubr.bf16.gmra.mrb[0].mxu0 %v1301
          %v1358 = vpop.f32.mrb[0].mxu0
          %v1359 = vadd.f32 0.0, %v1358
          %v1360 = vpop.f32.mrb[0].mxu0
          %v1361 = vadd.f32 0.0, %v1360
          %v1362 = vpop.f32.mrb[0].mxu0
          %v1363 = vadd.f32 0.0, %v1362
          %v1364 = vpop.f32.mrb[0].mxu0
          %v1365 = vadd.f32 0.0, %v1364
          %1366 = vmatprep.mubr.bf16.mxu0 0
          %1367 = vmatmul.mubr.bf16.gmra.mrb[0].mxu0 %v1304
          %v1368 = vpop.f32.mrb[0].mxu0
          %v1369 = vadd.f32 0.0, %v1368
          %v1370 = vpop.f32.mrb[0].mxu0
          %v1371 = vadd.f32 0.0, %v1370
          %v1372 = vpop.f32.mrb[0].mxu0
          %v1373 = vadd.f32 0.0, %v1372
          %v1374 = vpop.f32.mrb[0].mxu0
          %v1375 = vadd.f32 0.0, %v1374
          %1376 = vmatprep.mubr.bf16.mxu0 0
          %1377 = vmatmul.mubr.bf16.gmra.mrb[0].mxu0 %v1307
          %v1378 = vpop.f32.mrb[0].mxu0
          %v1379 = vadd.f32 0.0, %v1378
          %v1380 = vpop.f32.mrb[0].mxu0
          %v1381 = vadd.f32 0.0, %v1380
          %v1382 = vpop.f32.mrb[0].mxu0
          %v1383 = vadd.f32 0.0, %v1382
          %v1384 = vpop.f32.mrb[0].mxu0
          %v1385 = vadd.f32 0.0, %v1384
          %1386 = vmatprep.mubr.bf16.mxu0 0
          %1387 = vmatmul.mubr.bf16.gmra.mrb[0].mxu0 %v1310
          %v1388 = vpop.f32.mrb[0].mxu0
          %v1389 = vadd.f32 0.0, %v1388
          %v1390 = vpop.f32.mrb[0].mxu0
          %v1391 = vadd.f32 0.0, %v1390
          %v1392 = vpop.f32.mrb[0].mxu0
          %v1393 = vadd.f32 0.0, %v1392
          %v1394 = vpop.f32.mrb[0].mxu0
          %v1395 = vadd.f32 0.0, %v1394
          %1396 = vmatprep.mubr.bf16.mxu0 0
          %1397 = vmatmul.mubr.bf16.gmra.mrb[0].mxu0 %v1313
          %v1398 = vpop.f32.mrb[0].mxu0
          %v1399 = vadd.f32 0.0, %v1398
          %v1400 = vpop.f32.mrb[0].mxu0
          %v1401 = vadd.f32 0.0, %v1400
          %v1402 = vpop.f32.mrb[0].mxu0
          %v1403 = vadd.f32 0.0, %v1402
          %v1404 = vpop.f32.mrb[0].mxu0
          %v1405 = vadd.f32 0.0, %v1404
          %1406 = vmatprep.mubr.bf16.mxu0 0
          %1407 = vmatmul.mubr.bf16.gmra.mrb[0].mxu0 %v1316
          %v1408 = vpop.f32.mrb[0].mxu0
          %v1409 = vadd.f32 0.0, %v1408
          %v1410 = vpop.f32.mrb[0].mxu0
          %v1411 = vadd.f32 0.0, %v1410
          %v1412 = vpop.f32.mrb[0].mxu0
          %v1413 = vadd.f32 0.0, %v1412
          %v1414 = vpop.f32.mrb[0].mxu0
          %v1415 = vadd.f32 0.0, %v1414
          %1416 = vmatprep.mubr.bf16.mxu0 0
          %1417 = vmatmul.mubr.bf16.gmra.mrb[0].mxu0 %v1319
          %v1418 = vpop.f32.mrb[0].mxu0
          %v1419 = vadd.f32 0.0, %v1418
          %v1420 = vpop.f32.mrb[0].mxu0
          %v1421 = vadd.f32 0.0, %v1420
          %v1422 = vpop.f32.mrb[0].mxu0
          %v1423 = vadd.f32 0.0, %v1422
          %v1424 = vpop.f32.mrb[0].mxu0
          %v1425 = vadd.f32 0.0, %v1424
          %1426 = vmatprep.mubr.bf16.mxu0 0
          %1427 = vmatmul.mubr.bf16.gmra.mrb[0].mxu0 %v1322
          %v1428 = vpop.f32.mrb[0].mxu0
          %v1429 = vadd.f32 0.0, %v1428
          %v1430 = vpop.f32.mrb[0].mxu0
          %v1431 = vadd.f32 0.0, %v1430
          %v1432 = vpop.f32.mrb[0].mxu0
          %v1433 = vadd.f32 0.0, %v1432
          %v1434 = vpop.f32.mrb[0].mxu0
          %v1435 = vadd.f32 0.0, %v1434
          %1436 = vdwg.mxu0
          %v1437 = vmax.f32 %v1206, %v1208
          %1438 = vmax.xlane.f32.xlu0 %v1437
          %v1439 = vpop.xlane.xlu0 %1438
          %v1440 = vmax.f32 %v1210, %v1212
          %1441 = vmax.xlane.f32.xlu0 %v1440
          %v1442 = vpop.xlane.xlu0 %1441
          %v1443 = vmax.f32 %v1216, %v1218
          %1444 = vmax.xlane.f32.xlu0 %v1443
          %v1445 = vpop.xlane.xlu0 %1444
          %v1446 = vmax.f32 %v1220, %v1222
          %1447 = vmax.xlane.f32.xlu0 %v1446
          %v1448 = vpop.xlane.xlu0 %1447
          %v1449 = vmax.f32 %v1226, %v1228
          %1450 = vmax.xlane.f32.xlu0 %v1449
          %v1451 = vpop.xlane.xlu0 %1450
          %v1452 = vmax.f32 %v1230, %v1232
          %1453 = vmax.xlane.f32.xlu0 %v1452
          %v1454 = vpop.xlane.xlu0 %1453
          %v1455 = vmax.f32 %v1236, %v1238
          %1456 = vmax.xlane.f32.xlu0 %v1455
          %v1457 = vpop.xlane.xlu0 %1456
          %v1458 = vmax.f32 %v1240, %v1242
          %1459 = vmax.xlane.f32.xlu0 %v1458
          %v1460 = vpop.xlane.xlu0 %1459
          %v1461 = vmax.f32 %v1246, %v1248
          %1462 = vmax.xlane.f32.xlu0 %v1461
          %v1463 = vpop.xlane.xlu0 %1462
          %v1464 = vmax.f32 %v1250, %v1252
          %1465 = vmax.xlane.f32.xlu0 %v1464
          %v1466 = vpop.xlane.xlu0 %1465
          %v1467 = vmax.f32 %v1256, %v1258
          %1468 = vmax.xlane.f32.xlu0 %v1467
          %v1469 = vpop.xlane.xlu0 %1468
          %v1470 = vmax.f32 %v1260, %v1262
          %1471 = vmax.xlane.f32.xlu0 %v1470
          %v1472 = vpop.xlane.xlu0 %1471
          %v1473 = vmax.f32 %v1266, %v1268
          %1474 = vmax.xlane.f32.xlu0 %v1473
          %v1475 = vpop.xlane.xlu0 %1474
          %v1476 = vmax.f32 %v1270, %v1272
          %1477 = vmax.xlane.f32.xlu0 %v1476
          %v1478 = vpop.xlane.xlu0 %1477
          %v1479 = vmax.f32 %v1276, %v1278
          %1480 = vmax.xlane.f32.xlu0 %v1479
          %v1481 = vpop.xlane.xlu0 %1480
          %v1482 = vmax.f32 %v1280, %v1282
          %1483 = vmax.xlane.f32.xlu0 %v1482
          %v1484 = vpop.xlane.xlu0 %1483
          %v1485 = vmax.f32 %v1359, %v1361
          %1486 = vmax.xlane.f32.xlu0 %v1485
          %v1487 = vpop.xlane.xlu0 %1486
          %v1488 = vmax.f32 %v1363, %v1365
          %1489 = vmax.xlane.f32.xlu0 %v1488
          %v1490 = vpop.xlane.xlu0 %1489
          %v1491 = vmax.f32 %v1369, %v1371
          %1492 = vmax.xlane.f32.xlu0 %v1491
          %v1493 = vpop.xlane.xlu0 %1492
          %v1494 = vmax.f32 %v1373, %v1375
          %1495 = vmax.xlane.f32.xlu0 %v1494
          %v1496 = vpop.xlane.xlu0 %1495
          %v1497 = vmax.f32 %v1379, %v1381
          %1498 = vmax.xlane.f32.xlu0 %v1497
          %v1499 = vpop.xlane.xlu0 %1498
          %v1500 = vmax.f32 %v1383, %v1385
          %1501 = vmax.xlane.f32.xlu0 %v1500
          %v1502 = vpop.xlane.xlu0 %1501
          %v1503 = vmax.f32 %v1389, %v1391
          %1504 = vmax.xlane.f32.xlu0 %v1503
          %v1505 = vpop.xlane.xlu0 %1504
          %v1506 = vmax.f32 %v1393, %v1395
          %1507 = vmax.xlane.f32.xlu0 %v1506
          %v1508 = vpop.xlane.xlu0 %1507
          %v1509 = vmax.f32 %v1399, %v1401
          %1510 = vmax.xlane.f32.xlu0 %v1509
          %v1511 = vpop.xlane.xlu0 %1510
          %v1512 = vmax.f32 %v1403, %v1405
          %1513 = vmax.xlane.f32.xlu0 %v1512
          %v1514 = vpop.xlane.xlu0 %1513
          %v1515 = vmax.f32 %v1409, %v1411
          %1516 = vmax.xlane.f32.xlu0 %v1515
          %v1517 = vpop.xlane.xlu0 %1516
          %v1518 = vmax.f32 %v1413, %v1415
          %1519 = vmax.xlane.f32.xlu0 %v1518
          %v1520 = vpop.xlane.xlu0 %1519
          %v1521 = vmax.f32 %v1419, %v1421
          %1522 = vmax.xlane.f32.xlu0 %v1521
          %v1523 = vpop.xlane.xlu0 %1522
          %v1524 = vmax.f32 %v1423, %v1425
          %1525 = vmax.xlane.f32.xlu0 %v1524
          %v1526 = vpop.xlane.xlu0 %1525
          %v1527 = vmax.f32 %v1429, %v1431
          %1528 = vmax.xlane.f32.xlu0 %v1527
          %v1529 = vpop.xlane.xlu0 %1528
          %v1530 = vmax.f32 %v1433, %v1435
          %1531 = vmax.xlane.f32.xlu0 %v1530
          %v1532 = vpop.xlane.xlu0 %1531
          %v1533 = vsub.f32 %v1206, %v1439
          %v1534 = vsub.f32 %v1208, %v1439
          %v1535 = vsub.f32 %v1210, %v1442
          %v1536 = vsub.f32 %v1212, %v1442
          %v1537 = vsub.f32 %v1216, %v1445
          %v1538 = vsub.f32 %v1218, %v1445
          %v1539 = vsub.f32 %v1220, %v1448
          %v1540 = vsub.f32 %v1222, %v1448
          %v1541 = vsub.f32 %v1226, %v1451
          %v1542 = vsub.f32 %v1228, %v1451
          %v1543 = vsub.f32 %v1230, %v1454
          %v1544 = vsub.f32 %v1232, %v1454
          %v1545 = vsub.f32 %v1236, %v1457
          %v1546 = vsub.f32 %v1238, %v1457
          %v1547 = vsub.f32 %v1240, %v1460
          %v1548 = vsub.f32 %v1242, %v1460
          %v1549 = vsub.f32 %v1246, %v1463
          %v1550 = vsub.f32 %v1248, %v1463
          %v1551 = vsub.f32 %v1250, %v1466
          %v1552 = vsub.f32 %v1252, %v1466
          %v1553 = vsub.f32 %v1256, %v1469
          %v1554 = vsub.f32 %v1258, %v1469
          %v1555 = vsub.f32 %v1260, %v1472
          %v1556 = vsub.f32 %v1262, %v1472
          %v1557 = vsub.f32 %v1266, %v1475
          %v1558 = vsub.f32 %v1268, %v1475
          %v1559 = vsub.f32 %v1270, %v1478
          %v1560 = vsub.f32 %v1272, %v1478
          %v1561 = vsub.f32 %v1276, %v1481
          %v1562 = vsub.f32 %v1278, %v1481
          %v1563 = vsub.f32 %v1280, %v1484
          %v1564 = vsub.f32 %v1282, %v1484
          %v1565 = vsub.f32 %v1359, %v1487
          %v1566 = vsub.f32 %v1361, %v1487
          %v1567 = vsub.f32 %v1363, %v1490
          %v1568 = vsub.f32 %v1365, %v1490
          %v1569 = vsub.f32 %v1369, %v1493
          %v1570 = vsub.f32 %v1371, %v1493
          %v1571 = vsub.f32 %v1373, %v1496
          %v1572 = vsub.f32 %v1375, %v1496
          %v1573 = vsub.f32 %v1379, %v1499
          %v1574 = vsub.f32 %v1381, %v1499
          %v1575 = vsub.f32 %v1383, %v1502
          %v1576 = vsub.f32 %v1385, %v1502
          %v1577 = vsub.f32 %v1389, %v1505
          %v1578 = vsub.f32 %v1391, %v1505
          %v1579 = vsub.f32 %v1393, %v1508
          %v1580 = vsub.f32 %v1395, %v1508
          %v1581 = vsub.f32 %v1399, %v1511
          %v1582 = vsub.f32 %v1401, %v1511
          %v1583 = vsub.f32 %v1403, %v1514
          %v1584 = vsub.f32 %v1405, %v1514
          %v1585 = vsub.f32 %v1409, %v1517
          %v1586 = vsub.f32 %v1411, %v1517
          %v1587 = vsub.f32 %v1413, %v1520
          %v1588 = vsub.f32 %v1415, %v1520
          %v1589 = vsub.f32 %v1419, %v1523
          %v1590 = vsub.f32 %v1421, %v1523
          %v1591 = vsub.f32 %v1423, %v1526
          %v1592 = vsub.f32 %v1425, %v1526
          %v1593 = vsub.f32 %v1429, %v1529
          %v1594 = vsub.f32 %v1431, %v1529
          %v1595 = vsub.f32 %v1433, %v1532
          %v1596 = vsub.f32 %v1435, %v1532
          %v1597 = vmul.f32 %v1533, 1.442695
          %v1598 = vpow.pop %v1597
          %v1599 = vmul.f32 %v1534, 1.442695
          %v1600 = vpow.pop %v1599
          %v1601 = vmul.f32 %v1535, 1.442695
          %v1602 = vpow.pop %v1601
          %v1603 = vmul.f32 %v1536, 1.442695
          %v1604 = vpow.pop %v1603
          %v1605 = vmul.f32 %v1537, 1.442695
          %v1606 = vpow.pop %v1605
          %v1607 = vmul.f32 %v1538, 1.442695
          %v1608 = vpow.pop %v1607
          %v1609 = vmul.f32 %v1539, 1.442695
          %v1610 = vpow.pop %v1609
          %v1611 = vmul.f32 %v1540, 1.442695
          %v1612 = vpow.pop %v1611
          %v1613 = vmul.f32 %v1541, 1.442695
          %v1614 = vpow.pop %v1613
          %v1615 = vmul.f32 %v1542, 1.442695
          %v1616 = vpow.pop %v1615
          %v1617 = vmul.f32 %v1543, 1.442695
          %v1618 = vpow.pop %v1617
          %v1619 = vmul.f32 %v1544, 1.442695
          %v1620 = vpow.pop %v1619
          %v1621 = vmul.f32 %v1545, 1.442695
          %v1622 = vpow.pop %v1621
          %v1623 = vmul.f32 %v1546, 1.442695
          %v1624 = vpow.pop %v1623
          %v1625 = vmul.f32 %v1547, 1.442695
          %v1626 = vpow.pop %v1625
          %v1627 = vmul.f32 %v1548, 1.442695
          %v1628 = vpow.pop %v1627
          %v1629 = vmul.f32 %v1549, 1.442695
          %v1630 = vpow.pop %v1629
          %v1631 = vmul.f32 %v1550, 1.442695
          %v1632 = vpow.pop %v1631
          %v1633 = vmul.f32 %v1551, 1.442695
          %v1634 = vpow.pop %v1633
          %v1635 = vmul.f32 %v1552, 1.442695
          %v1636 = vpow.pop %v1635
          %v1637 = vmul.f32 %v1553, 1.442695
          %v1638 = vpow.pop %v1637
          %v1639 = vmul.f32 %v1554, 1.442695
          %v1640 = vpow.pop %v1639
          %v1641 = vmul.f32 %v1555, 1.442695
          %v1642 = vpow.pop %v1641
          %v1643 = vmul.f32 %v1556, 1.442695
          %v1644 = vpow.pop %v1643
          %v1645 = vmul.f32 %v1557, 1.442695
          %v1646 = vpow.pop %v1645
          %v1647 = vmul.f32 %v1558, 1.442695
          %v1648 = vpow.pop %v1647
          %v1649 = vmul.f32 %v1559, 1.442695
          %v1650 = vpow.pop %v1649
          %v1651 = vmul.f32 %v1560, 1.442695
          %v1652 = vpow.pop %v1651
          %v1653 = vmul.f32 %v1561, 1.442695
          %v1654 = vpow.pop %v1653
          %v1655 = vmul.f32 %v1562, 1.442695
          %v1656 = vpow.pop %v1655
          %v1657 = vmul.f32 %v1563, 1.442695
          %v1658 = vpow.pop %v1657
          %v1659 = vmul.f32 %v1564, 1.442695
          %v1660 = vpow.pop %v1659
          %v1661 = vmul.f32 %v1565, 1.442695
          %v1662 = vpow.pop %v1661
          %v1663 = vmul.f32 %v1566, 1.442695
          %v1664 = vpow.pop %v1663
          %v1665 = vmul.f32 %v1567, 1.442695
          %v1666 = vpow.pop %v1665
          %v1667 = vmul.f32 %v1568, 1.442695
          %v1668 = vpow.pop %v1667
          %v1669 = vmul.f32 %v1569, 1.442695
          %v1670 = vpow.pop %v1669
          %v1671 = vmul.f32 %v1570, 1.442695
          %v1672 = vpow.pop %v1671
          %v1673 = vmul.f32 %v1571, 1.442695
          %v1674 = vpow.pop %v1673
          %v1675 = vmul.f32 %v1572, 1.442695
          %v1676 = vpow.pop %v1675
          %v1677 = vmul.f32 %v1573, 1.442695
          %v1678 = vpow.pop %v1677
          %v1679 = vmul.f32 %v1574, 1.442695
          %v1680 = vpow.pop %v1679
          %v1681 = vmul.f32 %v1575, 1.442695
          %v1682 = vpow.pop %v1681
          %v1683 = vmul.f32 %v1576, 1.442695
          %v1684 = vpow.pop %v1683
          %v1685 = vmul.f32 %v1577, 1.442695
          %v1686 = vpow.pop %v1685
          %v1687 = vmul.f32 %v1578, 1.442695
          %v1688 = vpow.pop %v1687
          %v1689 = vmul.f32 %v1579, 1.442695
          %v1690 = vpow.pop %v1689
          %v1691 = vmul.f32 %v1580, 1.442695
          %v1692 = vpow.pop %v1691
          %v1693 = vmul.f32 %v1581, 1.442695
          %v1694 = vpow.pop %v1693
          %v1695 = vmul.f32 %v1582, 1.442695
          %v1696 = vpow.pop %v1695
          %v1697 = vmul.f32 %v1583, 1.442695
          %v1698 = vpow.pop %v1697
          %v1699 = vmul.f32 %v1584, 1.442695
          %v1700 = vpow.pop %v1699
          %v1701 = vmul.f32 %v1585, 1.442695
          %v1702 = vpow.pop %v1701
          %v1703 = vmul.f32 %v1586, 1.442695
          %v1704 = vpow.pop %v1703
          %v1705 = vmul.f32 %v1587, 1.442695
          %v1706 = vpow.pop %v1705
          %v1707 = vmul.f32 %v1588, 1.442695
          %v1708 = vpow.pop %v1707
          %v1709 = vmul.f32 %v1589, 1.442695
          %v1710 = vpow.pop %v1709
          %v1711 = vmul.f32 %v1590, 1.442695
          %v1712 = vpow.pop %v1711
          %v1713 = vmul.f32 %v1591, 1.442695
          %v1714 = vpow.pop %v1713
          %v1715 = vmul.f32 %v1592, 1.442695
          %v1716 = vpow.pop %v1715
          %v1717 = vmul.f32 %v1593, 1.442695
          %v1718 = vpow.pop %v1717
          %v1719 = vmul.f32 %v1594, 1.442695
          %v1720 = vpow.pop %v1719
          %v1721 = vmul.f32 %v1595, 1.442695
          %v1722 = vpow.pop %v1721
          %v1723 = vmul.f32 %v1596, 1.442695
          %v1724 = vpow.pop %v1723
          %v1725 = vadd.f32 %v1598, %v1600
          %1726 = vadd.xlane.f32.xlu0 %v1725
          %v1727 = vpop.xlane.xlu0 %1726
          %v1728 = vadd.f32 %v1602, %v1604
          %1729 = vadd.xlane.f32.xlu0 %v1728
          %v1730 = vpop.xlane.xlu0 %1729
          %v1731 = vadd.f32 %v1606, %v1608
          %1732 = vadd.xlane.f32.xlu0 %v1731
          %v1733 = vpop.xlane.xlu0 %1732
          %v1734 = vadd.f32 %v1610, %v1612
          %1735 = vadd.xlane.f32.xlu0 %v1734
          %v1736 = vpop.xlane.xlu0 %1735
          %v1737 = vadd.f32 %v1614, %v1616
          %1738 = vadd.xlane.f32.xlu0 %v1737
          %v1739 = vpop.xlane.xlu0 %1738
          %v1740 = vadd.f32 %v1618, %v1620
          %1741 = vadd.xlane.f32.xlu0 %v1740
          %v1742 = vpop.xlane.xlu0 %1741
          %v1743 = vadd.f32 %v1622, %v1624
          %1744 = vadd.xlane.f32.xlu0 %v1743
          %v1745 = vpop.xlane.xlu0 %1744
          %v1746 = vadd.f32 %v1626, %v1628
          %1747 = vadd.xlane.f32.xlu0 %v1746
          %v1748 = vpop.xlane.xlu0 %1747
          %v1749 = vadd.f32 %v1630, %v1632
          %1750 = vadd.xlane.f32.xlu0 %v1749
          %v1751 = vpop.xlane.xlu0 %1750
          %v1752 = vadd.f32 %v1634, %v1636
          %1753 = vadd.xlane.f32.xlu0 %v1752
          %v1754 = vpop.xlane.xlu0 %1753
          %v1755 = vadd.f32 %v1638, %v1640
          %1756 = vadd.xlane.f32.xlu0 %v1755
          %v1757 = vpop.xlane.xlu0 %1756
          %v1758 = vadd.f32 %v1642, %v1644
          %1759 = vadd.xlane.f32.xlu0 %v1758
          %v1760 = vpop.xlane.xlu0 %1759
          %v1761 = vadd.f32 %v1646, %v1648
          %1762 = vadd.xlane.f32.xlu0 %v1761
          %v1763 = vpop.xlane.xlu0 %1762
          %v1764 = vadd.f32 %v1650, %v1652
          %1765 = vadd.xlane.f32.xlu0 %v1764
          %v1766 = vpop.xlane.xlu0 %1765
          %v1767 = vadd.f32 %v1654, %v1656
          %1768 = vadd.xlane.f32.xlu0 %v1767
          %v1769 = vpop.xlane.xlu0 %1768
          %v1770 = vadd.f32 %v1658, %v1660
          %1771 = vadd.xlane.f32.xlu0 %v1770
          %v1772 = vpop.xlane.xlu0 %1771
          %v1773 = vadd.f32 %v1662, %v1664
          %1774 = vadd.xlane.f32.xlu0 %v1773
          %v1775 = vpop.xlane.xlu0 %1774
          %v1776 = vadd.f32 %v1666, %v1668
          %1777 = vadd.xlane.f32.xlu0 %v1776
          %v1778 = vpop.xlane.xlu0 %1777
          %v1779 = vadd.f32 %v1670, %v1672
          %1780 = vadd.xlane.f32.xlu0 %v1779
          %v1781 = vpop.xlane.xlu0 %1780
          %v1782 = vadd.f32 %v1674, %v1676
          %1783 = vadd.xlane.f32.xlu0 %v1782
          %v1784 = vpop.xlane.xlu0 %1783
          %v1785 = vadd.f32 %v1678, %v1680
          %1786 = vadd.xlane.f32.xlu0 %v1785
          %v1787 = vpop.xlane.xlu0 %1786
          %v1788 = vadd.f32 %v1682, %v1684
          %1789 = vadd.xlane.f32.xlu0 %v1788
          %v1790 = vpop.xlane.xlu0 %1789
          %v1791 = vadd.f32 %v1686, %v1688
          %1792 = vadd.xlane.f32.xlu0 %v1791
          %v1793 = vpop.xlane.xlu0 %1792
          %v1794 = vadd.f32 %v1690, %v1692
          %1795 = vadd.xlane.f32.xlu0 %v1794
          %v1796 = vpop.xlane.xlu0 %1795
          %v1797 = vadd.f32 %v1694, %v1696
          %1798 = vadd.xlane.f32.xlu0 %v1797
          %v1799 = vpop.xlane.xlu0 %1798
          %v1800 = vadd.f32 %v1698, %v1700
          %1801 = vadd.xlane.f32.xlu0 %v1800
          %v1802 = vpop.xlane.xlu0 %1801
          %v1803 = vadd.f32 %v1702, %v1704
          %1804 = vadd.xlane.f32.xlu0 %v1803
          %v1805 = vpop.xlane.xlu0 %1804
          %v1806 = vadd.f32 %v1706, %v1708
          %1807 = vadd.xlane.f32.xlu0 %v1806
          %v1808 = vpop.xlane.xlu0 %1807
          %v1809 = vadd.f32 %v1710, %v1712
          %1810 = vadd.xlane.f32.xlu0 %v1809
          %v1811 = vpop.xlane.xlu0 %1810
          %v1812 = vadd.f32 %v1714, %v1716
          %1813 = vadd.xlane.f32.xlu0 %v1812
          %v1814 = vpop.xlane.xlu0 %1813
          %v1815 = vadd.f32 %v1718, %v1720
          %1816 = vadd.xlane.f32.xlu0 %v1815
          %v1817 = vpop.xlane.xlu0 %1816
          %v1818 = vadd.f32 %v1722, %v1724
          %1819 = vadd.xlane.f32.xlu0 %v1818
          %v1820 = vpop.xlane.xlu0 %1819
          %v1821 = vpack.c.bf16 %v1602, %v1598
          %v1822 = vpack.c.bf16 %v1604, %v1600
          %v1823 = vpack.c.bf16 %v1610, %v1606
          %v1824 = vpack.c.bf16 %v1612, %v1608
          %v1825 = vpack.c.bf16 %v1618, %v1614
          %v1826 = vpack.c.bf16 %v1620, %v1616
          %v1827 = vpack.c.bf16 %v1626, %v1622
          %v1828 = vpack.c.bf16 %v1628, %v1624
          %v1829 = vpack.c.bf16 %v1634, %v1630
          %v1830 = vpack.c.bf16 %v1636, %v1632
          %v1831 = vpack.c.bf16 %v1642, %v1638
          %v1832 = vpack.c.bf16 %v1644, %v1640
          %v1833 = vpack.c.bf16 %v1650, %v1646
          %v1834 = vpack.c.bf16 %v1652, %v1648
          %v1835 = vpack.c.bf16 %v1658, %v1654
          %v1836 = vpack.c.bf16 %v1660, %v1656
          %v1837 = vpack.c.bf16 %v1666, %v1662
          %v1838 = vpack.c.bf16 %v1668, %v1664
          %v1839 = vpack.c.bf16 %v1674, %v1670
          %v1840 = vpack.c.bf16 %v1676, %v1672
          %v1841 = vpack.c.bf16 %v1682, %v1678
          %v1842 = vpack.c.bf16 %v1684, %v1680
          %v1843 = vpack.c.bf16 %v1690, %v1686
          %v1844 = vpack.c.bf16 %v1692, %v1688
          %v1845 = vpack.c.bf16 %v1698, %v1694
          %v1846 = vpack.c.bf16 %v1700, %v1696
          %v1847 = vpack.c.bf16 %v1706, %v1702
          %v1848 = vpack.c.bf16 %v1708, %v1704
          %v1849 = vpack.c.bf16 %v1714, %v1710
          %v1850 = vpack.c.bf16 %v1716, %v1712
          %v1851 = vpack.c.bf16 %v1722, %v1718
          %v1852 = vpack.c.bf16 %v1724, %v1720
          %1853 = vmatprep.subr.bf16.mxu0 %v1822
          %1854 = vmatpush1.bf16.xpose.msra.mxu0 %v1821
          %1855 = vmatprep.subr.bf16.mxu0 %v1824
          %1856 = vmatpush1.bf16.xpose.msra.mxu0 %v1823
          %1857 = vmatprep.subr.bf16.mxu0 %v1826
          %1858 = vmatpush1.bf16.xpose.msra.mxu0 %v1825
          %1859 = vmatprep.subr.bf16.mxu0 %v1828
          %1860 = vmatpush1.bf16.xpose.msra.mxu0 %v1827
          %1861 = vmatprep.subr.bf16.mxu0 %v1830
          %1862 = vmatpush1.bf16.xpose.msra.mxu0 %v1829
          %1863 = vmatprep.subr.bf16.mxu0 %v1832
          %1864 = vmatpush1.bf16.xpose.msra.mxu0 %v1831
          %1865 = vmatprep.subr.bf16.mxu0 %v1834
          %1866 = vmatpush1.bf16.xpose.msra.mxu0 %v1833
          %1867 = vmatprep.subr.bf16.mxu0 %v1836
          %1868 = vmatpush1.bf16.xpose.msra.mxu0 %v1835
          %1869 = vmatprep.subr.bf16.mxu0 0
          %1870 = vmatpush1.bf16.xpose.msra.mxu0 0
          %1871 = vmatprep.subr.bf16.mxu0 0
          %1872 = vmatpush1.bf16.xpose.msra.mxu0 0
          %1873 = vmatprep.subr.bf16.mxu0 0
          %1874 = vmatpush1.bf16.xpose.msra.mxu0 0
          %1875 = vmatprep.subr.bf16.mxu0 0
          %1876 = vmatpush1.bf16.xpose.msra.mxu0 0
          %1877 = vmatprep.subr.bf16.mxu0 0
          %1878 = vmatpush1.bf16.xpose.msra.mxu0 0
          %1879 = vmatprep.subr.bf16.mxu0 0
          %1880 = vmatpush1.bf16.xpose.msra.mxu0 0
          %1881 = vmatprep.subr.bf16.mxu0 0
          %1882 = vmatpush1.bf16.xpose.msra.mxu0 0
          %1883 = vmatprep.subr.bf16.mxu0 0
          %1884 = vmatpush1.bf16.xpose.msra.mxu0 0
          %1885 = vmatprep.mubr.bf16.mxu0 %v1127
          %1886 = vmatmul.mubr.bf16.gmra.mrb[0].mxu0 %v1126
          %v1887 = vpop.f32.mrb[0].mxu0
          %v1888 = vadd.f32 0.0, %v1887
          %v1889 = vpop.f32.mrb[0].mxu0
          %v1890 = vpop.f32.mrb[0].mxu0
          %v1891 = vadd.f32 0.0, %v1890
          %v1892 = vpop.f32.mrb[0].mxu0
          %1893 = vdwg.mxu0
          %1894 = vmatprep.subr.bf16.mxu0 %v1838
          %1895 = vmatpush1.bf16.xpose.msra.mxu0 %v1837
          %1896 = vmatprep.subr.bf16.mxu0 %v1840
          %1897 = vmatpush1.bf16.xpose.msra.mxu0 %v1839
          %1898 = vmatprep.subr.bf16.mxu0 %v1842
          %1899 = vmatpush1.bf16.xpose.msra.mxu0 %v1841
          %1900 = vmatprep.subr.bf16.mxu0 %v1844
          %1901 = vmatpush1.bf16.xpose.msra.mxu0 %v1843
          %1902 = vmatprep.subr.bf16.mxu0 %v1846
          %1903 = vmatpush1.bf16.xpose.msra.mxu0 %v1845
          %1904 = vmatprep.subr.bf16.mxu0 %v1848
          %1905 = vmatpush1.bf16.xpose.msra.mxu0 %v1847
          %1906 = vmatprep.subr.bf16.mxu0 %v1850
          %1907 = vmatpush1.bf16.xpose.msra.mxu0 %v1849
          %1908 = vmatprep.subr.bf16.mxu0 %v1852
          %1909 = vmatpush1.bf16.xpose.msra.mxu0 %v1851
          %1910 = vmatprep.subr.bf16.mxu0 0
          %1911 = vmatpush1.bf16.xpose.msra.mxu0 0
          %1912 = vmatprep.subr.bf16.mxu0 0
          %1913 = vmatpush1.bf16.xpose.msra.mxu0 0
          %1914 = vmatprep.subr.bf16.mxu0 0
          %1915 = vmatpush1.bf16.xpose.msra.mxu0 0
          %1916 = vmatprep.subr.bf16.mxu0 0
          %1917 = vmatpush1.bf16.xpose.msra.mxu0 0
          %1918 = vmatprep.subr.bf16.mxu0 0
          %1919 = vmatpush1.bf16.xpose.msra.mxu0 0
          %1920 = vmatprep.subr.bf16.mxu0 0
          %1921 = vmatpush1.bf16.xpose.msra.mxu0 0
          %1922 = vmatprep.subr.bf16.mxu0 0
          %1923 = vmatpush1.bf16.xpose.msra.mxu0 0
          %1924 = vmatprep.subr.bf16.mxu0 0
          %1925 = vmatpush1.bf16.xpose.msra.mxu0 0
          %1926 = vmatprep.mubr.bf16.mxu0 %v1129
          %1927 = vmatmul.mubr.bf16.gmra.mrb[0].mxu0 %v1128
          %v1928 = vpop.f32.mrb[0].mxu0
          %v1929 = vadd.f32 0.0, %v1928
          %v1930 = vpop.f32.mrb[0].mxu0
          %v1931 = vpop.f32.mrb[0].mxu0
          %v1932 = vadd.f32 0.0, %v1931
          %v1933 = vpop.f32.mrb[0].mxu0
          %1934 = vdwg.mxu0
          %v1935 = vrcp.pop %v1727
          %v1936 = vrcp.pop %v1730
          %v1937 = vrcp.pop %v1733
          %v1938 = vrcp.pop %v1736
          %v1939 = vrcp.pop %v1739
          %v1940 = vrcp.pop %v1742
          %v1941 = vrcp.pop %v1745
          %v1942 = vrcp.pop %v1748
          %v1943 = vrcp.pop %v1751
          %v1944 = vrcp.pop %v1754
          %v1945 = vrcp.pop %v1757
          %v1946 = vrcp.pop %v1760
          %v1947 = vrcp.pop %v1763
          %v1948 = vrcp.pop %v1766
          %v1949 = vrcp.pop %v1769
          %v1950 = vrcp.pop %v1772
          %v1951 = vrcp.pop %v1775
          %v1952 = vrcp.pop %v1778
          %v1953 = vrcp.pop %v1781
          %v1954 = vrcp.pop %v1784
          %v1955 = vrcp.pop %v1787
          %v1956 = vrcp.pop %v1790
          %v1957 = vrcp.pop %v1793
          %v1958 = vrcp.pop %v1796
          %v1959 = vrcp.pop %v1799
          %v1960 = vrcp.pop %v1802
          %v1961 = vrcp.pop %v1805
          %v1962 = vrcp.pop %v1808
          %v1963 = vrcp.pop %v1811
          %v1964 = vrcp.pop %v1814
          %v1965 = vrcp.pop %v1817
          %v1966 = vrcp.pop %v1820
          %v1999 = vlaneseq
          %v2000 = vand.u32 %v1999, 127
          %v2001 = vlaneseq
          %v2002 = vshrl.u32 %v2001, 7
          %v2003 = vsub.s32 %v2000, %v2002
          %v2004 = vrot.slane %v1935, %v2003
          %v2005 = vadd.s32 %v2000, 4294967288
          %v2006 = vlaneseq
          %v2007 = vshrl.u32 %v2006, 7
          %v2008 = vsub.s32 %v2005, %v2007
          %v2009 = vrot.slane %v1936, %v2008
          %vm2010 = vcmask 130112
          %v2011 = vsel %vm2010, %v2009, %v2004
          %v2012 = vadd.s32 %v2000, 4294967280
          %v2013 = vlaneseq
          %v2014 = vshrl.u32 %v2013, 7
          %v2015 = vsub.s32 %v2012, %v2014
          %v2016 = vrot.slane %v1937, %v2015
          %vm2017 = vcmask 195712
          %v2018 = vsel %vm2017, %v2016, %v2011
          %v2019 = vadd.s32 %v2000, 4294967272
          %v2020 = vlaneseq
          %v2021 = vshrl.u32 %v2020, 7
          %v2022 = vsub.s32 %v2019, %v2021
          %v2023 = vrot.slane %v1938, %v2022
          %vm2024 = vcmask 261312
          %v2025 = vsel %vm2024, %v2023, %v2018
          %v2026 = vadd.s32 %v2000, 4294967264
          %v2027 = vlaneseq
          %v2028 = vshrl.u32 %v2027, 7
          %v2029 = vsub.s32 %v2026, %v2028
          %v2030 = vrot.slane %v1939, %v2029
          %vm2031 = vcmask 326912
          %v2032 = vsel %vm2031, %v2030, %v2025
          %v2033 = vadd.s32 %v2000, 4294967256
          %v2034 = vlaneseq
          %v2035 = vshrl.u32 %v2034, 7
          %v2036 = vsub.s32 %v2033, %v2035
          %v2037 = vrot.slane %v1940, %v2036
          %vm2038 = vcmask 392512
          %v2039 = vsel %vm2038, %v2037, %v2032
          %v2040 = vadd.s32 %v2000, 4294967248
          %v2041 = vlaneseq
          %v2042 = vshrl.u32 %v2041, 7
          %v2043 = vsub.s32 %v2040, %v2042
          %v2044 = vrot.slane %v1941, %v2043
          %vm2045 = vcmask 458112
          %v2046 = vsel %vm2045, %v2044, %v2039
          %v2047 = vadd.s32 %v2000, 4294967240
          %v2048 = vlaneseq
          %v2049 = vshrl.u32 %v2048, 7
          %v2050 = vsub.s32 %v2047, %v2049
          %v2051 = vrot.slane %v1942, %v2050
          %vm2052 = vcmask 523712
          %v2053 = vsel %vm2052, %v2051, %v2046
          %v2054 = vadd.s32 %v2000, 4294967232
          %v2055 = vlaneseq
          %v2056 = vshrl.u32 %v2055, 7
          %v2057 = vsub.s32 %v2054, %v2056
          %v2058 = vrot.slane %v1943, %v2057
          %vm2059 = vcmask 589312
          %v2060 = vsel %vm2059, %v2058, %v2053
          %v2061 = vadd.s32 %v2000, 4294967224
          %v2062 = vlaneseq
          %v2063 = vshrl.u32 %v2062, 7
          %v2064 = vsub.s32 %v2061, %v2063
          %v2065 = vrot.slane %v1944, %v2064
          %vm2066 = vcmask 654912
          %v2067 = vsel %vm2066, %v2065, %v2060
          %v2068 = vadd.s32 %v2000, 4294967216
          %v2069 = vlaneseq
          %v2070 = vshrl.u32 %v2069, 7
          %v2071 = vsub.s32 %v2068, %v2070
          %v2072 = vrot.slane %v1945, %v2071
          %vm2073 = vcmask 720512
          %v2074 = vsel %vm2073, %v2072, %v2067
          %v2075 = vadd.s32 %v2000, 4294967208
          %v2076 = vlaneseq
          %v2077 = vshrl.u32 %v2076, 7
          %v2078 = vsub.s32 %v2075, %v2077
          %v2079 = vrot.slane %v1946, %v2078
          %vm2080 = vcmask 786112
          %v2081 = vsel %vm2080, %v2079, %v2074
          %v2082 = vadd.s32 %v2000, 4294967200
          %v2083 = vlaneseq
          %v2084 = vshrl.u32 %v2083, 7
          %v2085 = vsub.s32 %v2082, %v2084
          %v2086 = vrot.slane %v1947, %v2085
          %vm2087 = vcmask 851712
          %v2088 = vsel %vm2087, %v2086, %v2081
          %v2089 = vadd.s32 %v2000, 4294967192
          %v2090 = vlaneseq
          %v2091 = vshrl.u32 %v2090, 7
          %v2092 = vsub.s32 %v2089, %v2091
          %v2093 = vrot.slane %v1948, %v2092
          %vm2094 = vcmask 917312
          %v2095 = vsel %vm2094, %v2093, %v2088
          %v2096 = vadd.s32 %v2000, 4294967184
          %v2097 = vlaneseq
          %v2098 = vshrl.u32 %v2097, 7
          %v2099 = vsub.s32 %v2096, %v2098
          %v2100 = vrot.slane %v1949, %v2099
          %vm2101 = vcmask 982912
          %v2102 = vsel %vm2101, %v2100, %v2095
          %v2103 = vadd.s32 %v2000, 4294967176
          %v2104 = vlaneseq
          %v2105 = vshrl.u32 %v2104, 7
          %v2106 = vsub.s32 %v2103, %v2105
          %v2107 = vrot.slane %v1950, %v2106
          %vm2108 = vcmask 1048512
          %v2109 = vsel %vm2108, %v2107, %v2102
          %v2110 = vlaneseq
          %v2111 = vshrl.u32 %v2110, 7
          %v2112 = vsub.s32 %v2000, %v2111
          %v2113 = vrot.slane %v1951, %v2112
          %v2114 = vlaneseq
          %v2115 = vshrl.u32 %v2114, 7
          %v2116 = vsub.s32 %v2005, %v2115
          %v2117 = vrot.slane %v1952, %v2116
          %v2118 = vsel %vm2010, %v2117, %v2113
          %v2119 = vlaneseq
          %v2120 = vshrl.u32 %v2119, 7
          %v2121 = vsub.s32 %v2012, %v2120
          %v2122 = vrot.slane %v1953, %v2121
          %v2123 = vsel %vm2017, %v2122, %v2118
          %v2124 = vlaneseq
          %v2125 = vshrl.u32 %v2124, 7
          %v2126 = vsub.s32 %v2019, %v2125
          %v2127 = vrot.slane %v1954, %v2126
          %v2128 = vsel %vm2024, %v2127, %v2123
          %v2129 = vlaneseq
          %v2130 = vshrl.u32 %v2129, 7
          %v2131 = vsub.s32 %v2026, %v2130
          %v2132 = vrot.slane %v1955, %v2131
          %v2133 = vsel %vm2031, %v2132, %v2128
          %v2134 = vlaneseq
          %v2135 = vshrl.u32 %v2134, 7
          %v2136 = vsub.s32 %v2033, %v2135
          %v2137 = vrot.slane %v1956, %v2136
          %v2138 = vsel %vm2038, %v2137, %v2133
          %v2139 = vlaneseq
          %v2140 = vshrl.u32 %v2139, 7
          %v2141 = vsub.s32 %v2040, %v2140
          %v2142 = vrot.slane %v1957, %v2141
          %v2143 = vsel %vm2045, %v2142, %v2138
          %v2144 = vlaneseq
          %v2145 = vshrl.u32 %v2144, 7
          %v2146 = vsub.s32 %v2047, %v2145
          %v2147 = vrot.slane %v1958, %v2146
          %v2148 = vsel %vm2052, %v2147, %v2143
          %v2149 = vlaneseq
          %v2150 = vshrl.u32 %v2149, 7
          %v2151 = vsub.s32 %v2054, %v2150
          %v2152 = vrot.slane %v1959, %v2151
          %v2153 = vsel %vm2059, %v2152, %v2148
          %v2154 = vlaneseq
          %v2155 = vshrl.u32 %v2154, 7
          %v2156 = vsub.s32 %v2061, %v2155
          %v2157 = vrot.slane %v1960, %v2156
          %v2158 = vsel %vm2066, %v2157, %v2153
          %v2159 = vlaneseq
          %v2160 = vshrl.u32 %v2159, 7
          %v2161 = vsub.s32 %v2068, %v2160
          %v2162 = vrot.slane %v1961, %v2161
          %v2163 = vsel %vm2073, %v2162, %v2158
          %v2164 = vlaneseq
          %v2165 = vshrl.u32 %v2164, 7
          %v2166 = vsub.s32 %v2075, %v2165
          %v2167 = vrot.slane %v1962, %v2166
          %v2168 = vsel %vm2080, %v2167, %v2163
          %v2169 = vlaneseq
          %v2170 = vshrl.u32 %v2169, 7
          %v2171 = vsub.s32 %v2082, %v2170
          %v2172 = vrot.slane %v1963, %v2171
          %v2173 = vsel %vm2087, %v2172, %v2168
          %v2174 = vlaneseq
          %v2175 = vshrl.u32 %v2174, 7
          %v2176 = vsub.s32 %v2089, %v2175
          %v2177 = vrot.slane %v1964, %v2176
          %v2178 = vsel %vm2094, %v2177, %v2173
          %v2179 = vlaneseq
          %v2180 = vshrl.u32 %v2179, 7
          %v2181 = vsub.s32 %v2096, %v2180
          %v2182 = vrot.slane %v1965, %v2181
          %v2183 = vsel %vm2101, %v2182, %v2178
          %v2184 = vlaneseq
          %v2185 = vshrl.u32 %v2184, 7
          %v2186 = vsub.s32 %v2103, %v2185
          %v2187 = vrot.slane %v1966, %v2186
          %v2188 = vsel %vm2108, %v2187, %v2183
          %vm2189 = vcmask 1042434
          %v2190 = vsel %vm2189, %v2109, %v2109
          %vm2191 = vcmask 1043459
          %v2192 = vsel %vm2191, %v2109, %v2190
          %vm2193 = vcmask 1044484
          %v2194 = vsel %vm2193, %v2109, %v2192
          %vm2195 = vcmask 1045509
          %v2196 = vsel %vm2195, %v2109, %v2194
          %vm2197 = vcmask 1046534
          %v2198 = vsel %vm2197, %v2109, %v2196
          %vm2199 = vcmask 1047559
          %v2200 = vsel %vm2199, %v2109, %v2198
          %v2201 = vsel %vm2189, %v2188, %v2188
          %v2202 = vsel %vm2191, %v2188, %v2201
          %v2203 = vsel %vm2193, %v2188, %v2202
          %v2204 = vsel %vm2195, %v2188, %v2203
          %v2205 = vsel %vm2197, %v2188, %v2204
          %v2206 = vsel %vm2199, %v2188, %v2205
          %v2209 = vmul.f32 %v1888, %v2200
          %v2210 = vmul.f32 %v1891, %v2200
          %v2211 = vmul.f32 %v1929, %v2206
          %v2212 = vmul.f32 %v1932, %v2206
          %s2213 = smul.u32 %s1107, 32
          %v2214 = vpack.c.bf16 %v2210, %v2209
          %v2215 = vpack.c.bf16 %v2212, %v2211
          %s2216 = sshra.s32 %s2213, 4
          %s2217 = sand.u32 %s2213, 15
          %s2218 = smul.addr %s2216, 8
          %s2219 = scalar_lea.vmem [#allocation6], %s2218
          %2220 = vst [vmem:[%s2219] sm:$0xff] %v2214
          %2221 = vst [vmem:[%s2219 + $0x8] sm:$0xff] %v2215
        $region76: #{tpu_custom_call.1} parent=55 // loop_footer
          %s1111 = sadd.s32 1, %s1107
        $region77: #{tpu_custom_call.1} parent=55 // loop_footer_branch
          %1106 = sbr.rel target = $region73
        $region78: #{tpu_custom_call.1} parent=55 // loop_exit
          _
        %v2222 = vld [vmem:[%s7] sm:$0xf]
        %v2223 = vld [vmem:[%s7 + $0x4] sm:$0xf]
        %v2224 = vld [vmem:[%s7 + $0x8] sm:$0xf]
        %v2225 = vld [vmem:[%s7 + $0xc] sm:$0xf]
        %v2226 = vld [vmem:[%s7 + $0x10] sm:$0xf]
        %v2227 = vld [vmem:[%s7 + $0x14] sm:$0xf]
        %v2228 = vld [vmem:[%s7 + $0x18] sm:$0xf]
        %v2229 = vld [vmem:[%s7 + $0x1c] sm:$0xf]
        %v2230 = vld [vmem:[#allocation6] sm:$0xff]
        %v2231 = vld [vmem:[#allocation6 + $0x8] sm:$0xff]
        %v2232 = vld [vmem:[#allocation6 + $0x10] sm:$0xff]
        %v2233 = vld [vmem:[#allocation6 + $0x18] sm:$0xff]
        %v2234 = vld [vmem:[%s8] sm:$0xff]
        %v2235 = vld [vmem:[%s8 + $0x8] sm:$0xff]
        %v2236 = vld [vmem:[%s8 + $0x10] sm:$0xff]
        %v2237 = vld [vmem:[%s8 + $0x18] sm:$0xff]
        %v2238 = vld [vmem:[%s8 + $0x20] sm:$0xff]
        %v2239 = vld [vmem:[%s8 + $0x28] sm:$0xff]
        %v2240 = vld [vmem:[%s8 + $0x30] sm:$0xff]
        %v2241 = vld [vmem:[%s8 + $0x38] sm:$0xff]
        %2243 = vset.pattern.permute.xlu0 0
        %2244 = vperm.xlu0 %2243, %v2234
        %v2245 = vpop.permute.xlu0 %2244
        %2248 = vset.pattern.permute.xlu0 0
        %2249 = vperm.xlu0 %2248, %v2235
        %v2250 = vpop.permute.xlu0 %2249
        %2253 = vset.pattern.permute.xlu0 0
        %2254 = vperm.xlu0 %2253, %v2236
        %v2255 = vpop.permute.xlu0 %2254
        %2258 = vset.pattern.permute.xlu0 0
        %2259 = vperm.xlu0 %2258, %v2237
        %v2260 = vpop.permute.xlu0 %2259
        %2263 = vset.pattern.permute.xlu0 0
        %2264 = vperm.xlu0 %2263, %v2238
        %v2265 = vpop.permute.xlu0 %2264
        %2268 = vset.pattern.permute.xlu0 0
        %2269 = vperm.xlu0 %2268, %v2239
        %v2270 = vpop.permute.xlu0 %2269
        %2273 = vset.pattern.permute.xlu0 0
        %2274 = vperm.xlu0 %2273, %v2240
        %v2275 = vpop.permute.xlu0 %2274
        %2278 = vset.pattern.permute.xlu0 0
        %2279 = vperm.xlu0 %2278, %v2241
        %v2280 = vpop.permute.xlu0 %2279
        %v2290 = vunpack.c.l.b16 %v2222
        %v2291 = vunpack.c.l.b16 %v2223
        %v2292 = vunpack.c.l.b16 %v2224
        %v2293 = vunpack.c.l.b16 %v2225
        %v2294 = vunpack.c.l.b16 %v2226
        %v2295 = vunpack.c.l.b16 %v2227
        %v2296 = vunpack.c.l.b16 %v2228
        %v2297 = vunpack.c.l.b16 %v2229
        %v2298 = vpack.c.b16 %v2291, %v2290
        %v2299 = vpack.c.b16 %v2293, %v2292
        %v2300 = vpack.c.b16 %v2295, %v2294
        %v2301 = vpack.c.b16 %v2297, %v2296
        %v2303 = vsel %vm1020, %v2298, 0
        %v2306 = vsel %vm1020, %v2299, 0
        %v2309 = vsel %vm1020, %v2300, 0
        %v2312 = vsel %vm1020, %v2301, 0
        %2314 = vmatprep.subr.bf16.mxu0 0
        %2315 = vmatpush1.bf16.msra.mxu0 %v2230
        %2316 = vmatprep.subr.bf16.mxu0 0
        %2317 = vmatpush1.bf16.msra.mxu0 %v2231
        %2318 = vmatprep.subr.bf16.mxu0 0
        %2319 = vmatpush1.bf16.msra.mxu0 %v2232
        %2320 = vmatprep.subr.bf16.mxu0 0
        %2321 = vmatpush1.bf16.msra.mxu0 %v2233
        %2322 = vmatprep.subr.bf16.mxu0 0
        %2323 = vmatpush1.bf16.msra.mxu0 0
        %2324 = vmatprep.subr.bf16.mxu0 0
        %2325 = vmatpush1.bf16.msra.mxu0 0
        %2326 = vmatprep.subr.bf16.mxu0 0
        %2327 = vmatpush1.bf16.msra.mxu0 0
        %2328 = vmatprep.subr.bf16.mxu0 0
        %2329 = vmatpush1.bf16.msra.mxu0 0
        %2330 = vmatprep.subr.bf16.mxu0 0
        %2331 = vmatpush1.bf16.msra.mxu0 0
        %2332 = vmatprep.subr.bf16.mxu0 0
        %2333 = vmatpush1.bf16.msra.mxu0 0
        %2334 = vmatprep.subr.bf16.mxu0 0
        %2335 = vmatpush1.bf16.msra.mxu0 0
        %2336 = vmatprep.subr.bf16.mxu0 0
        %2337 = vmatpush1.bf16.msra.mxu0 0
        %2338 = vmatprep.subr.bf16.mxu0 0
        %2339 = vmatpush1.bf16.msra.mxu0 0
        %2340 = vmatprep.subr.bf16.mxu0 0
        %2341 = vmatpush1.bf16.msra.mxu0 0
        %2342 = vmatprep.subr.bf16.mxu0 0
        %2343 = vmatpush1.bf16.msra.mxu0 0
        %2344 = vmatprep.subr.bf16.mxu0 0
        %2345 = vmatpush1.bf16.msra.mxu0 0
        %2346 = vmatprep.mubr.bf16.mxu0 0
        %2347 = vmatmul.mubr.bf16.gmra.mrb[0].mxu0 %v2303
        %v2348 = vpop.f32.mrb[0].mxu0
        %v2349 = vadd.f32 %v2245, %v2348
        %v2350 = vpop.f32.mrb[0].mxu0
        %v2351 = vpop.f32.mrb[0].mxu0
        %v2352 = vadd.f32 %v2250, %v2351
        %v2353 = vpop.f32.mrb[0].mxu0
        %2354 = vmatprep.mubr.bf16.mxu0 0
        %2355 = vmatmul.mubr.bf16.gmra.mrb[0].mxu0 %v2306
        %v2356 = vpop.f32.mrb[0].mxu0
        %v2357 = vadd.f32 %v2255, %v2356
        %v2358 = vpop.f32.mrb[0].mxu0
        %v2359 = vpop.f32.mrb[0].mxu0
        %v2360 = vadd.f32 %v2260, %v2359
        %v2361 = vpop.f32.mrb[0].mxu0
        %2362 = vmatprep.mubr.bf16.mxu0 0
        %2363 = vmatmul.mubr.bf16.gmra.mrb[0].mxu0 %v2309
        %v2364 = vpop.f32.mrb[0].mxu0
        %v2365 = vadd.f32 %v2265, %v2364
        %v2366 = vpop.f32.mrb[0].mxu0
        %v2367 = vpop.f32.mrb[0].mxu0
        %v2368 = vadd.f32 %v2270, %v2367
        %v2369 = vpop.f32.mrb[0].mxu0
        %2370 = vmatprep.mubr.bf16.mxu0 0
        %2371 = vmatmul.mubr.bf16.gmra.mrb[0].mxu0 %v2312
        %v2372 = vpop.f32.mrb[0].mxu0
        %v2373 = vadd.f32 %v2275, %v2372
        %v2374 = vpop.f32.mrb[0].mxu0
        %v2375 = vpop.f32.mrb[0].mxu0
        %v2376 = vadd.f32 %v2280, %v2375
        %v2377 = vpop.f32.mrb[0].mxu0
        %2378 = vdwg.mxu0
        %s2379 = smul.addr %s936, 8
        %s2380 = scalar_lea.vmem %s330, %s2379 [#allocation7]
        %v2381 = vld [vmem:[%s2380] sm:$0xff]
        %v2382 = vld [vmem:[%s2380 + $0x10] sm:$0xff]
        %v2383 = vld [vmem:[%s2380 + $0x20] sm:$0xff]
        %v2384 = vld [vmem:[%s2380 + $0x30] sm:$0xff]
        %v2385 = vld [vmem:[%s2380 + $0x40] sm:$0xff]
        %v2386 = vld [vmem:[%s2380 + $0x50] sm:$0xff]
        %v2387 = vld [vmem:[%s2380 + $0x60] sm:$0xff]
        %v2388 = vld [vmem:[%s2380 + $0x70] sm:$0xff]
        %v2389 = vadd.f32 %v2381, %v2349
        %v2390 = vadd.f32 %v2382, %v2352
        %v2391 = vadd.f32 %v2383, %v2357
        %v2392 = vadd.f32 %v2384, %v2360
        %v2393 = vadd.f32 %v2385, %v2365
        %v2394 = vadd.f32 %v2386, %v2368
        %v2395 = vadd.f32 %v2387, %v2373
        %v2396 = vadd.f32 %v2388, %v2376
        %2397 = vst [vmem:[%s364] sm:$0xff] %v2389
        %2398 = vst [vmem:[%s364 + $0x8] sm:$0xff] %v2390
        %2399 = vst [vmem:[%s364 + $0x10] sm:$0xff] %v2391
        %2400 = vst [vmem:[%s364 + $0x18] sm:$0xff] %v2392
        %2401 = vst [vmem:[%s364 + $0x20] sm:$0xff] %v2393
        %2402 = vst [vmem:[%s364 + $0x28] sm:$0xff] %v2394
        %2403 = vst [vmem:[%s364 + $0x30] sm:$0xff] %v2395
        %2404 = vst [vmem:[%s364 + $0x38] sm:$0xff] %v2396
        %s2405 = sand.u32 %s242, 1
        %s2406 = scalar_lea.sflag [#allocation9], %s2405
        %s2407 = sand.u32 %s242, 1
        %s2408 = smul.addr %s2407, 64
        %s2409 = scalar_lea.vmem [#allocation10], %s2408
        // Predicated region
        $region79: #{tpu_custom_call.1} parent=55 // pred_check
          %p2410 = pneg %p252
        $region80: #{tpu_custom_call.1} parent=55 // pred_check_branch
          %2412 = sbr.rel (%p2410) target = $region82
        $region81: #{tpu_custom_call.1} parent=55 // pred_region
          %s2414 = ssub.s32 1024, 1024
          %2415 = vsyncadd %s2406, %s2414
          %s2416 = smul.addr %s30, 16
          %s2417 = sadd.s32 %s31, %s2416
          %s2418 = smul.addr %s2417, 128
          %s2419 = scalar_lea.hbm %s9, %s2418
          %s2420 = sshll.u32 %s2409, 4
          %s2421 = int_to_ptr.vmem [resolvable:$true] %s2420
          %2426 = dma.vmem_to_hbm [thread:$0]  %s2421, 1024, %s2419, %s2406, 128, 256, 8
        $region82: #{tpu_custom_call.1} parent=55 // pred_fallthru
          _
      $region56: #{tpu_custom_call.1} parent=5 // pred_fallthru
        _
      %p2427 = scmp.le.s32.totalorder 2, %s21
      // Predicated region
      $region83: #{tpu_custom_call.1} parent=5 // pred_check
        %p2428 = pneg %p2427
      $region84: #{tpu_custom_call.1} parent=5 // pred_check_branch
        %2430 = sbr.rel (%p2428) target = $region86
      $region85: #{tpu_custom_call.1} parent=5 // pred_region
        %s2431 = ssub.s32 %s21, 2
        // Predicated region
        $region87: #{tpu_custom_call.1} parent=85 // pred_check
          %p2432 = pneg %p258
        $region88: #{tpu_custom_call.1} parent=85 // pred_check_branch
          %2434 = sbr.rel (%p2432) target = $region90
        $region89: #{tpu_custom_call.1} parent=85 // pred_region
          %s2435 = sand.u32 %s243, 1
          %s2436 = scalar_lea.sflag [#allocation9], %s2435
          %s2437 = sand.u32 %s243, 1
          %s2438 = smul.addr %s2437, 64
          %s2439 = scalar_lea.vmem [#allocation10], %s2438
          %2440 = dma.done %s2436, 1024
        $region90: #{tpu_custom_call.1} parent=85 // pred_fallthru
          _
      $region86: #{tpu_custom_call.1} parent=5 // pred_fallthru
        _
    $region6: #{tpu_custom_call.1} parent=1 // loop_footer
      %s25 = sadd.s32 1, %s21
    $region7: #{tpu_custom_call.1} parent=1 // loop_footer_branch
      %20 = sbr.rel target = $region3
    $region8: #{tpu_custom_call.1} parent=1 // loop_exit
      _
    %2441 = vsyncpa [#allocation8], 1
    %s2442 = scalar_lea.sflag [#allocation8], 1
    %2443 = vsyncpa %s2442, 1
    %2444 = vsyncpa [#allocation9], 1
    %s2445 = scalar_lea.sflag [#allocation9], 1
    %2446 = vsyncpa %s2445, 1

// kernel: tpu_custom_call.1
$region0: #{tpu_custom_call.1}
  #allocation0 [shape = 'u32[]', space=smem, size = 0x4, offset = 0x4, fixed_abs, tag = 'smem constant byte address 0x4 - core index']
  #allocation1 [shape = 'u32[144,128]{1,0:T(1,128)}', space=vmem, size = 0x12000, scoped, tag = 'internal scratch']
  #allocation2 [shape = 'bf16[4,16,256]{2,1,0:T(16,128)(2,1)}', space=vmem, size = 0x8000, scoped, tag = 'scratch operand']
  #allocation3 [shape = 'bf16[4,16,256]{2,1,0:T(16,128)(2,1)}', space=vmem, size = 0x8000, scoped, tag = 'scratch operand']
  #allocation4 [shape = 'bf16[64,256]{1,0:T(16,128)(2,1)}', space=vmem, size = 0x8000, scoped, tag = 'scratch operand']
  #allocation5 [shape = 'bf16[4,16,128]{2,1,0:T(16,128)(2,1)}', space=vmem, size = 0x4000, scoped, tag = 'scratch operand']
  #allocation6 [shape = 'bf16[64,128]{1,0:T(16,128)(2,1)}', space=vmem, size = 0x4000, scoped, tag = 'scratch operand']
  %s0 = inlined_call_operand.hbm [shape: f32[2,64,256], index: 0, kind: input, shape index: {}]
  %s1 = inlined_call_operand.vmem [shape: f32[64,1], index: 1, kind: input, shape index: {}]
  %s2 = inlined_call_operand.vmem [shape: f32[64,1], index: 2, kind: input, shape index: {}]
  %s3 = inlined_call_operand.vmem [shape: bf16[64,64], index: 3, kind: input, shape index: {}]
  %s4 = inlined_call_operand.vmem [shape: f32[64,1], index: 4, kind: input, shape index: {}]
  %s5 = inlined_call_operand.vmem [shape: bf16[128,64], index: 5, kind: input, shape index: {}]
  %s6 = inlined_call_operand.vmem [shape: f32[128,1], index: 6, kind: input, shape index: {}]
  %s7 = inlined_call_operand.vmem [shape: bf16[64,64], index: 7, kind: input, shape index: {}]
  %s8 = inlined_call_operand.vmem [shape: f32[64,1], index: 8, kind: input, shape index: {}]
  %s9 = inlined_call_operand.hbm [shape: f32[2,64,256], index: 9, kind: output, shape index: {}]
  %s10 = sld [smem:[#allocation0]]
  $region91: #{tpu_custom_call.1} parent=0
    _
  %s12 = ssub.s32 1, %s10
  %s13 = scalar_select 0, %s12, %s10
  $region1: #{tpu_custom_call.1} parent=0
    #allocation7 [shape = 'u8[131072]{0}', space=vmem, size = 0x20000, scoped, tag = 'input window, operand 0']
    #allocation8 [shape = 's32[2]{0}', space=sflag, size = 0x8, scoped, tag = 'scoped memory for tpu_custom_call.1']
    #allocation9 [shape = 's32[2]{0}', space=sflag, size = 0x8, scoped, tag = 'scoped memory for tpu_custom_call.1']
    #allocation10 [shape = 'u8[65536]{0}', space=vmem, size = 0x10000, scoped, tag = 'output window, operand 0']
    %14 = vsyncpa [#allocation8], 0
    %s15 = scalar_lea.sflag [#allocation8], 1
    %16 = vsyncpa %s15, 0
    %17 = vsyncpa [#allocation9], 0
    %s18 = scalar_lea.sflag [#allocation9], 1
    %19 = vsyncpa %s18, 0
    loop: start=0, step=1, limit=6
    $region2: #{tpu_custom_call.1} parent=1 // loop_pre_header
      _
    $region3: #{tpu_custom_call.1} parent=1 // loop_header
      %s21 = sphi 0, %s25
      %p22 = scmp.ge.s32.totalorder %s21, 6
      %s28 = sphi 0, %s40
      %s29 = sphi 0, %s36
      %s30 = sphi 0, %s28
      %s31 = sphi 0, %s29
      %s32 = sphi 0, %s30
      %s33 = sphi 0, %s31
      %s43 = sphi 0, %s45
      %s46 = sphi 0, %s43
      %s47 = sphi 0, %s46
      %s63 = sphi 0, %s47
      %s67 = sphi 0, %s67
      %s69 = sphi 0, %s67
      %s70 = sphi 0, %s69
      %s84 = sphi 0, %s70
      %s88 = sphi 0, %s88
      %s90 = sphi 0, %s88
      %s91 = sphi 0, %s90
      %s105 = sphi 0, %s91
      %s109 = sphi 0, %s109
      %s111 = sphi 0, %s109
      %s112 = sphi 0, %s111
      %s126 = sphi 0, %s112
      %s130 = sphi 0, %s130
      %s132 = sphi 0, %s130
      %s133 = sphi 0, %s132
      %s147 = sphi 0, %s133
      %s151 = sphi 0, %s151
      %s153 = sphi 0, %s151
      %s154 = sphi 0, %s153
      %s168 = sphi 0, %s154
      %s172 = sphi 0, %s172
      %s174 = sphi 0, %s172
      %s175 = sphi 0, %s174
      %s189 = sphi 0, %s175
      %s193 = sphi 0, %s193
      %s195 = sphi 0, %s193
      %s196 = sphi 0, %s195
      %s210 = sphi 0, %s196
      %s214 = sphi 0, %s214
      %s216 = sphi 0, %s214
      %s217 = sphi 0, %s216
      %s231 = sphi 0, %s217
      %s239 = sphi 0, %s241
      %s242 = sphi 0, %s239
      %s243 = sphi 0, %s242
      %s259 = sphi 0, %s243
    $region4: #{tpu_custom_call.1} parent=1 // loop_header_branch
      %24 = sbr.rel (%p22) target = $region8
    $region5: #{tpu_custom_call.1} parent=1 // loop_body
      %s26 = ssub.s32 %s21, 1
      %s27 = ssub.s32 %s21, 2
      %s34 = sadd.s32 1, %s29
      %p35 = scmp.ge.s32.totalorder %s34, 2
      %s36 = scalar_select %p35, 0, %s34
      %s37 = sadd.s32 1, %s28
      %s38 = scalar_select %p35, %s37, %s28
      %p39 = scmp.ge.s32.totalorder %s38, 2
      %s40 = scalar_select %p39, 0, %s38
      %s41 = ssub.s32 %s28, %s40
      %p42 = scmp.eq.s32.totalorder %s41, 0
      %s44 = sadd.s32 %s43, 1
      %s45 = scalar_select %p42, %s43, %s44
      %p48 = pneg %p42
      %p49 = scmp.eq.s32.totalorder %s21, 3
      %p50 = por %p48, %p49
      %p51 = scmp.ne.s32.totalorder %s43, %s46
      %p52 = scmp.eq.s32.totalorder %s21, 0
      %p53 = por %p51, %p52
      %p54 = scmp.ne.s32.totalorder %s43, %s46
      %p55 = scmp.eq.s32.totalorder %s26, 3
      %p56 = por %p54, %p55
      %p57 = scmp.ne.s32.totalorder %s46, %s47
      %p58 = scmp.eq.s32.totalorder %s26, 0
      %p59 = por %p57, %p58
      %p60 = scmp.ne.s32.totalorder %s46, %s47
      %p61 = scmp.eq.s32.totalorder %s27, 3
      %p62 = por %p60, %p61
      %p64 = scmp.ne.s32.totalorder %s47, %s63
      %p65 = scmp.eq.s32.totalorder %s27, 0
      %p66 = por %p64, %p65
      %s68 = sadd.s32 %s67, 1
      %p71 = scmp.eq.s32.totalorder %s21, 3
      %p72 = scmp.ne.s32.totalorder %s67, %s69
      %p73 = scmp.eq.s32.totalorder %s21, 0
      %p74 = por %p72, %p73
      %p75 = scmp.ne.s32.totalorder %s67, %s69
      %p76 = scmp.eq.s32.totalorder %s26, 3
      %p77 = por %p75, %p76
      %p78 = scmp.ne.s32.totalorder %s69, %s70
      %p79 = scmp.eq.s32.totalorder %s26, 0
      %p80 = por %p78, %p79
      %p81 = scmp.ne.s32.totalorder %s69, %s70
      %p82 = scmp.eq.s32.totalorder %s27, 3
      %p83 = por %p81, %p82
      %p85 = scmp.ne.s32.totalorder %s70, %s84
      %p86 = scmp.eq.s32.totalorder %s27, 0
      %p87 = por %p85, %p86
      %s89 = sadd.s32 %s88, 1
      %p92 = scmp.eq.s32.totalorder %s21, 3
      %p93 = scmp.ne.s32.totalorder %s88, %s90
      %p94 = scmp.eq.s32.totalorder %s21, 0
      %p95 = por %p93, %p94
      %p96 = scmp.ne.s32.totalorder %s88, %s90
      %p97 = scmp.eq.s32.totalorder %s26, 3
      %p98 = por %p96, %p97
      %p99 = scmp.ne.s32.totalorder %s90, %s91
      %p100 = scmp.eq.s32.totalorder %s26, 0
      %p101 = por %p99, %p100
      %p102 = scmp.ne.s32.totalorder %s90, %s91
      %p103 = scmp.eq.s32.totalorder %s27, 3
      %p104 = por %p102, %p103
      %p106 = scmp.ne.s32.totalorder %s91, %s105
      %p107 = scmp.eq.s32.totalorder %s27, 0
      %p108 = por %p106, %p107
      %s110 = sadd.s32 %s109, 1
      %p113 = scmp.eq.s32.totalorder %s21, 3
      %p114 = scmp.ne.s32.totalorder %s109, %s111
      %p115 = scmp.eq.s32.totalorder %s21, 0
      %p116 = por %p114, %p115
      %p117 = scmp.ne.s32.totalorder %s109, %s111
      %p118 = scmp.eq.s32.totalorder %s26, 3
      %p119 = por %p117, %p118
      %p120 = scmp.ne.s32.totalorder %s111, %s112
      %p121 = scmp.eq.s32.totalorder %s26, 0
      %p122 = por %p120, %p121
      %p123 = scmp.ne.s32.totalorder %s111, %s112
      %p124 = scmp.eq.s32.totalorder %s27, 3
      %p125 = por %p123, %p124
      %p127 = scmp.ne.s32.totalorder %s112, %s126
      %p128 = scmp.eq.s32.totalorder %s27, 0
      %p129 = por %p127, %p128
      %s131 = sadd.s32 %s130, 1
      %p134 = scmp.eq.s32.totalorder %s21, 3
      %p135 = scmp.ne.s32.totalorder %s130, %s132
      %p136 = scmp.eq.s32.totalorder %s21, 0
      %p137 = por %p135, %p136
      %p138 = scmp.ne.s32.totalorder %s130, %s132
      %p139 = scmp.eq.s32.totalorder %s26, 3
      %p140 = por %p138, %p139
      %p141 = scmp.ne.s32.totalorder %s132, %s133
      %p142 = scmp.eq.s32.totalorder %s26, 0
      %p143 = por %p141, %p142
      %p144 = scmp.ne.s32.totalorder %s132, %s133
      %p145 = scmp.eq.s32.totalorder %s27, 3
      %p146 = por %p144, %p145
      %p148 = scmp.ne.s32.totalorder %s133, %s147
      %p149 = scmp.eq.s32.totalorder %s27, 0
      %p150 = por %p148, %p149
      %s152 = sadd.s32 %s151, 1
      %p155 = scmp.eq.s32.totalorder %s21, 3
      %p156 = scmp.ne.s32.totalorder %s151, %s153
      %p157 = scmp.eq.s32.totalorder %s21, 0
      %p158 = por %p156, %p157
      %p159 = scmp.ne.s32.totalorder %s151, %s153
      %p160 = scmp.eq.s32.totalorder %s26, 3
      %p161 = por %p159, %p160
      %p162 = scmp.ne.s32.totalorder %s153, %s154
      %p163 = scmp.eq.s32.totalorder %s26, 0
      %p164 = por %p162, %p163
      %p165 = scmp.ne.s32.totalorder %s153, %s154
      %p166 = scmp.eq.s32.totalorder %s27, 3
      %p167 = por %p165, %p166
      %p169 = scmp.ne.s32.totalorder %s154, %s168
      %p170 = scmp.eq.s32.totalorder %s27, 0
      %p171 = por %p169, %p170
      %s173 = sadd.s32 %s172, 1
      %p176 = scmp.eq.s32.totalorder %s21, 3
      %p177 = scmp.ne.s32.totalorder %s172, %s174
      %p178 = scmp.eq.s32.totalorder %s21, 0
      %p179 = por %p177, %p178
      %p180 = scmp.ne.s32.totalorder %s172, %s174
      %p181 = scmp.eq.s32.totalorder %s26, 3
      %p182 = por %p180, %p181
      %p183 = scmp.ne.s32.totalorder %s174, %s175
      %p184 = scmp.eq.s32.totalorder %s26, 0
      %p185 = por %p183, %p184
      %p186 = scmp.ne.s32.totalorder %s174, %s175
      %p187 = scmp.eq.s32.totalorder %s27, 3
      %p188 = por %p186, %p187
      %p190 = scmp.ne.s32.totalorder %s175, %s189
      %p191 = scmp.eq.s32.totalorder %s27, 0
      %p192 = por %p190, %p191
      %s194 = sadd.s32 %s193, 1
      %p197 = scmp.eq.s32.totalorder %s21, 3
      %p198 = scmp.ne.s32.totalorder %s193, %s195
      %p199 = scmp.eq.s32.totalorder %s21, 0
      %p200 = por %p198, %p199
      %p201 = scmp.ne.s32.totalorder %s193, %s195
      %p202 = scmp.eq.s32.totalorder %s26, 3
      %p203 = por %p201, %p202
      %p204 = scmp.ne.s32.totalorder %s195, %s196
      %p205 = scmp.eq.s32.totalorder %s26, 0
      %p206 = por %p204, %p205
      %p207 = scmp.ne.s32.totalorder %s195, %s196
      %p208 = scmp.eq.s32.totalorder %s27, 3
      %p209 = por %p207, %p208
      %p211 = scmp.ne.s32.totalorder %s196, %s210
      %p212 = scmp.eq.s32.totalorder %s27, 0
      %p213 = por %p211, %p212
      %s215 = sadd.s32 %s214, 1
      %p218 = scmp.eq.s32.totalorder %s21, 3
      %p219 = scmp.ne.s32.totalorder %s214, %s216
      %p220 = scmp.eq.s32.totalorder %s21, 0
      %p221 = por %p219, %p220
      %p222 = scmp.ne.s32.totalorder %s214, %s216
      %p223 = scmp.eq.s32.totalorder %s26, 3
      %p224 = por %p222, %p223
      %p225 = scmp.ne.s32.totalorder %s216, %s217
      %p226 = scmp.eq.s32.totalorder %s26, 0
      %p227 = por %p225, %p226
      %p228 = scmp.ne.s32.totalorder %s216, %s217
      %p229 = scmp.eq.s32.totalorder %s27, 3
      %p230 = por %p228, %p229
      %p232 = scmp.ne.s32.totalorder %s217, %s231
      %p233 = scmp.eq.s32.totalorder %s27, 0
      %p234 = por %p232, %p233
      %s235 = ssub.s32 %s28, %s40
      %s236 = ssub.s32 %s29, %s36
      %s237 = sor.u32 %s235, %s236
      %p238 = scmp.eq.s32.totalorder %s237, 0
      %s240 = sadd.s32 %s239, 1
      %s241 = scalar_select %p238, %s239, %s240
      %p244 = pneg %p238
      %p245 = scmp.eq.s32.totalorder %s21, 3
      %p246 = por %p244, %p245
      %p247 = scmp.ne.s32.totalorder %s239, %s242
      %p248 = scmp.eq.s32.totalorder %s21, 0
      %p249 = por %p247, %p248
      %p250 = scmp.ne.s32.totalorder %s239, %s242
      %p251 = scmp.eq.s32.totalorder %s26, 3
      %p252 = por %p250, %p251
      %p253 = scmp.ne.s32.totalorder %s242, %s243
      %p254 = scmp.eq.s32.totalorder %s26, 0
      %p255 = por %p253, %p254
      %p256 = scmp.ne.s32.totalorder %s242, %s243
      %p257 = scmp.eq.s32.totalorder %s27, 3
      %p258 = por %p256, %p257
      %p260 = scmp.ne.s32.totalorder %s243, %s259
      %p261 = scmp.eq.s32.totalorder %s27, 0
      %p262 = por %p260, %p261
      %p263 = scmp.le.s32.totalorder 1, %s21
      %p264 = scmp.lt.s32.totalorder %s21, 5
      %p265 = pnand %p263, %p264
      %p266 = pneg %p265
      // Predicated region
      $region9: #{tpu_custom_call.1} parent=5 // pred_check
        _
      $region10: #{tpu_custom_call.1} parent=5 // pred_check_branch
        %268 = sbr.rel (%p265) target = $region12
      $region11: #{tpu_custom_call.1} parent=5 // pred_region
        %s269 = ssub.s32 %s21, 1
        // Predicated region
        $region13: #{tpu_custom_call.1} parent=11 // pred_check
          %p270 = pneg %p80
        $region14: #{tpu_custom_call.1} parent=11 // pred_check_branch
          %272 = sbr.rel (%p270) target = $region16
        $region15: #{tpu_custom_call.1} parent=11 // pred_region
          _
        $region16: #{tpu_custom_call.1} parent=11 // pred_fallthru
          _
        // Predicated region
        $region17: #{tpu_custom_call.1} parent=11 // pred_check
          %p273 = pneg %p101
        $region18: #{tpu_custom_call.1} parent=11 // pred_check_branch
          %275 = sbr.rel (%p273) target = $region20
        $region19: #{tpu_custom_call.1} parent=11 // pred_region
          _
        $region20: #{tpu_custom_call.1} parent=11 // pred_fallthru
          _
        // Predicated region
        $region21: #{tpu_custom_call.1} parent=11 // pred_check
          %p276 = pneg %p122
        $region22: #{tpu_custom_call.1} parent=11 // pred_check_branch
          %278 = sbr.rel (%p276) target = $region24
        $region23: #{tpu_custom_call.1} parent=11 // pred_region
          _
        $region24: #{tpu_custom_call.1} parent=11 // pred_fallthru
          _
        // Predicated region
        $region25: #{tpu_custom_call.1} parent=11 // pred_check
          %p279 = pneg %p143
        $region26: #{tpu_custom_call.1} parent=11 // pred_check_branch
          %281 = sbr.rel (%p279) target = $region28
        $region27: #{tpu_custom_call.1} parent=11 // pred_region
          _
        $region28: #{tpu_custom_call.1} parent=11 // pred_fallthru
          _
        // Predicated region
        $region29: #{tpu_custom_call.1} parent=11 // pred_check
          %p282 = pneg %p164
        $region30: #{tpu_custom_call.1} parent=11 // pred_check_branch
          %284 = sbr.rel (%p282) target = $region32
        $region31: #{tpu_custom_call.1} parent=11 // pred_region
          _
        $region32: #{tpu_custom_call.1} parent=11 // pred_fallthru
          _
        // Predicated region
        $region33: #{tpu_custom_call.1} parent=11 // pred_check
          %p285 = pneg %p185
        $region34: #{tpu_custom_call.1} parent=11 // pred_check_branch
          %287 = sbr.rel (%p285) target = $region36
        $region35: #{tpu_custom_call.1} parent=11 // pred_region
          _
        $region36: #{tpu_custom_call.1} parent=11 // pred_fallthru
          _
        // Predicated region
        $region37: #{tpu_custom_call.1} parent=11 // pred_check
          %p288 = pneg %p206
        $region38: #{tpu_custom_call.1} parent=11 // pred_check_branch
          %290 = sbr.rel (%p288) target = $region40
        $region39: #{tpu_custom_call.1} parent=11 // pred_region
          _
        $region40: #{tpu_custom_call.1} parent=11 // pred_fallthru
          _
        // Predicated region
        $region41: #{tpu_custom_call.1} parent=11 // pred_check
          %p291 = pneg %p227
        $region42: #{tpu_custom_call.1} parent=11 // pred_check_branch
          %293 = sbr.rel (%p291) target = $region44
        $region43: #{tpu_custom_call.1} parent=11 // pred_region
          _
        $region44: #{tpu_custom_call.1} parent=11 // pred_fallthru
          _
      $region12: #{tpu_custom_call.1} parent=5 // pred_fallthru
        _
      %p294 = scmp.lt.s32.totalorder %s21, 4
      // Predicated region
      $region45: #{tpu_custom_call.1} parent=5 // pred_check
        %p295 = pneg %p294
      $region46: #{tpu_custom_call.1} parent=5 // pred_check_branch
        %297 = sbr.rel (%p295) target = $region48
      $region47: #{tpu_custom_call.1} parent=5 // pred_region
        // Predicated region
        $region49: #{tpu_custom_call.1} parent=47 // pred_check
          %p298 = pneg %p53
        $region50: #{tpu_custom_call.1} parent=47 // pred_check_branch
          %300 = sbr.rel (%p298) target = $region52
        $region51: #{tpu_custom_call.1} parent=47 // pred_region
          %s301 = sand.u32 %s43, 1
          %s302 = scalar_lea.sflag [#allocation8], %s301
          %s303 = sand.u32 %s43, 1
          %s304 = smul.addr %s303, 128
          %s305 = scalar_lea.vmem [#allocation7], %s304
          %s307 = ssub.s32 2048, 2048
          %308 = vsyncadd %s302, %s307
          %s309 = smul.addr %s28, 16
          %s310 = smul.addr %s309, 128
          %s311 = scalar_lea.hbm %s0, %s310
          %s312 = sshll.u32 %s305, 4
          %s313 = int_to_ptr.vmem [resolvable:$true] %s312
          %318 = dma.hbm_to_vmem [thread:$0]  %s311, 2048, %s313, %s302, 256, 256, 16
        $region52: #{tpu_custom_call.1} parent=47 // pred_fallthru
          _
      $region48: #{tpu_custom_call.1} parent=5 // pred_fallthru
        _
      %p319 = scmp.le.s32.totalorder 1, %s21
      %p320 = scmp.lt.s32.totalorder %s21, 5
      %p321 = pnand %p319, %p320
      %p322 = pneg %p321
      // Predicated region
      $region53: #{tpu_custom_call.1} parent=5 // pred_check
        _
      $region54: #{tpu_custom_call.1} parent=5 // pred_check_branch
        %324 = sbr.rel (%p321) target = $region56
      $region55: #{tpu_custom_call.1} parent=5 // pred_region
        %s325 = ssub.s32 %s21, 1
        %s326 = sand.u32 %s46, 1
        %s327 = scalar_lea.sflag [#allocation8], %s326
        %s328 = sand.u32 %s46, 1
        %s329 = smul.addr %s328, 128
        %s330 = scalar_lea.vmem [#allocation7], %s329
        // Predicated region
        $region57: #{tpu_custom_call.1} parent=55 // pred_check
          %p331 = pneg %p59
        $region58: #{tpu_custom_call.1} parent=55 // pred_check_branch
          %333 = sbr.rel (%p331) target = $region60
        $region59: #{tpu_custom_call.1} parent=55 // pred_region
          %334 = dma.done %s327, 2048
        $region60: #{tpu_custom_call.1} parent=55 // pred_fallthru
          _
        %s335 = sand.u32 %s46, 1
        %s336 = scalar_lea.sflag [#allocation8], %s335
        %s337 = sand.u32 %s46, 1
        %s338 = smul.addr %s337, 128
        %s339 = scalar_lea.vmem [#allocation7], %s338
        %p340 = pneg %p59
        %p341 = pneg %p56
        %p342 = pneg %p80
        %p343 = pneg %p77
        %p344 = pneg %p101
        %p345 = pneg %p98
        %p346 = pneg %p122
        %p347 = pneg %p119
        %p348 = pneg %p143
        %p349 = pneg %p140
        %p350 = pneg %p164
        %p351 = pneg %p161
        %p352 = pneg %p185
        %p353 = pneg %p182
        %p354 = pneg %p206
        %p355 = pneg %p203
        %p356 = pneg %p227
        %p357 = pneg %p224
        %p358 = pneg %p255
        %p359 = pneg %p252
        %s360 = sand.u32 %s242, 1
        %s361 = scalar_lea.sflag [#allocation9], %s360
        %s362 = sand.u32 %s242, 1
        %s363 = smul.addr %s362, 64
        %s364 = scalar_lea.vmem [#allocation10], %s363
        %p366 = scmp.eq.s32.totalorder %s31, 0
        // Predicated region
        $region61: #{tpu_custom_call.1} parent=55 // pred_check
          %p367 = pneg %p366
        $region62: #{tpu_custom_call.1} parent=55 // pred_check_branch
          %369 = sbr.rel (%p367) target = $region64
        $region63: #{tpu_custom_call.1} parent=55 // pred_region
          %v370 = vld [vmem:[%s330] sm:$0xff]
          %v371 = vld [vmem:[%s330 + $0x8] sm:$0xff]
          %v372 = vld [vmem:[%s330 + $0x10] sm:$0xff]
          %v373 = vld [vmem:[%s330 + $0x18] sm:$0xff]
          %v374 = vld [vmem:[%s330 + $0x20] sm:$0xff]
          %v375 = vld [vmem:[%s330 + $0x28] sm:$0xff]
          %v376 = vld [vmem:[%s330 + $0x30] sm:$0xff]
          %v377 = vld [vmem:[%s330 + $0x38] sm:$0xff]
          %v378 = vld [vmem:[%s330 + $0x40] sm:$0xff]
          %v379 = vld [vmem:[%s330 + $0x48] sm:$0xff]
          %v380 = vld [vmem:[%s330 + $0x50] sm:$0xff]
          %v381 = vld [vmem:[%s330 + $0x58] sm:$0xff]
          %v382 = vld [vmem:[%s330 + $0x60] sm:$0xff]
          %v383 = vld [vmem:[%s330 + $0x68] sm:$0xff]
          %v384 = vld [vmem:[%s330 + $0x70] sm:$0xff]
          %v385 = vld [vmem:[%s330 + $0x78] sm:$0xff]
          %v386 = vadd.f32 %v370, %v371
          %v387 = vadd.f32 %v386, %v372
          %v388 = vadd.f32 %v387, %v373
          %v389 = vadd.f32 %v388, %v374
          %v390 = vadd.f32 %v389, %v375
          %v391 = vadd.f32 %v390, %v376
          %v392 = vadd.f32 %v391, %v377
          %v393 = vadd.f32 %v392, %v378
          %v394 = vadd.f32 %v393, %v379
          %v395 = vadd.f32 %v394, %v380
          %v396 = vadd.f32 %v395, %v381
          %v397 = vadd.f32 %v396, %v382
          %v398 = vadd.f32 %v397, %v383
          %v399 = vadd.f32 %v398, %v384
          %v400 = vadd.f32 %v399, %v385
          %401 = vadd.xlane.f32.xlu0 %v400
          %v402 = vpop.xlane.xlu0 %401
          %v403 = vrot.slane %v402, 4
          %v404 = vadd.f32 %v402, %v403
          %v405 = vrot.slane %v404, 2
          %v406 = vadd.f32 %v404, %v405
          %v407 = vrot.slane %v406, 1
          %v408 = vadd.f32 %v406, %v407
          %s409 = vtos %v408
          %s410 = smul.f32 %s409, 6.1035156e-05
          %v411 = vstv %s410
          %v412 = vsub.f32 %v370, %v411
          %v413 = vsub.f32 %v371, %v411
          %v414 = vsub.f32 %v372, %v411
          %v415 = vsub.f32 %v373, %v411
          %v416 = vsub.f32 %v374, %v411
          %v417 = vsub.f32 %v375, %v411
          %v418 = vsub.f32 %v376, %v411
          %v419 = vsub.f32 %v377, %v411
          %v420 = vsub.f32 %v378, %v411
          %v421 = vsub.f32 %v379, %v411
          %v422 = vsub.f32 %v380, %v411
          %v423 = vsub.f32 %v381, %v411
          %v424 = vsub.f32 %v382, %v411
          %v425 = vsub.f32 %v383, %v411
          %v426 = vsub.f32 %v384, %v411
          %v427 = vsub.f32 %v385, %v411
          %v428 = vmul.f32 %v412, %v412
          %v429 = vmul.f32 %v413, %v413
          %v430 = vmul.f32 %v414, %v414
          %v431 = vmul.f32 %v415, %v415
          %v432 = vmul.f32 %v416, %v416
          %v433 = vmul.f32 %v417, %v417
          %v434 = vmul.f32 %v418, %v418
          %v435 = vmul.f32 %v419, %v419
          %v436 = vmul.f32 %v420, %v420
          %v437 = vmul.f32 %v421, %v421
          %v438 = vmul.f32 %v422, %v422
          %v439 = vmul.f32 %v423, %v423
          %v440 = vmul.f32 %v424, %v424
          %v441 = vmul.f32 %v425, %v425
          %v442 = vmul.f32 %v426, %v426
          %v443 = vmul.f32 %v427, %v427
          %v444 = vadd.f32 %v428, %v429
          %v445 = vadd.f32 %v444, %v430
          %v446 = vadd.f32 %v445, %v431
          %v447 = vadd.f32 %v446, %v432
          %v448 = vadd.f32 %v447, %v433
          %v449 = vadd.f32 %v448, %v434
          %v450 = vadd.f32 %v449, %v435
          %v451 = vadd.f32 %v450, %v436
          %v452 = vadd.f32 %v451, %v437
          %v453 = vadd.f32 %v452, %v438
          %v454 = vadd.f32 %v453, %v439
          %v455 = vadd.f32 %v454, %v440
          %v456 = vadd.f32 %v455, %v441
          %v457 = vadd.f32 %v456, %v442
          %v458 = vadd.f32 %v457, %v443
          %459 = vadd.xlane.f32.xlu0 %v458
          %v460 = vpop.xlane.xlu0 %459
          %v461 = vrot.slane %v460, 4
          %v462 = vadd.f32 %v460, %v461
          %v463 = vrot.slane %v462, 2
          %v464 = vadd.f32 %v462, %v463
          %v465 = vrot.slane %v464, 1
          %v466 = vadd.f32 %v464, %v465
          %s467 = vtos %v466
          %s468 = smul.f32 %s467, 6.1035156e-05
          %s469 = sadd.f32 %s468, 1e-05
          %v470 = vstv %s469
          %v471 = vrsqrt.pop %v470
          %s472 = vtos %v471
          %v473 = vld [vmem:[%s1] sm:$0xff]
          %v474 = vld [vmem:[%s1 + $0x8] sm:$0xff]
          %v475 = vld [vmem:[%s1 + $0x10] sm:$0xff]
          %v476 = vld [vmem:[%s1 + $0x18] sm:$0xff]
          %v477 = vld [vmem:[%s1 + $0x20] sm:$0xff]
          %v478 = vld [vmem:[%s1 + $0x28] sm:$0xff]
          %v479 = vld [vmem:[%s1 + $0x30] sm:$0xff]
          %v480 = vld [vmem:[%s1 + $0x38] sm:$0xff]
          %v481 = vstv %s472
          %v482 = vmul.f32 %v473, %v481
          %v483 = vmul.f32 %v474, %v481
          %v484 = vmul.f32 %v475, %v481
          %v485 = vmul.f32 %v476, %v481
          %v486 = vmul.f32 %v477, %v481
          %v487 = vmul.f32 %v478, %v481
          %v488 = vmul.f32 %v479, %v481
          %v489 = vmul.f32 %v480, %v481
          %491 = vset.pattern.permute.xlu0 0
          %492 = vperm.xlu0 %491, %v482
          %v493 = vpop.permute.xlu0 %492
          %496 = vset.pattern.permute.xlu0 0
          %497 = vperm.xlu0 %496, %v483
          %v498 = vpop.permute.xlu0 %497
          %501 = vset.pattern.permute.xlu0 0
          %502 = vperm.xlu0 %501, %v484
          %v503 = vpop.permute.xlu0 %502
          %506 = vset.pattern.permute.xlu0 0
          %507 = vperm.xlu0 %506, %v485
          %v508 = vpop.permute.xlu0 %507
          %511 = vset.pattern.permute.xlu0 0
          %512 = vperm.xlu0 %511, %v486
          %v513 = vpop.permute.xlu0 %512
          %516 = vset.pattern.permute.xlu0 0
          %517 = vperm.xlu0 %516, %v487
          %v518 = vpop.permute.xlu0 %517
          %521 = vset.pattern.permute.xlu0 0
          %522 = vperm.xlu0 %521, %v488
          %v523 = vpop.permute.xlu0 %522
          %526 = vset.pattern.permute.xlu0 0
          %527 = vperm.xlu0 %526, %v489
          %v528 = vpop.permute.xlu0 %527
          %v530 = vmul.f32 %v412, %v493
          %v531 = vmul.f32 %v413, %v493
          %v532 = vmul.f32 %v414, %v498
          %v533 = vmul.f32 %v415, %v498
          %v534 = vmul.f32 %v416, %v503
          %v535 = vmul.f32 %v417, %v503
          %v536 = vmul.f32 %v418, %v508
          %v537 = vmul.f32 %v419, %v508
          %v538 = vmul.f32 %v420, %v513
          %v539 = vmul.f32 %v421, %v513
          %v540 = vmul.f32 %v422, %v518
          %v541 = vmul.f32 %v423, %v518
          %v542 = vmul.f32 %v424, %v523
          %v543 = vmul.f32 %v425, %v523
          %v544 = vmul.f32 %v426, %v528
          %v545 = vmul.f32 %v427, %v528
          %v546 = vld [vmem:[%s2] sm:$0xff]
          %v547 = vld [vmem:[%s2 + $0x8] sm:$0xff]
          %v548 = vld [vmem:[%s2 + $0x10] sm:$0xff]
          %v549 = vld [vmem:[%s2 + $0x18] sm:$0xff]
          %v550 = vld [vmem:[%s2 + $0x20] sm:$0xff]
          %v551 = vld [vmem:[%s2 + $0x28] sm:$0xff]
          %v552 = vld [vmem:[%s2 + $0x30] sm:$0xff]
          %v553 = vld [vmem:[%s2 + $0x38] sm:$0xff]
          %555 = vset.pattern.permute.xlu0 0
          %556 = vperm.xlu0 %555, %v546
          %v557 = vpop.permute.xlu0 %556
          %560 = vset.pattern.permute.xlu0 0
          %561 = vperm.xlu0 %560, %v547
          %v562 = vpop.permute.xlu0 %561
          %565 = vset.pattern.permute.xlu0 0
          %566 = vperm.xlu0 %565, %v548
          %v567 = vpop.permute.xlu0 %566
          %570 = vset.pattern.permute.xlu0 0
          %571 = vperm.xlu0 %570, %v549
          %v572 = vpop.permute.xlu0 %571
          %575 = vset.pattern.permute.xlu0 0
          %576 = vperm.xlu0 %575, %v550
          %v577 = vpop.permute.xlu0 %576
          %580 = vset.pattern.permute.xlu0 0
          %581 = vperm.xlu0 %580, %v551
          %v582 = vpop.permute.xlu0 %581
          %585 = vset.pattern.permute.xlu0 0
          %586 = vperm.xlu0 %585, %v552
          %v587 = vpop.permute.xlu0 %586
          %590 = vset.pattern.permute.xlu0 0
          %591 = vperm.xlu0 %590, %v553
          %v592 = vpop.permute.xlu0 %591
          %v594 = vadd.f32 %v530, %v557
          %v595 = vadd.f32 %v531, %v557
          %v596 = vadd.f32 %v532, %v562
          %v597 = vadd.f32 %v533, %v562
          %v598 = vadd.f32 %v534, %v567
          %v599 = vadd.f32 %v535, %v567
          %v600 = vadd.f32 %v536, %v572
          %v601 = vadd.f32 %v537, %v572
          %v602 = vadd.f32 %v538, %v577
          %v603 = vadd.f32 %v539, %v577
          %v604 = vadd.f32 %v540, %v582
          %v605 = vadd.f32 %v541, %v582
          %v606 = vadd.f32 %v542, %v587
          %v607 = vadd.f32 %v543, %v587
          %v608 = vadd.f32 %v544, %v592
          %v609 = vadd.f32 %v545, %v592
          %v610 = vpack.c.bf16 %v596, %v594
          %v611 = vpack.c.bf16 %v597, %v595
          %v612 = vpack.c.bf16 %v600, %v598
          %v613 = vpack.c.bf16 %v601, %v599
          %v614 = vpack.c.bf16 %v604, %v602
          %v615 = vpack.c.bf16 %v605, %v603
          %v616 = vpack.c.bf16 %v608, %v606
          %v617 = vpack.c.bf16 %v609, %v607
          %618 = vst [vmem:[#allocation4] sm:$0xff] %v610
          %619 = vst [vmem:[#allocation4 + $0x8] sm:$0xff] %v611
          %620 = vst [vmem:[#allocation4 + $0x10] sm:$0xff] %v612
          %621 = vst [vmem:[#allocation4 + $0x18] sm:$0xff] %v613
          %622 = vst [vmem:[#allocation4 + $0x20] sm:$0xff] %v614
          %623 = vst [vmem:[#allocation4 + $0x28] sm:$0xff] %v615
          %624 = vst [vmem:[#allocation4 + $0x30] sm:$0xff] %v616
          %625 = vst [vmem:[#allocation4 + $0x38] sm:$0xff] %v617
          loop: start=0, step=1, limit=2
          $region65: #{tpu_custom_call.1} parent=63 // loop_pre_header
            _
          $region66: #{tpu_custom_call.1} parent=63 // loop_header
            %s627 = sphi 0, %s631
            %p628 = scmp.ge.s32.totalorder %s627, 2
          $region67: #{tpu_custom_call.1} parent=63 // loop_header_branch
            %630 = sbr.rel (%p628) target = $region71
          $region68: #{tpu_custom_call.1} parent=63 // loop_body
            %s632 = smul.u32 %s627, 128
            %s633 = sshra.s32 %s632, 7
            %s634 = sand.u32 %s632, 127
            %s635 = smul.addr %s633, 8
            %s636 = scalar_lea.vmem [#allocation4], %s635
            %v637 = vld [vmem:[%s636] sm:$0xff]
            %v638 = vld [vmem:[%s636 + $0x10] sm:$0xff]
            %v639 = vld [vmem:[%s636 + $0x20] sm:$0xff]
            %v640 = vld [vmem:[%s636 + $0x30] sm:$0xff]
            %v641 = vld [vmem:[%s5] sm:$0xf]
            %v642 = vld [vmem:[%s5 + $0x4] sm:$0xf]
            %v643 = vld [vmem:[%s5 + $0x8] sm:$0xf]
            %v644 = vld [vmem:[%s5 + $0xc] sm:$0xf]
            %v645 = vld [vmem:[%s5 + $0x10] sm:$0xf]
            %v646 = vld [vmem:[%s5 + $0x14] sm:$0xf]
            %v647 = vld [vmem:[%s5 + $0x18] sm:$0xf]
            %v648 = vld [vmem:[%s5 + $0x1c] sm:$0xf]
            %v649 = vld [vmem:[%s5 + $0x20] sm:$0xf]
            %v650 = vld [vmem:[%s5 + $0x24] sm:$0xf]
            %v651 = vld [vmem:[%s5 + $0x28] sm:$0xf]
            %v652 = vld [vmem:[%s5 + $0x2c] sm:$0xf]
            %v653 = vld [vmem:[%s5 + $0x30] sm:$0xf]
            %v654 = vld [vmem:[%s5 + $0x34] sm:$0xf]
            %v655 = vld [vmem:[%s5 + $0x38] sm:$0xf]
            %v656 = vld [vmem:[%s5 + $0x3c] sm:$0xf]
            %v657 = vld [vmem:[%s6] sm:$0xff]
            %v658 = vld [vmem:[%s6 + $0x8] sm:$0xff]
            %v659 = vld [vmem:[%s6 + $0x10] sm:$0xff]
            %v660 = vld [vmem:[%s6 + $0x18] sm:$0xff]
            %v661 = vld [vmem:[%s6 + $0x20] sm:$0xff]
            %v662 = vld [vmem:[%s6 + $0x28] sm:$0xff]
            %v663 = vld [vmem:[%s6 + $0x30] sm:$0xff]
            %v664 = vld [vmem:[%s6 + $0x38] sm:$0xff]
            %v665 = vld [vmem:[%s6 + $0x40] sm:$0xff]
            %v666 = vld [vmem:[%s6 + $0x48] sm:$0xff]
            %v667 = vld [vmem:[%s6 + $0x50] sm:$0xff]
            %v668 = vld [vmem:[%s6 + $0x58] sm:$0xff]
            %v669 = vld [vmem:[%s6 + $0x60] sm:$0xff]
            %v670 = vld [vmem:[%s6 + $0x68] sm:$0xff]
            %v671 = vld [vmem:[%s6 + $0x70] sm:$0xff]
            %v672 = vld [vmem:[%s6 + $0x78] sm:$0xff]
            %674 = vset.pattern.permute.xlu0 0
            %675 = vperm.xlu0 %674, %v657
            %v676 = vpop.permute.xlu0 %675
            %679 = vset.pattern.permute.xlu0 0
            %680 = vperm.xlu0 %679, %v658
            %v681 = vpop.permute.xlu0 %680
            %684 = vset.pattern.permute.xlu0 0
            %685 = vperm.xlu0 %684, %v659
            %v686 = vpop.permute.xlu0 %685
            %689 = vset.pattern.permute.xlu0 0
            %690 = vperm.xlu0 %689, %v660
            %v691 = vpop.permute.xlu0 %690
            %694 = vset.pattern.permute.xlu0 0
            %695 = vperm.xlu0 %694, %v661
            %v696 = vpop.permute.xlu0 %695
            %699 = vset.pattern.permute.xlu0 0
            %700 = vperm.xlu0 %699, %v662
            %v701 = vpop.permute.xlu0 %700
            %704 = vset.pattern.permute.xlu0 0
            %705 = vperm.xlu0 %704, %v663
            %v706 = vpop.permute.xlu0 %705
            %709 = vset.pattern.permute.xlu0 0
            %710 = vperm.xlu0 %709, %v664
            %v711 = vpop.permute.xlu0 %710
            %714 = vset.pattern.permute.xlu0 0
            %715 = vperm.xlu0 %714, %v665
            %v716 = vpop.permute.xlu0 %715
            %719 = vset.pattern.permute.xlu0 0
            %720 = vperm.xlu0 %719, %v666
            %v721 = vpop.permute.xlu0 %720
            %724 = vset.pattern.permute.xlu0 0
            %725 = vperm.xlu0 %724, %v667
            %v726 = vpop.permute.xlu0 %725
            %729 = vset.pattern.permute.xlu0 0
            %730 = vperm.xlu0 %729, %v668
            %v731 = vpop.permute.xlu0 %730
            %734 = vset.pattern.permute.xlu0 0
            %735 = vperm.xlu0 %734, %v669
            %v736 = vpop.permute.xlu0 %735
            %739 = vset.pattern.permute.xlu0 0
            %740 = vperm.xlu0 %739, %v670
            %v741 = vpop.permute.xlu0 %740
            %744 = vset.pattern.permute.xlu0 0
            %745 = vperm.xlu0 %744, %v671
            %v746 = vpop.permute.xlu0 %745
            %749 = vset.pattern.permute.xlu0 0
            %750 = vperm.xlu0 %749, %v672
            %v751 = vpop.permute.xlu0 %750
            %v769 = vunpack.c.l.b16 %v641
            %v770 = vunpack.c.l.b16 %v642
            %v771 = vunpack.c.l.b16 %v643
            %v772 = vunpack.c.l.b16 %v644
            %v773 = vunpack.c.l.b16 %v645
            %v774 = vunpack.c.l.b16 %v646
            %v775 = vunpack.c.l.b16 %v647
            %v776 = vunpack.c.l.b16 %v648
            %v777 = vunpack.c.l.b16 %v649
            %v778 = vunpack.c.l.b16 %v650
            %v779 = vunpack.c.l.b16 %v651
            %v780 = vunpack.c.l.b16 %v652
            %v781 = vunpack.c.l.b16 %v653
            %v782 = vunpack.c.l.b16 %v654
            %v783 = vunpack.c.l.b16 %v655
            %v784 = vunpack.c.l.b16 %v656
            %v785 = vpack.c.b16 %v770, %v769
            %v786 = vpack.c.b16 %v772, %v771
            %v787 = vpack.c.b16 %v774, %v773
            %v788 = vpack.c.b16 %v776, %v775
            %v789 = vpack.c.b16 %v778, %v777
            %v790 = vpack.c.b16 %v780, %v779
            %v791 = vpack.c.b16 %v782, %v781
            %v792 = vpack.c.b16 %v784, %v783
            %vm793 = vcmask 523264
            %v795 = vsel %vm793, %v785, 0
            %v798 = vsel %vm793, %v786, 0
            %v801 = vsel %vm793, %v787, 0
            %v804 = vsel %vm793, %v788, 0
            %v807 = vsel %vm793, %v789, 0
            %v810 = vsel %vm793, %v790, 0
            %v813 = vsel %vm793, %v791, 0
            %v816 = vsel %vm793, %v792, 0
            %818 = vmatprep.subr.bf16.mxu0 0
            %819 = vmatpush1.bf16.msra.mxu0 %v637
            %820 = vmatprep.subr.bf16.mxu0 0
            %821 = vmatpush1.bf16.msra.mxu0 %v638
            %822 = vmatprep.subr.bf16.mxu0 0
            %823 = vmatpush1.bf16.msra.mxu0 %v639
            %824 = vmatprep.subr.bf16.mxu0 0
            %825 = vmatpush1.bf16.msra.mxu0 %v640
            %826 = vmatprep.subr.bf16.mxu0 0
            %827 = vmatpush1.bf16.msra.mxu0 0
            %828 = vmatprep.subr.bf16.mxu0 0
            %829 = vmatpush1.bf16.msra.mxu0 0
            %830 = vmatprep.subr.bf16.mxu0 0
            %831 = vmatpush1.bf16.msra.mxu0 0
            %832 = vmatprep.subr.bf16.mxu0 0
            %833 = vmatpush1.bf16.msra.mxu0 0
            %834 = vmatprep.subr.bf16.mxu0 0
            %835 = vmatpush1.bf16.msra.mxu0 0
            %836 = vmatprep.subr.bf16.mxu0 0
            %837 = vmatpush1.bf16.msra.mxu0 0
            %838 = vmatprep.subr.bf16.mxu0 0
            %839 = vmatpush1.bf16.msra.mxu0 0
            %840 = vmatprep.subr.bf16.mxu0 0
            %841 = vmatpush1.bf16.msra.mxu0 0
            %842 = vmatprep.subr.bf16.mxu0 0
            %843 = vmatpush1.bf16.msra.mxu0 0
            %844 = vmatprep.subr.bf16.mxu0 0
            %845 = vmatpush1.bf16.msra.mxu0 0
            %846 = vmatprep.subr.bf16.mxu0 0
            %847 = vmatpush1.bf16.msra.mxu0 0
            %848 = vmatprep.subr.bf16.mxu0 0
            %849 = vmatpush1.bf16.msra.mxu0 0
            %850 = vmatprep.mubr.bf16.mxu0 0
            %851 = vmatmul.mubr.bf16.gmra.mrb[0].mxu0 %v795
            %v852 = vpop.f32.mrb[0].mxu0
            %v853 = vadd.f32 %v676, %v852
            %v854 = vpop.f32.mrb[0].mxu0
            %v855 = vpop.f32.mrb[0].mxu0
            %v856 = vadd.f32 %v681, %v855
            %v857 = vpop.f32.mrb[0].mxu0
            %858 = vmatprep.mubr.bf16.mxu0 0
            %859 = vmatmul.mubr.bf16.gmra.mrb[0].mxu0 %v798
            %v860 = vpop.f32.mrb[0].mxu0
            %v861 = vadd.f32 %v686, %v860
            %v862 = vpop.f32.mrb[0].mxu0
            %v863 = vpop.f32.mrb[0].mxu0
            %v864 = vadd.f32 %v691, %v863
            %v865 = vpop.f32.mrb[0].mxu0
            %866 = vmatprep.mubr.bf16.mxu0 0
            %867 = vmatmul.mubr.bf16.gmra.mrb[0].mxu0 %v801
            %v868 = vpop.f32.mrb[0].mxu0
            %v869 = vadd.f32 %v696, %v868
            %v870 = vpop.f32.mrb[0].mxu0
            %v871 = vpop.f32.mrb[0].mxu0
            %v872 = vadd.f32 %v701, %v871
            %v873 = vpop.f32.mrb[0].mxu0
            %874 = vmatprep.mubr.bf16.mxu0 0
            %875 = vmatmul.mubr.bf16.gmra.mrb[0].mxu0 %v804
            %v876 = vpop.f32.mrb[0].mxu0
            %v877 = vadd.f32 %v706, %v876
            %v878 = vpop.f32.mrb[0].mxu0
            %v879 = vpop.f32.mrb[0].mxu0
            %v880 = vadd.f32 %v711, %v879
            %v881 = vpop.f32.mrb[0].mxu0
            %882 = vmatprep.mubr.bf16.mxu0 0
            %883 = vmatmul.mubr.bf16.gmra.mrb[0].mxu0 %v807
            %v884 = vpop.f32.mrb[0].mxu0
            %v885 = vadd.f32 %v716, %v884
            %v886 = vpop.f32.mrb[0].mxu0
            %v887 = vpop.f32.mrb[0].mxu0
            %v888 = vadd.f32 %v721, %v887
            %v889 = vpop.f32.mrb[0].mxu0
            %890 = vmatprep.mubr.bf16.mxu0 0
            %891 = vmatmul.mubr.bf16.gmra.mrb[0].mxu0 %v810
            %v892 = vpop.f32.mrb[0].mxu0
            %v893 = vadd.f32 %v726, %v892
            %v894 = vpop.f32.mrb[0].mxu0
            %v895 = vpop.f32.mrb[0].mxu0
            %v896 = vadd.f32 %v731, %v895
            %v897 = vpop.f32.mrb[0].mxu0
            %898 = vmatprep.mubr.bf16.mxu0 0
            %899 = vmatmul.mubr.bf16.gmra.mrb[0].mxu0 %v813
            %v900 = vpop.f32.mrb[0].mxu0
            %v901 = vadd.f32 %v736, %v900
            %v902 = vpop.f32.mrb[0].mxu0
            %v903 = vpop.f32.mrb[0].mxu0
            %v904 = vadd.f32 %v741, %v903
            %v905 = vpop.f32.mrb[0].mxu0
            %906 = vmatprep.mubr.bf16.mxu0 0
            %907 = vmatmul.mubr.bf16.gmra.mrb[0].mxu0 %v816
            %v908 = vpop.f32.mrb[0].mxu0
            %v909 = vadd.f32 %v746, %v908
            %v910 = vpop.f32.mrb[0].mxu0
            %v911 = vpop.f32.mrb[0].mxu0
            %v912 = vadd.f32 %v751, %v911
            %v913 = vpop.f32.mrb[0].mxu0
            %914 = vdwg.mxu0
            %v915 = vpack.c.bf16 %v856, %v853
            %v916 = vpack.c.bf16 %v864, %v861
            %v917 = vpack.c.bf16 %v872, %v869
            %v918 = vpack.c.bf16 %v880, %v877
            %s919 = smul.addr %s633, 8
            %s920 = scalar_lea.vmem [#allocation2], %s919
            %921 = vst [vmem:[%s920] sm:$0xff] %v915
            %922 = vst [vmem:[%s920 + $0x10] sm:$0xff] %v916
            %923 = vst [vmem:[%s920 + $0x20] sm:$0xff] %v917
            %924 = vst [vmem:[%s920 + $0x30] sm:$0xff] %v918
            %v925 = vpack.c.bf16 %v888, %v885
            %v926 = vpack.c.bf16 %v896, %v893
            %v927 = vpack.c.bf16 %v904, %v901
            %v928 = vpack.c.bf16 %v912, %v909
            %s929 = smul.addr %s633, 8
            %s930 = scalar_lea.vmem [#allocation3], %s929
            %931 = vst [vmem:[%s930] sm:$0xff] %v925
            %932 = vst [vmem:[%s930 + $0x10] sm:$0xff] %v926
            %933 = vst [vmem:[%s930 + $0x20] sm:$0xff] %v927
            %934 = vst [vmem:[%s930 + $0x30] sm:$0xff] %v928
          $region69: #{tpu_custom_call.1} parent=63 // loop_footer
            %s631 = sadd.s32 1, %s627
          $region70: #{tpu_custom_call.1} parent=63 // loop_footer_branch
            %626 = sbr.rel target = $region66
          $region71: #{tpu_custom_call.1} parent=63 // loop_exit
            _
        $region64: #{tpu_custom_call.1} parent=55 // pred_fallthru
          _
        %s935 = smul.u32 %s31, 128
        %s936 = sshra.s32 %s935, 7
        %s937 = sand.u32 %s935, 127
        %s938 = smul.addr %s936, 8
        %s939 = scalar_lea.vmem [#allocation4], %s938
        %v940 = vld [vmem:[%s939] sm:$0xff]
        %v941 = vld [vmem:[%s939 + $0x10] sm:$0xff]
        %v942 = vld [vmem:[%s939 + $0x20] sm:$0xff]
        %v943 = vld [vmem:[%s939 + $0x30] sm:$0xff]
        %v944 = vld [vmem:[%s3] sm:$0xf]
        %v945 = vld [vmem:[%s3 + $0x4] sm:$0xf]
        %v946 = vld [vmem:[%s3 + $0x8] sm:$0xf]
        %v947 = vld [vmem:[%s3 + $0xc] sm:$0xf]
        %v948 = vld [vmem:[%s3 + $0x10] sm:$0xf]
        %v949 = vld [vmem:[%s3 + $0x14] sm:$0xf]
        %v950 = vld [vmem:[%s3 + $0x18] sm:$0xf]
        %v951 = vld [vmem:[%s3 + $0x1c] sm:$0xf]
        %v952 = vld [vmem:[%s4] sm:$0xff]
        %v953 = vld [vmem:[%s4 + $0x8] sm:$0xff]
        %v954 = vld [vmem:[%s4 + $0x10] sm:$0xff]
        %v955 = vld [vmem:[%s4 + $0x18] sm:$0xff]
        %v956 = vld [vmem:[%s4 + $0x20] sm:$0xff]
        %v957 = vld [vmem:[%s4 + $0x28] sm:$0xff]
        %v958 = vld [vmem:[%s4 + $0x30] sm:$0xff]
        %v959 = vld [vmem:[%s4 + $0x38] sm:$0xff]
        %961 = vset.pattern.permute.xlu0 0
        %962 = vperm.xlu0 %961, %v952
        %v963 = vpop.permute.xlu0 %962
        %966 = vset.pattern.permute.xlu0 0
        %967 = vperm.xlu0 %966, %v953
        %v968 = vpop.permute.xlu0 %967
        %971 = vset.pattern.permute.xlu0 0
        %972 = vperm.xlu0 %971, %v954
        %v973 = vpop.permute.xlu0 %972
        %976 = vset.pattern.permute.xlu0 0
        %977 = vperm.xlu0 %976, %v955
        %v978 = vpop.permute.xlu0 %977
        %981 = vset.pattern.permute.xlu0 0
        %982 = vperm.xlu0 %981, %v956
        %v983 = vpop.permute.xlu0 %982
        %986 = vset.pattern.permute.xlu0 0
        %987 = vperm.xlu0 %986, %v957
        %v988 = vpop.permute.xlu0 %987
        %991 = vset.pattern.permute.xlu0 0
        %992 = vperm.xlu0 %991, %v958
        %v993 = vpop.permute.xlu0 %992
        %996 = vset.pattern.permute.xlu0 0
        %997 = vperm.xlu0 %996, %v959
        %v998 = vpop.permute.xlu0 %997
        %v1008 = vunpack.c.l.b16 %v944
        %v1009 = vunpack.c.l.b16 %v945
        %v1010 = vunpack.c.l.b16 %v946
        %v1011 = vunpack.c.l.b16 %v947
        %v1012 = vunpack.c.l.b16 %v948
        %v1013 = vunpack.c.l.b16 %v949
        %v1014 = vunpack.c.l.b16 %v950
        %v1015 = vunpack.c.l.b16 %v951
        %v1016 = vpack.c.b16 %v1009, %v1008
        %v1017 = vpack.c.b16 %v1011, %v1010
        %v1018 = vpack.c.b16 %v1013, %v1012
        %v1019 = vpack.c.b16 %v1015, %v1014
        %vm1020 = vcmask 523264
        %v1022 = vsel %vm1020, %v1016, 0
        %v1025 = vsel %vm1020, %v1017, 0
        %v1028 = vsel %vm1020, %v1018, 0
        %v1031 = vsel %vm1020, %v1019, 0
        %1033 = vmatprep.subr.bf16.mxu0 0
        %1034 = vmatpush1.bf16.msra.mxu0 %v940
        %1035 = vmatprep.subr.bf16.mxu0 0
        %1036 = vmatpush1.bf16.msra.mxu0 %v941
        %1037 = vmatprep.subr.bf16.mxu0 0
        %1038 = vmatpush1.bf16.msra.mxu0 %v942
        %1039 = vmatprep.subr.bf16.mxu0 0
        %1040 = vmatpush1.bf16.msra.mxu0 %v943
        %1041 = vmatprep.subr.bf16.mxu0 0
        %1042 = vmatpush1.bf16.msra.mxu0 0
        %1043 = vmatprep.subr.bf16.mxu0 0
        %1044 = vmatpush1.bf16.msra.mxu0 0
        %1045 = vmatprep.subr.bf16.mxu0 0
        %1046 = vmatpush1.bf16.msra.mxu0 0
        %1047 = vmatprep.subr.bf16.mxu0 0
        %1048 = vmatpush1.bf16.msra.mxu0 0
        %1049 = vmatprep.subr.bf16.mxu0 0
        %1050 = vmatpush1.bf16.msra.mxu0 0
        %1051 = vmatprep.subr.bf16.mxu0 0
        %1052 = vmatpush1.bf16.msra.mxu0 0
        %1053 = vmatprep.subr.bf16.mxu0 0
        %1054 = vmatpush1.bf16.msra.mxu0 0
        %1055 = vmatprep.subr.bf16.mxu0 0
        %1056 = vmatpush1.bf16.msra.mxu0 0
        %1057 = vmatprep.subr.bf16.mxu0 0
        %1058 = vmatpush1.bf16.msra.mxu0 0
        %1059 = vmatprep.subr.bf16.mxu0 0
        %1060 = vmatpush1.bf16.msra.mxu0 0
        %1061 = vmatprep.subr.bf16.mxu0 0
        %1062 = vmatpush1.bf16.msra.mxu0 0
        %1063 = vmatprep.subr.bf16.mxu0 0
        %1064 = vmatpush1.bf16.msra.mxu0 0
        %1065 = vmatprep.mubr.bf16.mxu0 0
        %1066 = vmatmul.mubr.bf16.gmra.mrb[0].mxu0 %v1022
        %v1067 = vpop.f32.mrb[0].mxu0
        %v1068 = vadd.f32 %v963, %v1067
        %v1069 = vpop.f32.mrb[0].mxu0
        %v1070 = vpop.f32.mrb[0].mxu0
        %v1071 = vadd.f32 %v968, %v1070
        %v1072 = vpop.f32.mrb[0].mxu0
        %1073 = vmatprep.mubr.bf16.mxu0 0
        %1074 = vmatmul.mubr.bf16.gmra.mrb[0].mxu0 %v1025
        %v1075 = vpop.f32.mrb[0].mxu0
        %v1076 = vadd.f32 %v973, %v1075
        %v1077 = vpop.f32.mrb[0].mxu0
        %v1078 = vpop.f32.mrb[0].mxu0
        %v1079 = vadd.f32 %v978, %v1078
        %v1080 = vpop.f32.mrb[0].mxu0
        %1081 = vmatprep.mubr.bf16.mxu0 0
        %1082 = vmatmul.mubr.bf16.gmra.mrb[0].mxu0 %v1028
        %v1083 = vpop.f32.mrb[0].mxu0
        %v1084 = vadd.f32 %v983, %v1083
        %v1085 = vpop.f32.mrb[0].mxu0
        %v1086 = vpop.f32.mrb[0].mxu0
        %v1087 = vadd.f32 %v988, %v1086
        %v1088 = vpop.f32.mrb[0].mxu0
        %1089 = vmatprep.mubr.bf16.mxu0 0
        %1090 = vmatmul.mubr.bf16.gmra.mrb[0].mxu0 %v1031
        %v1091 = vpop.f32.mrb[0].mxu0
        %v1092 = vadd.f32 %v993, %v1091
        %v1093 = vpop.f32.mrb[0].mxu0
        %v1094 = vpop.f32.mrb[0].mxu0
        %v1095 = vadd.f32 %v998, %v1094
        %v1096 = vpop.f32.mrb[0].mxu0
        %1097 = vdwg.mxu0
        %v1098 = vpack.c.bf16 %v1071, %v1068
        %v1099 = vpack.c.bf16 %v1079, %v1076
        %v1100 = vpack.c.bf16 %v1087, %v1084
        %v1101 = vpack.c.bf16 %v1095, %v1092
        %1102 = vst [vmem:[#allocation5] sm:$0xff] %v1098
        %1103 = vst [vmem:[#allocation5 + $0x8] sm:$0xff] %v1099
        %1104 = vst [vmem:[#allocation5 + $0x10] sm:$0xff] %v1100
        %1105 = vst [vmem:[#allocation5 + $0x18] sm:$0xff] %v1101
        loop: start=0, step=1, limit=2
        $region72: #{tpu_custom_call.1} parent=55 // loop_pre_header
          _
        $region73: #{tpu_custom_call.1} parent=55 // loop_header
          %s1107 = sphi 0, %s1111
          %p1108 = scmp.ge.s32.totalorder %s1107, 2
        $region74: #{tpu_custom_call.1} parent=55 // loop_header_branch
          %1110 = sbr.rel (%p1108) target = $region78
        $region75: #{tpu_custom_call.1} parent=55 // loop_body
          %s1112 = smul.u32 %s1107, 2
          %s1113 = smul.addr %s1112, 8
          %s1114 = scalar_lea.vmem [#allocation5], %s1113
          %v1115 = vld [vmem:[%s1114] sm:$0xff]
          %v1116 = vld [vmem:[%s1114 + $0x8] sm:$0xff]
          %s1117 = smul.u32 %s1112, 2
          %s1118 = smul.addr %s1117, 8
          %s1119 = scalar_lea.vmem [#allocation2], %s1118
          %v1120 = vld [vmem:[%s1119] sm:$0xff]
          %v1121 = vld [vmem:[%s1119 + $0x8] sm:$0xff]
          %v1122 = vld [vmem:[%s1119 + $0x10] sm:$0xff]
          %v1123 = vld [vmem:[%s1119 + $0x18] sm:$0xff]
          %s1124 = smul.addr %s1117, 8
          %s1125 = scalar_lea.vmem [#allocation3], %s1124
          %v1126 = vld [vmem:[%s1125] sm:$0xff]
          %v1127 = vld [vmem:[%s1125 + $0x8] sm:$0xff]
          %v1128 = vld [vmem:[%s1125 + $0x10] sm:$0xff]
          %v1129 = vld [vmem:[%s1125 + $0x18] sm:$0xff]
          %1130 = vxpose.xlu0.c.b16.start [1/8] %v1115, 128
          %1131 = vxpose.xlu0.c.b16.cont [2/8] 0, 128
          %1132 = vxpose.xlu0.c.b16.cont [3/8] 0, 128
          %1133 = vxpose.xlu0.c.b16.cont [4/8] 0, 128
          %1134 = vxpose.xlu0.c.b16.cont [5/8] 0, 128
          %1135 = vxpose.xlu0.c.b16.cont [6/8] 0, 128
          %1136 = vxpose.xlu0.c.b16.cont [7/8] 0, 128
          %1137 = vxpose.xlu0.c.b16.end [8/8] 0, 128
          %v1138 = vpop.trf.xlu0
          %v1139 = vpop.trf.xlu0
          %v1140 = vpop.trf.xlu0
          %v1141 = vpop.trf.xlu0
          %v1142 = vpop.trf.xlu0
          %v1143 = vpop.trf.xlu0
          %v1144 = vpop.trf.xlu0
          %v1145 = vpop.trf.xlu0
          %vm1146 = vcmask 130048
          %v1148 = vsel %vm1146, %v1138, 0
          %v1151 = vsel %vm1146, %v1139, 0
          %v1154 = vsel %vm1146, %v1140, 0
          %v1157 = vsel %vm1146, %v1141, 0
          %v1160 = vsel %vm1146, %v1142, 0
          %v1163 = vsel %vm1146, %v1143, 0
          %v1166 = vsel %vm1146, %v1144, 0
          %v1169 = vsel %vm1146, %v1145, 0
          %1171 = vmatprep.subr.bf16.mxu0 %v1121
          %1172 = vmatpush1.bf16.msra.mxu0 %v1120
          %1173 = vmatprep.subr.bf16.mxu0 0
          %1174 = vmatpush1.bf16.msra.mxu0 0
          %1175 = vmatprep.subr.bf16.mxu0 0
          %1176 = vmatpush1.bf16.msra.mxu0 0
          %1177 = vmatprep.subr.bf16.mxu0 0
          %1178 = vmatpush1.bf16.msra.mxu0 0
          %1179 = vmatprep.subr.bf16.mxu0 0
          %1180 = vmatpush1.bf16.msra.mxu0 0
          %1181 = vmatprep.subr.bf16.mxu0 0
          %1182 = vmatpush1.bf16.msra.mxu0 0
          %1183 = vmatprep.subr.bf16.mxu0 0
          %1184 = vmatpush1.bf16.msra.mxu0 0
          %1185 = vmatprep.subr.bf16.mxu0 0
          %1186 = vmatpush1.bf16.msra.mxu0 0
          %1187 = vmatprep.subr.bf16.mxu0 0
          %1188 = vmatpush1.bf16.msra.mxu0 0
          %1189 = vmatprep.subr.bf16.mxu0 0
          %1190 = vmatpush1.bf16.msra.mxu0 0
          %1191 = vmatprep.subr.bf16.mxu0 0
          %1192 = vmatpush1.bf16.msra.mxu0 0
          %1193 = vmatprep.subr.bf16.mxu0 0
          %1194 = vmatpush1.bf16.msra.mxu0 0
          %1195 = vmatprep.subr.bf16.mxu0 0
          %1196 = vmatpush1.bf16.msra.mxu0 0
          %1197 = vmatprep.subr.bf16.mxu0 0
          %1198 = vmatpush1.bf16.msra.mxu0 0
          %1199 = vmatprep.subr.bf16.mxu0 0
          %1200 = vmatpush1.bf16.msra.mxu0 0
          %1201 = vmatprep.subr.bf16.mxu0 0
          %1202 = vmatpush1.bf16.msra.mxu0 0
          %1203 = vmatprep.mubr.bf16.mxu0 0
          %1204 = vmatmul.mubr.bf16.gmra.mrb[0].mxu0 %v1148
          %v1205 = vpop.f32.mrb[0].mxu0
          %v1206 = vadd.f32 0.0, %v1205
          %v1207 = vpop.f32.mrb[0].mxu0
          %v1208 = vadd.f32 0.0, %v1207
          %v1209 = vpop.f32.mrb[0].mxu0
          %v1210 = vadd.f32 0.0, %v1209
          %v1211 = vpop.f32.mrb[0].mxu0
          %v1212 = vadd.f32 0.0, %v1211
          %1213 = vmatprep.mubr.bf16.mxu0 0
          %1214 = vmatmul.mubr.bf16.gmra.mrb[0].mxu0 %v1151
          %v1215 = vpop.f32.mrb[0].mxu0
          %v1216 = vadd.f32 0.0, %v1215
          %v1217 = vpop.f32.mrb[0].mxu0
          %v1218 = vadd.f32 0.0, %v1217
          %v1219 = vpop.f32.mrb[0].mxu0
          %v1220 = vadd.f32 0.0, %v1219
          %v1221 = vpop.f32.mrb[0].mxu0
          %v1222 = vadd.f32 0.0, %v1221
          %1223 = vmatprep.mubr.bf16.mxu0 0
          %1224 = vmatmul.mubr.bf16.gmra.mrb[0].mxu0 %v1154
          %v1225 = vpop.f32.mrb[0].mxu0
          %v1226 = vadd.f32 0.0, %v1225
          %v1227 = vpop.f32.mrb[0].mxu0
          %v1228 = vadd.f32 0.0, %v1227
          %v1229 = vpop.f32.mrb[0].mxu0
          %v1230 = vadd.f32 0.0, %v1229
          %v1231 = vpop.f32.mrb[0].mxu0
          %v1232 = vadd.f32 0.0, %v1231
          %1233 = vmatprep.mubr.bf16.mxu0 0
          %1234 = vmatmul.mubr.bf16.gmra.mrb[0].mxu0 %v1157
          %v1235 = vpop.f32.mrb[0].mxu0
          %v1236 = vadd.f32 0.0, %v1235
          %v1237 = vpop.f32.mrb[0].mxu0
          %v1238 = vadd.f32 0.0, %v1237
          %v1239 = vpop.f32.mrb[0].mxu0
          %v1240 = vadd.f32 0.0, %v1239
          %v1241 = vpop.f32.mrb[0].mxu0
          %v1242 = vadd.f32 0.0, %v1241
          %1243 = vmatprep.mubr.bf16.mxu0 0
          %1244 = vmatmul.mubr.bf16.gmra.mrb[0].mxu0 %v1160
          %v1245 = vpop.f32.mrb[0].mxu0
          %v1246 = vadd.f32 0.0, %v1245
          %v1247 = vpop.f32.mrb[0].mxu0
          %v1248 = vadd.f32 0.0, %v1247
          %v1249 = vpop.f32.mrb[0].mxu0
          %v1250 = vadd.f32 0.0, %v1249
          %v1251 = vpop.f32.mrb[0].mxu0
          %v1252 = vadd.f32 0.0, %v1251
          %1253 = vmatprep.mubr.bf16.mxu0 0
          %1254 = vmatmul.mubr.bf16.gmra.mrb[0].mxu0 %v1163
          %v1255 = vpop.f32.mrb[0].mxu0
          %v1256 = vadd.f32 0.0, %v1255
          %v1257 = vpop.f32.mrb[0].mxu0
          %v1258 = vadd.f32 0.0, %v1257
          %v1259 = vpop.f32.mrb[0].mxu0
          %v1260 = vadd.f32 0.0, %v1259
          %v1261 = vpop.f32.mrb[0].mxu0
          %v1262 = vadd.f32 0.0, %v1261
          %1263 = vmatprep.mubr.bf16.mxu0 0
          %1264 = vmatmul.mubr.bf16.gmra.mrb[0].mxu0 %v1166
          %v1265 = vpop.f32.mrb[0].mxu0
          %v1266 = vadd.f32 0.0, %v1265
          %v1267 = vpop.f32.mrb[0].mxu0
          %v1268 = vadd.f32 0.0, %v1267
          %v1269 = vpop.f32.mrb[0].mxu0
          %v1270 = vadd.f32 0.0, %v1269
          %v1271 = vpop.f32.mrb[0].mxu0
          %v1272 = vadd.f32 0.0, %v1271
          %1273 = vmatprep.mubr.bf16.mxu0 0
          %1274 = vmatmul.mubr.bf16.gmra.mrb[0].mxu0 %v1169
          %v1275 = vpop.f32.mrb[0].mxu0
          %v1276 = vadd.f32 0.0, %v1275
          %v1277 = vpop.f32.mrb[0].mxu0
          %v1278 = vadd.f32 0.0, %v1277
          %v1279 = vpop.f32.mrb[0].mxu0
          %v1280 = vadd.f32 0.0, %v1279
          %v1281 = vpop.f32.mrb[0].mxu0
          %v1282 = vadd.f32 0.0, %v1281
          %1283 = vdwg.mxu0
          %1284 = vxpose.xlu0.c.b16.start [1/8] %v1116, 128
          %1285 = vxpose.xlu0.c.b16.cont [2/8] 0, 128
          %1286 = vxpose.xlu0.c.b16.cont [3/8] 0, 128
          %1287 = vxpose.xlu0.c.b16.cont [4/8] 0, 128
          %1288 = vxpose.xlu0.c.b16.cont [5/8] 0, 128
          %1289 = vxpose.xlu0.c.b16.cont [6/8] 0, 128
          %1290 = vxpose.xlu0.c.b16.cont [7/8] 0, 128
          %1291 = vxpose.xlu0.c.b16.end [8/8] 0, 128
          %v1292 = vpop.trf.xlu0
          %v1293 = vpop.trf.xlu0
          %v1294 = vpop.trf.xlu0
          %v1295 = vpop.trf.xlu0
          %v1296 = vpop.trf.xlu0
          %v1297 = vpop.trf.xlu0
          %v1298 = vpop.trf.xlu0
          %v1299 = vpop.trf.xlu0
          %v1301 = vsel %vm1146, %v1292, 0
          %v1304 = vsel %vm1146, %v1293, 0
          %v1307 = vsel %vm1146, %v1294, 0
          %v1310 = vsel %vm1146, %v1295, 0
          %v1313 = vsel %vm1146, %v1296, 0
          %v1316 = vsel %vm1146, %v1297, 0
          %v1319 = vsel %vm1146, %v1298, 0
          %v1322 = vsel %vm1146, %v1299, 0
          %1324 = vmatprep.subr.bf16.mxu0 %v1123
          %1325 = vmatpush1.bf16.msra.mxu0 %v1122
          %1326 = vmatprep.subr.bf16.mxu0 0
          %1327 = vmatpush1.bf16.msra.mxu0 0
          %1328 = vmatprep.subr.bf16.mxu0 0
          %1329 = vmatpush1.bf16.msra.mxu0 0
          %1330 = vmatprep.subr.bf16.mxu0 0
          %1331 = vmatpush1.bf16.msra.mxu0 0
          %1332 = vmatprep.subr.bf16.mxu0 0
          %1333 = vmatpush1.bf16.msra.mxu0 0
          %1334 = vmatprep.subr.bf16.mxu0 0
          %1335 = vmatpush1.bf16.msra.mxu0 0
          %1336 = vmatprep.subr.bf16.mxu0 0
          %1337 = vmatpush1.bf16.msra.mxu0 0
          %1338 = vmatprep.subr.bf16.mxu0 0
          %1339 = vmatpush1.bf16.msra.mxu0 0
          %1340 = vmatprep.subr.bf16.mxu0 0
          %1341 = vmatpush1.bf16.msra.mxu0 0
          %1342 = vmatprep.subr.bf16.mxu0 0
          %1343 = vmatpush1.bf16.msra.mxu0 0
          %1344 = vmatprep.subr.bf16.mxu0 0
          %1345 = vmatpush1.bf16.msra.mxu0 0
          %1346 = vmatprep.subr.bf16.mxu0 0
          %1347 = vmatpush1.bf16.msra.mxu0 0
          %1348 = vmatprep.subr.bf16.mxu0 0
          %1349 = vmatpush1.bf16.msra.mxu0 0
          %1350 = vmatprep.subr.bf16.mxu0 0
          %1351 = vmatpush1.bf16.msra.mxu0 0
          %1352 = vmatprep.subr.bf16.mxu0 0
          %1353 = vmatpush1.bf16.msra.mxu0 0
          %1354 = vmatprep.subr.bf16.mxu0 0
          %1355 = vmatpush1.bf16.msra.mxu0 0
          %1356 = vmatprep.mubr.bf16.mxu0 0
          %1357 = vmatmul.mubr.bf16.gmra.mrb[0].mxu0 %v1301
          %v1358 = vpop.f32.mrb[0].mxu0
          %v1359 = vadd.f32 0.0, %v1358
          %v1360 = vpop.f32.mrb[0].mxu0
          %v1361 = vadd.f32 0.0, %v1360
          %v1362 = vpop.f32.mrb[0].mxu0
          %v1363 = vadd.f32 0.0, %v1362
          %v1364 = vpop.f32.mrb[0].mxu0
          %v1365 = vadd.f32 0.0, %v1364
          %1366 = vmatprep.mubr.bf16.mxu0 0
          %1367 = vmatmul.mubr.bf16.gmra.mrb[0].mxu0 %v1304
          %v1368 = vpop.f32.mrb[0].mxu0
          %v1369 = vadd.f32 0.0, %v1368
          %v1370 = vpop.f32.mrb[0].mxu0
          %v1371 = vadd.f32 0.0, %v1370
          %v1372 = vpop.f32.mrb[0].mxu0
          %v1373 = vadd.f32 0.0, %v1372
          %v1374 = vpop.f32.mrb[0].mxu0
          %v1375 = vadd.f32 0.0, %v1374
          %1376 = vmatprep.mubr.bf16.mxu0 0
          %1377 = vmatmul.mubr.bf16.gmra.mrb[0].mxu0 %v1307
          %v1378 = vpop.f32.mrb[0].mxu0
          %v1379 = vadd.f32 0.0, %v1378
          %v1380 = vpop.f32.mrb[0].mxu0
          %v1381 = vadd.f32 0.0, %v1380
          %v1382 = vpop.f32.mrb[0].mxu0
          %v1383 = vadd.f32 0.0, %v1382
          %v1384 = vpop.f32.mrb[0].mxu0
          %v1385 = vadd.f32 0.0, %v1384
          %1386 = vmatprep.mubr.bf16.mxu0 0
          %1387 = vmatmul.mubr.bf16.gmra.mrb[0].mxu0 %v1310
          %v1388 = vpop.f32.mrb[0].mxu0
          %v1389 = vadd.f32 0.0, %v1388
          %v1390 = vpop.f32.mrb[0].mxu0
          %v1391 = vadd.f32 0.0, %v1390
          %v1392 = vpop.f32.mrb[0].mxu0
          %v1393 = vadd.f32 0.0, %v1392
          %v1394 = vpop.f32.mrb[0].mxu0
          %v1395 = vadd.f32 0.0, %v1394
          %1396 = vmatprep.mubr.bf16.mxu0 0
          %1397 = vmatmul.mubr.bf16.gmra.mrb[0].mxu0 %v1313
          %v1398 = vpop.f32.mrb[0].mxu0
          %v1399 = vadd.f32 0.0, %v1398
          %v1400 = vpop.f32.mrb[0].mxu0
          %v1401 = vadd.f32 0.0, %v1400
          %v1402 = vpop.f32.mrb[0].mxu0
          %v1403 = vadd.f32 0.0, %v1402
          %v1404 = vpop.f32.mrb[0].mxu0
          %v1405 = vadd.f32 0.0, %v1404
          %1406 = vmatprep.mubr.bf16.mxu0 0
          %1407 = vmatmul.mubr.bf16.gmra.mrb[0].mxu0 %v1316
          %v1408 = vpop.f32.mrb[0].mxu0
          %v1409 = vadd.f32 0.0, %v1408
          %v1410 = vpop.f32.mrb[0].mxu0
          %v1411 = vadd.f32 0.0, %v1410
          %v1412 = vpop.f32.mrb[0].mxu0
          %v1413 = vadd.f32 0.0, %v1412
          %v1414 = vpop.f32.mrb[0].mxu0
          %v1415 = vadd.f32 0.0, %v1414
          %1416 = vmatprep.mubr.bf16.mxu0 0
          %1417 = vmatmul.mubr.bf16.gmra.mrb[0].mxu0 %v1319
          %v1418 = vpop.f32.mrb[0].mxu0
          %v1419 = vadd.f32 0.0, %v1418
          %v1420 = vpop.f32.mrb[0].mxu0
          %v1421 = vadd.f32 0.0, %v1420
          %v1422 = vpop.f32.mrb[0].mxu0
          %v1423 = vadd.f32 0.0, %v1422
          %v1424 = vpop.f32.mrb[0].mxu0
          %v1425 = vadd.f32 0.0, %v1424
          %1426 = vmatprep.mubr.bf16.mxu0 0
          %1427 = vmatmul.mubr.bf16.gmra.mrb[0].mxu0 %v1322
          %v1428 = vpop.f32.mrb[0].mxu0
          %v1429 = vadd.f32 0.0, %v1428
          %v1430 = vpop.f32.mrb[0].mxu0
          %v1431 = vadd.f32 0.0, %v1430
          %v1432 = vpop.f32.mrb[0].mxu0
          %v1433 = vadd.f32 0.0, %v1432
          %v1434 = vpop.f32.mrb[0].mxu0
          %v1435 = vadd.f32 0.0, %v1434
          %1436 = vdwg.mxu0
          %v1437 = vmax.f32 %v1206, %v1208
          %1438 = vmax.xlane.f32.xlu0 %v1437
          %v1439 = vpop.xlane.xlu0 %1438
          %v1440 = vmax.f32 %v1210, %v1212
          %1441 = vmax.xlane.f32.xlu0 %v1440
          %v1442 = vpop.xlane.xlu0 %1441
          %v1443 = vmax.f32 %v1216, %v1218
          %1444 = vmax.xlane.f32.xlu0 %v1443
          %v1445 = vpop.xlane.xlu0 %1444
          %v1446 = vmax.f32 %v1220, %v1222
          %1447 = vmax.xlane.f32.xlu0 %v1446
          %v1448 = vpop.xlane.xlu0 %1447
          %v1449 = vmax.f32 %v1226, %v1228
          %1450 = vmax.xlane.f32.xlu0 %v1449
          %v1451 = vpop.xlane.xlu0 %1450
          %v1452 = vmax.f32 %v1230, %v1232
          %1453 = vmax.xlane.f32.xlu0 %v1452
          %v1454 = vpop.xlane.xlu0 %1453
          %v1455 = vmax.f32 %v1236, %v1238
          %1456 = vmax.xlane.f32.xlu0 %v1455
          %v1457 = vpop.xlane.xlu0 %1456
          %v1458 = vmax.f32 %v1240, %v1242
          %1459 = vmax.xlane.f32.xlu0 %v1458
          %v1460 = vpop.xlane.xlu0 %1459
          %v1461 = vmax.f32 %v1246, %v1248
          %1462 = vmax.xlane.f32.xlu0 %v1461
          %v1463 = vpop.xlane.xlu0 %1462
          %v1464 = vmax.f32 %v1250, %v1252
          %1465 = vmax.xlane.f32.xlu0 %v1464
          %v1466 = vpop.xlane.xlu0 %1465
          %v1467 = vmax.f32 %v1256, %v1258
          %1468 = vmax.xlane.f32.xlu0 %v1467
          %v1469 = vpop.xlane.xlu0 %1468
          %v1470 = vmax.f32 %v1260, %v1262
          %1471 = vmax.xlane.f32.xlu0 %v1470
          %v1472 = vpop.xlane.xlu0 %1471
          %v1473 = vmax.f32 %v1266, %v1268
          %1474 = vmax.xlane.f32.xlu0 %v1473
          %v1475 = vpop.xlane.xlu0 %1474
          %v1476 = vmax.f32 %v1270, %v1272
          %1477 = vmax.xlane.f32.xlu0 %v1476
          %v1478 = vpop.xlane.xlu0 %1477
          %v1479 = vmax.f32 %v1276, %v1278
          %1480 = vmax.xlane.f32.xlu0 %v1479
          %v1481 = vpop.xlane.xlu0 %1480
          %v1482 = vmax.f32 %v1280, %v1282
          %1483 = vmax.xlane.f32.xlu0 %v1482
          %v1484 = vpop.xlane.xlu0 %1483
          %v1485 = vmax.f32 %v1359, %v1361
          %1486 = vmax.xlane.f32.xlu0 %v1485
          %v1487 = vpop.xlane.xlu0 %1486
          %v1488 = vmax.f32 %v1363, %v1365
          %1489 = vmax.xlane.f32.xlu0 %v1488
          %v1490 = vpop.xlane.xlu0 %1489
          %v1491 = vmax.f32 %v1369, %v1371
          %1492 = vmax.xlane.f32.xlu0 %v1491
          %v1493 = vpop.xlane.xlu0 %1492
          %v1494 = vmax.f32 %v1373, %v1375
          %1495 = vmax.xlane.f32.xlu0 %v1494
          %v1496 = vpop.xlane.xlu0 %1495
          %v1497 = vmax.f32 %v1379, %v1381
          %1498 = vmax.xlane.f32.xlu0 %v1497
          %v1499 = vpop.xlane.xlu0 %1498
          %v1500 = vmax.f32 %v1383, %v1385
          %1501 = vmax.xlane.f32.xlu0 %v1500
          %v1502 = vpop.xlane.xlu0 %1501
          %v1503 = vmax.f32 %v1389, %v1391
          %1504 = vmax.xlane.f32.xlu0 %v1503
          %v1505 = vpop.xlane.xlu0 %1504
          %v1506 = vmax.f32 %v1393, %v1395
          %1507 = vmax.xlane.f32.xlu0 %v1506
          %v1508 = vpop.xlane.xlu0 %1507
          %v1509 = vmax.f32 %v1399, %v1401
          %1510 = vmax.xlane.f32.xlu0 %v1509
          %v1511 = vpop.xlane.xlu0 %1510
          %v1512 = vmax.f32 %v1403, %v1405
          %1513 = vmax.xlane.f32.xlu0 %v1512
          %v1514 = vpop.xlane.xlu0 %1513
          %v1515 = vmax.f32 %v1409, %v1411
          %1516 = vmax.xlane.f32.xlu0 %v1515
          %v1517 = vpop.xlane.xlu0 %1516
          %v1518 = vmax.f32 %v1413, %v1415
          %1519 = vmax.xlane.f32.xlu0 %v1518
          %v1520 = vpop.xlane.xlu0 %1519
          %v1521 = vmax.f32 %v1419, %v1421
          %1522 = vmax.xlane.f32.xlu0 %v1521
          %v1523 = vpop.xlane.xlu0 %1522
          %v1524 = vmax.f32 %v1423, %v1425
          %1525 = vmax.xlane.f32.xlu0 %v1524
          %v1526 = vpop.xlane.xlu0 %1525
          %v1527 = vmax.f32 %v1429, %v1431
          %1528 = vmax.xlane.f32.xlu0 %v1527
          %v1529 = vpop.xlane.xlu0 %1528
          %v1530 = vmax.f32 %v1433, %v1435
          %1531 = vmax.xlane.f32.xlu0 %v1530
          %v1532 = vpop.xlane.xlu0 %1531
          %v1533 = vsub.f32 %v1206, %v1439
          %v1534 = vsub.f32 %v1208, %v1439
          %v1535 = vsub.f32 %v1210, %v1442
          %v1536 = vsub.f32 %v1212, %v1442
          %v1537 = vsub.f32 %v1216, %v1445
          %v1538 = vsub.f32 %v1218, %v1445
          %v1539 = vsub.f32 %v1220, %v1448
          %v1540 = vsub.f32 %v1222, %v1448
          %v1541 = vsub.f32 %v1226, %v1451
          %v1542 = vsub.f32 %v1228, %v1451
          %v1543 = vsub.f32 %v1230, %v1454
          %v1544 = vsub.f32 %v1232, %v1454
          %v1545 = vsub.f32 %v1236, %v1457
          %v1546 = vsub.f32 %v1238, %v1457
          %v1547 = vsub.f32 %v1240, %v1460
          %v1548 = vsub.f32 %v1242, %v1460
          %v1549 = vsub.f32 %v1246, %v1463
          %v1550 = vsub.f32 %v1248, %v1463
          %v1551 = vsub.f32 %v1250, %v1466
          %v1552 = vsub.f32 %v1252, %v1466
          %v1553 = vsub.f32 %v1256, %v1469
          %v1554 = vsub.f32 %v1258, %v1469
          %v1555 = vsub.f32 %v1260, %v1472
          %v1556 = vsub.f32 %v1262, %v1472
          %v1557 = vsub.f32 %v1266, %v1475
          %v1558 = vsub.f32 %v1268, %v1475
          %v1559 = vsub.f32 %v1270, %v1478
          %v1560 = vsub.f32 %v1272, %v1478
          %v1561 = vsub.f32 %v1276, %v1481
          %v1562 = vsub.f32 %v1278, %v1481
          %v1563 = vsub.f32 %v1280, %v1484
          %v1564 = vsub.f32 %v1282, %v1484
          %v1565 = vsub.f32 %v1359, %v1487
          %v1566 = vsub.f32 %v1361, %v1487
          %v1567 = vsub.f32 %v1363, %v1490
          %v1568 = vsub.f32 %v1365, %v1490
          %v1569 = vsub.f32 %v1369, %v1493
          %v1570 = vsub.f32 %v1371, %v1493
          %v1571 = vsub.f32 %v1373, %v1496
          %v1572 = vsub.f32 %v1375, %v1496
          %v1573 = vsub.f32 %v1379, %v1499
          %v1574 = vsub.f32 %v1381, %v1499
          %v1575 = vsub.f32 %v1383, %v1502
          %v1576 = vsub.f32 %v1385, %v1502
          %v1577 = vsub.f32 %v1389, %v1505
          %v1578 = vsub.f32 %v1391, %v1505
          %v1579 = vsub.f32 %v1393, %v1508
          %v1580 = vsub.f32 %v1395, %v1508
          %v1581 = vsub.f32 %v1399, %v1511
          %v1582 = vsub.f32 %v1401, %v1511
          %v1583 = vsub.f32 %v1403, %v1514
          %v1584 = vsub.f32 %v1405, %v1514
          %v1585 = vsub.f32 %v1409, %v1517
          %v1586 = vsub.f32 %v1411, %v1517
          %v1587 = vsub.f32 %v1413, %v1520
          %v1588 = vsub.f32 %v1415, %v1520
          %v1589 = vsub.f32 %v1419, %v1523
          %v1590 = vsub.f32 %v1421, %v1523
          %v1591 = vsub.f32 %v1423, %v1526
          %v1592 = vsub.f32 %v1425, %v1526
          %v1593 = vsub.f32 %v1429, %v1529
          %v1594 = vsub.f32 %v1431, %v1529
          %v1595 = vsub.f32 %v1433, %v1532
          %v1596 = vsub.f32 %v1435, %v1532
          %v1597 = vmul.f32 %v1533, 1.442695
          %v1598 = vpow.pop %v1597
          %v1599 = vmul.f32 %v1534, 1.442695
          %v1600 = vpow.pop %v1599
          %v1601 = vmul.f32 %v1535, 1.442695
          %v1602 = vpow.pop %v1601
          %v1603 = vmul.f32 %v1536, 1.442695
          %v1604 = vpow.pop %v1603
          %v1605 = vmul.f32 %v1537, 1.442695
          %v1606 = vpow.pop %v1605
          %v1607 = vmul.f32 %v1538, 1.442695
          %v1608 = vpow.pop %v1607
          %v1609 = vmul.f32 %v1539, 1.442695
          %v1610 = vpow.pop %v1609
          %v1611 = vmul.f32 %v1540, 1.442695
          %v1612 = vpow.pop %v1611
          %v1613 = vmul.f32 %v1541, 1.442695
          %v1614 = vpow.pop %v1613
          %v1615 = vmul.f32 %v1542, 1.442695
          %v1616 = vpow.pop %v1615
          %v1617 = vmul.f32 %v1543, 1.442695
          %v1618 = vpow.pop %v1617
          %v1619 = vmul.f32 %v1544, 1.442695
          %v1620 = vpow.pop %v1619
          %v1621 = vmul.f32 %v1545, 1.442695
          %v1622 = vpow.pop %v1621
          %v1623 = vmul.f32 %v1546, 1.442695
          %v1624 = vpow.pop %v1623
          %v1625 = vmul.f32 %v1547, 1.442695
          %v1626 = vpow.pop %v1625
          %v1627 = vmul.f32 %v1548, 1.442695
          %v1628 = vpow.pop %v1627
          %v1629 = vmul.f32 %v1549, 1.442695
          %v1630 = vpow.pop %v1629
          %v1631 = vmul.f32 %v1550, 1.442695
          %v1632 = vpow.pop %v1631
          %v1633 = vmul.f32 %v1551, 1.442695
          %v1634 = vpow.pop %v1633
          %v1635 = vmul.f32 %v1552, 1.442695
          %v1636 = vpow.pop %v1635
          %v1637 = vmul.f32 %v1553, 1.442695
          %v1638 = vpow.pop %v1637
          %v1639 = vmul.f32 %v1554, 1.442695
          %v1640 = vpow.pop %v1639
          %v1641 = vmul.f32 %v1555, 1.442695
          %v1642 = vpow.pop %v1641
          %v1643 = vmul.f32 %v1556, 1.442695
          %v1644 = vpow.pop %v1643
          %v1645 = vmul.f32 %v1557, 1.442695
          %v1646 = vpow.pop %v1645
          %v1647 = vmul.f32 %v1558, 1.442695
          %v1648 = vpow.pop %v1647
          %v1649 = vmul.f32 %v1559, 1.442695
          %v1650 = vpow.pop %v1649
          %v1651 = vmul.f32 %v1560, 1.442695
          %v1652 = vpow.pop %v1651
          %v1653 = vmul.f32 %v1561, 1.442695
          %v1654 = vpow.pop %v1653
          %v1655 = vmul.f32 %v1562, 1.442695
          %v1656 = vpow.pop %v1655
          %v1657 = vmul.f32 %v1563, 1.442695
          %v1658 = vpow.pop %v1657
          %v1659 = vmul.f32 %v1564, 1.442695
          %v1660 = vpow.pop %v1659
          %v1661 = vmul.f32 %v1565, 1.442695
          %v1662 = vpow.pop %v1661
          %v1663 = vmul.f32 %v1566, 1.442695
          %v1664 = vpow.pop %v1663
          %v1665 = vmul.f32 %v1567, 1.442695
          %v1666 = vpow.pop %v1665
          %v1667 = vmul.f32 %v1568, 1.442695
          %v1668 = vpow.pop %v1667
          %v1669 = vmul.f32 %v1569, 1.442695
          %v1670 = vpow.pop %v1669
          %v1671 = vmul.f32 %v1570, 1.442695
          %v1672 = vpow.pop %v1671
          %v1673 = vmul.f32 %v1571, 1.442695
          %v1674 = vpow.pop %v1673
          %v1675 = vmul.f32 %v1572, 1.442695
          %v1676 = vpow.pop %v1675
          %v1677 = vmul.f32 %v1573, 1.442695
          %v1678 = vpow.pop %v1677
          %v1679 = vmul.f32 %v1574, 1.442695
          %v1680 = vpow.pop %v1679
          %v1681 = vmul.f32 %v1575, 1.442695
          %v1682 = vpow.pop %v1681
          %v1683 = vmul.f32 %v1576, 1.442695
          %v1684 = vpow.pop %v1683
          %v1685 = vmul.f32 %v1577, 1.442695
          %v1686 = vpow.pop %v1685
          %v1687 = vmul.f32 %v1578, 1.442695
          %v1688 = vpow.pop %v1687
          %v1689 = vmul.f32 %v1579, 1.442695
          %v1690 = vpow.pop %v1689
          %v1691 = vmul.f32 %v1580, 1.442695
          %v1692 = vpow.pop %v1691
          %v1693 = vmul.f32 %v1581, 1.442695
          %v1694 = vpow.pop %v1693
          %v1695 = vmul.f32 %v1582, 1.442695
          %v1696 = vpow.pop %v1695
          %v1697 = vmul.f32 %v1583, 1.442695
          %v1698 = vpow.pop %v1697
          %v1699 = vmul.f32 %v1584, 1.442695
          %v1700 = vpow.pop %v1699
          %v1701 = vmul.f32 %v1585, 1.442695
          %v1702 = vpow.pop %v1701
          %v1703 = vmul.f32 %v1586, 1.442695
          %v1704 = vpow.pop %v1703
          %v1705 = vmul.f32 %v1587, 1.442695
          %v1706 = vpow.pop %v1705
          %v1707 = vmul.f32 %v1588, 1.442695
          %v1708 = vpow.pop %v1707
          %v1709 = vmul.f32 %v1589, 1.442695
          %v1710 = vpow.pop %v1709
          %v1711 = vmul.f32 %v1590, 1.442695
          %v1712 = vpow.pop %v1711
          %v1713 = vmul.f32 %v1591, 1.442695
          %v1714 = vpow.pop %v1713
          %v1715 = vmul.f32 %v1592, 1.442695
          %v1716 = vpow.pop %v1715
          %v1717 = vmul.f32 %v1593, 1.442695
          %v1718 = vpow.pop %v1717
          %v1719 = vmul.f32 %v1594, 1.442695
          %v1720 = vpow.pop %v1719
          %v1721 = vmul.f32 %v1595, 1.442695
          %v1722 = vpow.pop %v1721
          %v1723 = vmul.f32 %v1596, 1.442695
          %v1724 = vpow.pop %v1723
          %v1725 = vadd.f32 %v1598, %v1600
          %1726 = vadd.xlane.f32.xlu0 %v1725
          %v1727 = vpop.xlane.xlu0 %1726
          %v1728 = vadd.f32 %v1602, %v1604
          %1729 = vadd.xlane.f32.xlu0 %v1728
          %v1730 = vpop.xlane.xlu0 %1729
          %v1731 = vadd.f32 %v1606, %v1608
          %1732 = vadd.xlane.f32.xlu0 %v1731
          %v1733 = vpop.xlane.xlu0 %1732
          %v1734 = vadd.f32 %v1610, %v1612
          %1735 = vadd.xlane.f32.xlu0 %v1734
          %v1736 = vpop.xlane.xlu0 %1735
          %v1737 = vadd.f32 %v1614, %v1616
          %1738 = vadd.xlane.f32.xlu0 %v1737
          %v1739 = vpop.xlane.xlu0 %1738
          %v1740 = vadd.f32 %v1618, %v1620
          %1741 = vadd.xlane.f32.xlu0 %v1740
          %v1742 = vpop.xlane.xlu0 %1741
          %v1743 = vadd.f32 %v1622, %v1624
          %1744 = vadd.xlane.f32.xlu0 %v1743
          %v1745 = vpop.xlane.xlu0 %1744
          %v1746 = vadd.f32 %v1626, %v1628
          %1747 = vadd.xlane.f32.xlu0 %v1746
          %v1748 = vpop.xlane.xlu0 %1747
          %v1749 = vadd.f32 %v1630, %v1632
          %1750 = vadd.xlane.f32.xlu0 %v1749
          %v1751 = vpop.xlane.xlu0 %1750
          %v1752 = vadd.f32 %v1634, %v1636
          %1753 = vadd.xlane.f32.xlu0 %v1752
          %v1754 = vpop.xlane.xlu0 %1753
          %v1755 = vadd.f32 %v1638, %v1640
          %1756 = vadd.xlane.f32.xlu0 %v1755
          %v1757 = vpop.xlane.xlu0 %1756
          %v1758 = vadd.f32 %v1642, %v1644
          %1759 = vadd.xlane.f32.xlu0 %v1758
          %v1760 = vpop.xlane.xlu0 %1759
          %v1761 = vadd.f32 %v1646, %v1648
          %1762 = vadd.xlane.f32.xlu0 %v1761
          %v1763 = vpop.xlane.xlu0 %1762
          %v1764 = vadd.f32 %v1650, %v1652
          %1765 = vadd.xlane.f32.xlu0 %v1764
          %v1766 = vpop.xlane.xlu0 %1765
          %v1767 = vadd.f32 %v1654, %v1656
          %1768 = vadd.xlane.f32.xlu0 %v1767
          %v1769 = vpop.xlane.xlu0 %1768
          %v1770 = vadd.f32 %v1658, %v1660
          %1771 = vadd.xlane.f32.xlu0 %v1770
          %v1772 = vpop.xlane.xlu0 %1771
          %v1773 = vadd.f32 %v1662, %v1664
          %1774 = vadd.xlane.f32.xlu0 %v1773
          %v1775 = vpop.xlane.xlu0 %1774
          %v1776 = vadd.f32 %v1666, %v1668
          %1777 = vadd.xlane.f32.xlu0 %v1776
          %v1778 = vpop.xlane.xlu0 %1777
          %v1779 = vadd.f32 %v1670, %v1672
          %1780 = vadd.xlane.f32.xlu0 %v1779
          %v1781 = vpop.xlane.xlu0 %1780
          %v1782 = vadd.f32 %v1674, %v1676
          %1783 = vadd.xlane.f32.xlu0 %v1782
          %v1784 = vpop.xlane.xlu0 %1783
          %v1785 = vadd.f32 %v1678, %v1680
          %1786 = vadd.xlane.f32.xlu0 %v1785
          %v1787 = vpop.xlane.xlu0 %1786
          %v1788 = vadd.f32 %v1682, %v1684
          %1789 = vadd.xlane.f32.xlu0 %v1788
          %v1790 = vpop.xlane.xlu0 %1789
          %v1791 = vadd.f32 %v1686, %v1688
          %1792 = vadd.xlane.f32.xlu0 %v1791
          %v1793 = vpop.xlane.xlu0 %1792
          %v1794 = vadd.f32 %v1690, %v1692
          %1795 = vadd.xlane.f32.xlu0 %v1794
          %v1796 = vpop.xlane.xlu0 %1795
          %v1797 = vadd.f32 %v1694, %v1696
          %1798 = vadd.xlane.f32.xlu0 %v1797
          %v1799 = vpop.xlane.xlu0 %1798
          %v1800 = vadd.f32 %v1698, %v1700
          %1801 = vadd.xlane.f32.xlu0 %v1800
          %v1802 = vpop.xlane.xlu0 %1801
          %v1803 = vadd.f32 %v1702, %v1704
          %1804 = vadd.xlane.f32.xlu0 %v1803
          %v1805 = vpop.xlane.xlu0 %1804
          %v1806 = vadd.f32 %v1706, %v1708
          %1807 = vadd.xlane.f32.xlu0 %v1806
          %v1808 = vpop.xlane.xlu0 %1807
          %v1809 = vadd.f32 %v1710, %v1712
          %1810 = vadd.xlane.f32.xlu0 %v1809
          %v1811 = vpop.xlane.xlu0 %1810
          %v1812 = vadd.f32 %v1714, %v1716
          %1813 = vadd.xlane.f32.xlu0 %v1812
          %v1814 = vpop.xlane.xlu0 %1813
          %v1815 = vadd.f32 %v1718, %v1720
          %1816 = vadd.xlane.f32.xlu0 %v1815
          %v1817 = vpop.xlane.xlu0 %1816
          %v1818 = vadd.f32 %v1722, %v1724
          %1819 = vadd.xlane.f32.xlu0 %v1818
          %v1820 = vpop.xlane.xlu0 %1819
          %v1821 = vpack.c.bf16 %v1602, %v1598
          %v1822 = vpack.c.bf16 %v1604, %v1600
          %v1823 = vpack.c.bf16 %v1610, %v1606
          %v1824 = vpack.c.bf16 %v1612, %v1608
          %v1825 = vpack.c.bf16 %v1618, %v1614
          %v1826 = vpack.c.bf16 %v1620, %v1616
          %v1827 = vpack.c.bf16 %v1626, %v1622
          %v1828 = vpack.c.bf16 %v1628, %v1624
          %v1829 = vpack.c.bf16 %v1634, %v1630
          %v1830 = vpack.c.bf16 %v1636, %v1632
          %v1831 = vpack.c.bf16 %v1642, %v1638
          %v1832 = vpack.c.bf16 %v1644, %v1640
          %v1833 = vpack.c.bf16 %v1650, %v1646
          %v1834 = vpack.c.bf16 %v1652, %v1648
          %v1835 = vpack.c.bf16 %v1658, %v1654
          %v1836 = vpack.c.bf16 %v1660, %v1656
          %v1837 = vpack.c.bf16 %v1666, %v1662
          %v1838 = vpack.c.bf16 %v1668, %v1664
          %v1839 = vpack.c.bf16 %v1674, %v1670
          %v1840 = vpack.c.bf16 %v1676, %v1672
          %v1841 = vpack.c.bf16 %v1682, %v1678
          %v1842 = vpack.c.bf16 %v1684, %v1680
          %v1843 = vpack.c.bf16 %v1690, %v1686
          %v1844 = vpack.c.bf16 %v1692, %v1688
          %v1845 = vpack.c.bf16 %v1698, %v1694
          %v1846 = vpack.c.bf16 %v1700, %v1696
          %v1847 = vpack.c.bf16 %v1706, %v1702
          %v1848 = vpack.c.bf16 %v1708, %v1704
          %v1849 = vpack.c.bf16 %v1714, %v1710
          %v1850 = vpack.c.bf16 %v1716, %v1712
          %v1851 = vpack.c.bf16 %v1722, %v1718
          %v1852 = vpack.c.bf16 %v1724, %v1720
          %1853 = vmatprep.subr.bf16.mxu0 %v1822
          %1854 = vmatpush1.bf16.xpose.msra.mxu0 %v1821
          %1855 = vmatprep.subr.bf16.mxu0 %v1824
          %1856 = vmatpush1.bf16.xpose.msra.mxu0 %v1823
          %1857 = vmatprep.subr.bf16.mxu0 %v1826
          %1858 = vmatpush1.bf16.xpose.msra.mxu0 %v1825
          %1859 = vmatprep.subr.bf16.mxu0 %v1828
          %1860 = vmatpush1.bf16.xpose.msra.mxu0 %v1827
          %1861 = vmatprep.subr.bf16.mxu0 %v1830
          %1862 = vmatpush1.bf16.xpose.msra.mxu0 %v1829
          %1863 = vmatprep.subr.bf16.mxu0 %v1832
          %1864 = vmatpush1.bf16.xpose.msra.mxu0 %v1831
          %1865 = vmatprep.subr.bf16.mxu0 %v1834
          %1866 = vmatpush1.bf16.xpose.msra.mxu0 %v1833
          %1867 = vmatprep.subr.bf16.mxu0 %v1836
          %1868 = vmatpush1.bf16.xpose.msra.mxu0 %v1835
          %1869 = vmatprep.subr.bf16.mxu0 0
          %1870 = vmatpush1.bf16.xpose.msra.mxu0 0
          %1871 = vmatprep.subr.bf16.mxu0 0
          %1872 = vmatpush1.bf16.xpose.msra.mxu0 0
          %1873 = vmatprep.subr.bf16.mxu0 0
          %1874 = vmatpush1.bf16.xpose.msra.mxu0 0
          %1875 = vmatprep.subr.bf16.mxu0 0
          %1876 = vmatpush1.bf16.xpose.msra.mxu0 0
          %1877 = vmatprep.subr.bf16.mxu0 0
          %1878 = vmatpush1.bf16.xpose.msra.mxu0 0
          %1879 = vmatprep.subr.bf16.mxu0 0
          %1880 = vmatpush1.bf16.xpose.msra.mxu0 0
          %1881 = vmatprep.subr.bf16.mxu0 0
          %1882 = vmatpush1.bf16.xpose.msra.mxu0 0
          %1883 = vmatprep.subr.bf16.mxu0 0
          %1884 = vmatpush1.bf16.xpose.msra.mxu0 0
          %1885 = vmatprep.mubr.bf16.mxu0 %v1127
          %1886 = vmatmul.mubr.bf16.gmra.mrb[0].mxu0 %v1126
          %v1887 = vpop.f32.mrb[0].mxu0
          %v1888 = vadd.f32 0.0, %v1887
          %v1889 = vpop.f32.mrb[0].mxu0
          %v1890 = vpop.f32.mrb[0].mxu0
          %v1891 = vadd.f32 0.0, %v1890
          %v1892 = vpop.f32.mrb[0].mxu0
          %1893 = vdwg.mxu0
          %1894 = vmatprep.subr.bf16.mxu0 %v1838
          %1895 = vmatpush1.bf16.xpose.msra.mxu0 %v1837
          %1896 = vmatprep.subr.bf16.mxu0 %v1840
          %1897 = vmatpush1.bf16.xpose.msra.mxu0 %v1839
          %1898 = vmatprep.subr.bf16.mxu0 %v1842
          %1899 = vmatpush1.bf16.xpose.msra.mxu0 %v1841
          %1900 = vmatprep.subr.bf16.mxu0 %v1844
          %1901 = vmatpush1.bf16.xpose.msra.mxu0 %v1843
          %1902 = vmatprep.subr.bf16.mxu0 %v1846
          %1903 = vmatpush1.bf16.xpose.msra.mxu0 %v1845
          %1904 = vmatprep.subr.bf16.mxu0 %v1848
          %1905 = vmatpush1.bf16.xpose.msra.mxu0 %v1847
          %1906 = vmatprep.subr.bf16.mxu0 %v1850
          %1907 = vmatpush1.bf16.xpose.msra.mxu0 %v1849
          %1908 = vmatprep.subr.bf16.mxu0 %v1852
          %1909 = vmatpush1.bf16.xpose.msra.mxu0 %v1851
          %1910 = vmatprep.subr.bf16.mxu0 0
          %1911 = vmatpush1.bf16.xpose.msra.mxu0 0
          %1912 = vmatprep.subr.bf16.mxu0 0
          %1913 = vmatpush1.bf16.xpose.msra.mxu0 0
          %1914 = vmatprep.subr.bf16.mxu0 0
          %1915 = vmatpush1.bf16.xpose.msra.mxu0 0
          %1916 = vmatprep.subr.bf16.mxu0 0
          %1917 = vmatpush1.bf16.xpose.msra.mxu0 0
          %1918 = vmatprep.subr.bf16.mxu0 0
          %1919 = vmatpush1.bf16.xpose.msra.mxu0 0
          %1920 = vmatprep.subr.bf16.mxu0 0
          %1921 = vmatpush1.bf16.xpose.msra.mxu0 0
          %1922 = vmatprep.subr.bf16.mxu0 0
          %1923 = vmatpush1.bf16.xpose.msra.mxu0 0
          %1924 = vmatprep.subr.bf16.mxu0 0
          %1925 = vmatpush1.bf16.xpose.msra.mxu0 0
          %1926 = vmatprep.mubr.bf16.mxu0 %v1129
          %1927 = vmatmul.mubr.bf16.gmra.mrb[0].mxu0 %v1128
          %v1928 = vpop.f32.mrb[0].mxu0
          %v1929 = vadd.f32 0.0, %v1928
          %v1930 = vpop.f32.mrb[0].mxu0
          %v1931 = vpop.f32.mrb[0].mxu0
          %v1932 = vadd.f32 0.0, %v1931
          %v1933 = vpop.f32.mrb[0].mxu0
          %1934 = vdwg.mxu0
          %v1935 = vrcp.pop %v1727
          %v1936 = vrcp.pop %v1730
          %v1937 = vrcp.pop %v1733
          %v1938 = vrcp.pop %v1736
          %v1939 = vrcp.pop %v1739
          %v1940 = vrcp.pop %v1742
          %v1941 = vrcp.pop %v1745
          %v1942 = vrcp.pop %v1748
          %v1943 = vrcp.pop %v1751
          %v1944 = vrcp.pop %v1754
          %v1945 = vrcp.pop %v1757
          %v1946 = vrcp.pop %v1760
          %v1947 = vrcp.pop %v1763
          %v1948 = vrcp.pop %v1766
          %v1949 = vrcp.pop %v1769
          %v1950 = vrcp.pop %v1772
          %v1951 = vrcp.pop %v1775
          %v1952 = vrcp.pop %v1778
          %v1953 = vrcp.pop %v1781
          %v1954 = vrcp.pop %v1784
          %v1955 = vrcp.pop %v1787
          %v1956 = vrcp.pop %v1790
          %v1957 = vrcp.pop %v1793
          %v1958 = vrcp.pop %v1796
          %v1959 = vrcp.pop %v1799
          %v1960 = vrcp.pop %v1802
          %v1961 = vrcp.pop %v1805
          %v1962 = vrcp.pop %v1808
          %v1963 = vrcp.pop %v1811
          %v1964 = vrcp.pop %v1814
          %v1965 = vrcp.pop %v1817
          %v1966 = vrcp.pop %v1820
          %v1999 = vlaneseq
          %v2000 = vand.u32 %v1999, 127
          %v2001 = vlaneseq
          %v2002 = vshrl.u32 %v2001, 7
          %v2003 = vsub.s32 %v2000, %v2002
          %v2004 = vrot.slane %v1935, %v2003
          %v2005 = vadd.s32 %v2000, 4294967288
          %v2006 = vlaneseq
          %v2007 = vshrl.u32 %v2006, 7
          %v2008 = vsub.s32 %v2005, %v2007
          %v2009 = vrot.slane %v1936, %v2008
          %vm2010 = vcmask 130112
          %v2011 = vsel %vm2010, %v2009, %v2004
          %v2012 = vadd.s32 %v2000, 4294967280
          %v2013 = vlaneseq
          %v2014 = vshrl.u32 %v2013, 7
          %v2015 = vsub.s32 %v2012, %v2014
          %v2016 = vrot.slane %v1937, %v2015
          %vm2017 = vcmask 195712
          %v2018 = vsel %vm2017, %v2016, %v2011
          %v2019 = vadd.s32 %v2000, 4294967272
          %v2020 = vlaneseq
          %v2021 = vshrl.u32 %v2020, 7
          %v2022 = vsub.s32 %v2019, %v2021
          %v2023 = vrot.slane %v1938, %v2022
          %vm2024 = vcmask 261312
          %v2025 = vsel %vm2024, %v2023, %v2018
          %v2026 = vadd.s32 %v2000, 4294967264
          %v2027 = vlaneseq
          %v2028 = vshrl.u32 %v2027, 7
          %v2029 = vsub.s32 %v2026, %v2028
          %v2030 = vrot.slane %v1939, %v2029
          %vm2031 = vcmask 326912
          %v2032 = vsel %vm2031, %v2030, %v2025
          %v2033 = vadd.s32 %v2000, 4294967256
          %v2034 = vlaneseq
          %v2035 = vshrl.u32 %v2034, 7
          %v2036 = vsub.s32 %v2033, %v2035
          %v2037 = vrot.slane %v1940, %v2036
          %vm2038 = vcmask 392512
          %v2039 = vsel %vm2038, %v2037, %v2032
          %v2040 = vadd.s32 %v2000, 4294967248
          %v2041 = vlaneseq
          %v2042 = vshrl.u32 %v2041, 7
          %v2043 = vsub.s32 %v2040, %v2042
          %v2044 = vrot.slane %v1941, %v2043
          %vm2045 = vcmask 458112
          %v2046 = vsel %vm2045, %v2044, %v2039
          %v2047 = vadd.s32 %v2000, 4294967240
          %v2048 = vlaneseq
          %v2049 = vshrl.u32 %v2048, 7
          %v2050 = vsub.s32 %v2047, %v2049
          %v2051 = vrot.slane %v1942, %v2050
          %vm2052 = vcmask 523712
          %v2053 = vsel %vm2052, %v2051, %v2046
          %v2054 = vadd.s32 %v2000, 4294967232
          %v2055 = vlaneseq
          %v2056 = vshrl.u32 %v2055, 7
          %v2057 = vsub.s32 %v2054, %v2056
          %v2058 = vrot.slane %v1943, %v2057
          %vm2059 = vcmask 589312
          %v2060 = vsel %vm2059, %v2058, %v2053
          %v2061 = vadd.s32 %v2000, 4294967224
          %v2062 = vlaneseq
          %v2063 = vshrl.u32 %v2062, 7
          %v2064 = vsub.s32 %v2061, %v2063
          %v2065 = vrot.slane %v1944, %v2064
          %vm2066 = vcmask 654912
          %v2067 = vsel %vm2066, %v2065, %v2060
          %v2068 = vadd.s32 %v2000, 4294967216
          %v2069 = vlaneseq
          %v2070 = vshrl.u32 %v2069, 7
          %v2071 = vsub.s32 %v2068, %v2070
          %v2072 = vrot.slane %v1945, %v2071
          %vm2073 = vcmask 720512
          %v2074 = vsel %vm2073, %v2072, %v2067
          %v2075 = vadd.s32 %v2000, 4294967208
          %v2076 = vlaneseq
          %v2077 = vshrl.u32 %v2076, 7
          %v2078 = vsub.s32 %v2075, %v2077
          %v2079 = vrot.slane %v1946, %v2078
          %vm2080 = vcmask 786112
          %v2081 = vsel %vm2080, %v2079, %v2074
          %v2082 = vadd.s32 %v2000, 4294967200
          %v2083 = vlaneseq
          %v2084 = vshrl.u32 %v2083, 7
          %v2085 = vsub.s32 %v2082, %v2084
          %v2086 = vrot.slane %v1947, %v2085
          %vm2087 = vcmask 851712
          %v2088 = vsel %vm2087, %v2086, %v2081
          %v2089 = vadd.s32 %v2000, 4294967192
          %v2090 = vlaneseq
          %v2091 = vshrl.u32 %v2090, 7
          %v2092 = vsub.s32 %v2089, %v2091
          %v2093 = vrot.slane %v1948, %v2092
          %vm2094 = vcmask 917312
          %v2095 = vsel %vm2094, %v2093, %v2088
          %v2096 = vadd.s32 %v2000, 4294967184
          %v2097 = vlaneseq
          %v2098 = vshrl.u32 %v2097, 7
          %v2099 = vsub.s32 %v2096, %v2098
          %v2100 = vrot.slane %v1949, %v2099
          %vm2101 = vcmask 982912
          %v2102 = vsel %vm2101, %v2100, %v2095
          %v2103 = vadd.s32 %v2000, 4294967176
          %v2104 = vlaneseq
          %v2105 = vshrl.u32 %v2104, 7
          %v2106 = vsub.s32 %v2103, %v2105
          %v2107 = vrot.slane %v1950, %v2106
          %vm2108 = vcmask 1048512
          %v2109 = vsel %vm2108, %v2107, %v2102
          %v2110 = vlaneseq
          %v2111 = vshrl.u32 %v2110, 7
          %v2112 = vsub.s32 %v2000, %v2111
          %v2113 = vrot.slane %v1951, %v2112
          %v2114 = vlaneseq
          %v2115 = vshrl.u32 %v2114, 7
          %v2116 = vsub.s32 %v2005, %v2115
          %v2117 = vrot.slane %v1952, %v2116
          %v2118 = vsel %vm2010, %v2117, %v2113
          %v2119 = vlaneseq
          %v2120 = vshrl.u32 %v2119, 7
          %v2121 = vsub.s32 %v2012, %v2120
          %v2122 = vrot.slane %v1953, %v2121
          %v2123 = vsel %vm2017, %v2122, %v2118
          %v2124 = vlaneseq
          %v2125 = vshrl.u32 %v2124, 7
          %v2126 = vsub.s32 %v2019, %v2125
          %v2127 = vrot.slane %v1954, %v2126
          %v2128 = vsel %vm2024, %v2127, %v2123
          %v2129 = vlaneseq
          %v2130 = vshrl.u32 %v2129, 7
          %v2131 = vsub.s32 %v2026, %v2130
          %v2132 = vrot.slane %v1955, %v2131
          %v2133 = vsel %vm2031, %v2132, %v2128
          %v2134 = vlaneseq
          %v2135 = vshrl.u32 %v2134, 7
          %v2136 = vsub.s32 %v2033, %v2135
          %v2137 = vrot.slane %v1956, %v2136
          %v2138 = vsel %vm2038, %v2137, %v2133
          %v2139 = vlaneseq
          %v2140 = vshrl.u32 %v2139, 7
          %v2141 = vsub.s32 %v2040, %v2140
          %v2142 = vrot.slane %v1957, %v2141
          %v2143 = vsel %vm2045, %v2142, %v2138
          %v2144 = vlaneseq
          %v2145 = vshrl.u32 %v2144, 7
          %v2146 = vsub.s32 %v2047, %v2145
          %v2147 = vrot.slane %v1958, %v2146
          %v2148 = vsel %vm2052, %v2147, %v2143
          %v2149 = vlaneseq
          %v2150 = vshrl.u32 %v2149, 7
          %v2151 = vsub.s32 %v2054, %v2150
          %v2152 = vrot.slane %v1959, %v2151
          %v2153 = vsel %vm2059, %v2152, %v2148
          %v2154 = vlaneseq
          %v2155 = vshrl.u32 %v2154, 7
          %v2156 = vsub.s32 %v2061, %v2155
          %v2157 = vrot.slane %v1960, %v2156
          %v2158 = vsel %vm2066, %v2157, %v2153
          %v2159 = vlaneseq
          %v2160 = vshrl.u32 %v2159, 7
          %v2161 = vsub.s32 %v2068, %v2160
          %v2162 = vrot.slane %v1961, %v2161
          %v2163 = vsel %vm2073, %v2162, %v2158
          %v2164 = vlaneseq
          %v2165 = vshrl.u32 %v2164, 7
          %v2166 = vsub.s32 %v2075, %v2165
          %v2167 = vrot.slane %v1962, %v2166
          %v2168 = vsel %vm2080, %v2167, %v2163
          %v2169 = vlaneseq
          %v2170 = vshrl.u32 %v2169, 7
          %v2171 = vsub.s32 %v2082, %v2170
          %v2172 = vrot.slane %v1963, %v2171
          %v2173 = vsel %vm2087, %v2172, %v2168
          %v2174 = vlaneseq
          %v2175 = vshrl.u32 %v2174, 7
          %v2176 = vsub.s32 %v2089, %v2175
          %v2177 = vrot.slane %v1964, %v2176
          %v2178 = vsel %vm2094, %v2177, %v2173
          %v2179 = vlaneseq
          %v2180 = vshrl.u32 %v2179, 7
          %v2181 = vsub.s32 %v2096, %v2180
          %v2182 = vrot.slane %v1965, %v2181
          %v2183 = vsel %vm2101, %v2182, %v2178
          %v2184 = vlaneseq
          %v2185 = vshrl.u32 %v2184, 7
          %v2186 = vsub.s32 %v2103, %v2185
          %v2187 = vrot.slane %v1966, %v2186
          %v2188 = vsel %vm2108, %v2187, %v2183
          %vm2189 = vcmask 1042434
          %v2190 = vsel %vm2189, %v2109, %v2109
          %vm2191 = vcmask 1043459
          %v2192 = vsel %vm2191, %v2109, %v2190
          %vm2193 = vcmask 1044484
          %v2194 = vsel %vm2193, %v2109, %v2192
          %vm2195 = vcmask 1045509
          %v2196 = vsel %vm2195, %v2109, %v2194
          %vm2197 = vcmask 1046534
          %v2198 = vsel %vm2197, %v2109, %v2196
          %vm2199 = vcmask 1047559
          %v2200 = vsel %vm2199, %v2109, %v2198
          %v2201 = vsel %vm2189, %v2188, %v2188
          %v2202 = vsel %vm2191, %v2188, %v2201
          %v2203 = vsel %vm2193, %v2188, %v2202
          %v2204 = vsel %vm2195, %v2188, %v2203
          %v2205 = vsel %vm2197, %v2188, %v2204
          %v2206 = vsel %vm2199, %v2188, %v2205
          %v2209 = vmul.f32 %v1888, %v2200
          %v2210 = vmul.f32 %v1891, %v2200
          %v2211 = vmul.f32 %v1929, %v2206
          %v2212 = vmul.f32 %v1932, %v2206
          %s2213 = smul.u32 %s1107, 32
          %v2214 = vpack.c.bf16 %v2210, %v2209
          %v2215 = vpack.c.bf16 %v2212, %v2211
          %s2216 = sshra.s32 %s2213, 4
          %s2217 = sand.u32 %s2213, 15
          %s2218 = smul.addr %s2216, 8
          %s2219 = scalar_lea.vmem [#allocation6], %s2218
          %2220 = vst [vmem:[%s2219] sm:$0xff] %v2214
          %2221 = vst [vmem:[%s2219 + $0x8] sm:$0xff] %v2215
        $region76: #{tpu_custom_call.1} parent=55 // loop_footer
          %s1111 = sadd.s32 1, %s1107
        $region77: #{tpu_custom_call.1} parent=55 // loop_footer_branch
          %1106 = sbr.rel target = $region73
        $region78: #{tpu_custom_call.1} parent=55 // loop_exit
          _
        %v2222 = vld [vmem:[%s7] sm:$0xf]
        %v2223 = vld [vmem:[%s7 + $0x4] sm:$0xf]
        %v2224 = vld [vmem:[%s7 + $0x8] sm:$0xf]
        %v2225 = vld [vmem:[%s7 + $0xc] sm:$0xf]
        %v2226 = vld [vmem:[%s7 + $0x10] sm:$0xf]
        %v2227 = vld [vmem:[%s7 + $0x14] sm:$0xf]
        %v2228 = vld [vmem:[%s7 + $0x18] sm:$0xf]
        %v2229 = vld [vmem:[%s7 + $0x1c] sm:$0xf]
        %v2230 = vld [vmem:[#allocation6] sm:$0xff]
        %v2231 = vld [vmem:[#allocation6 + $0x8] sm:$0xff]
        %v2232 = vld [vmem:[#allocation6 + $0x10] sm:$0xff]
        %v2233 = vld [vmem:[#allocation6 + $0x18] sm:$0xff]
        %v2234 = vld [vmem:[%s8] sm:$0xff]
        %v2235 = vld [vmem:[%s8 + $0x8] sm:$0xff]
        %v2236 = vld [vmem:[%s8 + $0x10] sm:$0xff]
        %v2237 = vld [vmem:[%s8 + $0x18] sm:$0xff]
        %v2238 = vld [vmem:[%s8 + $0x20] sm:$0xff]
        %v2239 = vld [vmem:[%s8 + $0x28] sm:$0xff]
        %v2240 = vld [vmem:[%s8 + $0x30] sm:$0xff]
        %v2241 = vld [vmem:[%s8 + $0x38] sm:$0xff]
        %2243 = vset.pattern.permute.xlu0 0
        %2244 = vperm.xlu0 %2243, %v2234
        %v2245 = vpop.permute.xlu0 %2244
        %2248 = vset.pattern.permute.xlu0 0
        %2249 = vperm.xlu0 %2248, %v2235
        %v2250 = vpop.permute.xlu0 %2249
        %2253 = vset.pattern.permute.xlu0 0
        %2254 = vperm.xlu0 %2253, %v2236
        %v2255 = vpop.permute.xlu0 %2254
        %2258 = vset.pattern.permute.xlu0 0
        %2259 = vperm.xlu0 %2258, %v2237
        %v2260 = vpop.permute.xlu0 %2259
        %2263 = vset.pattern.permute.xlu0 0
        %2264 = vperm.xlu0 %2263, %v2238
        %v2265 = vpop.permute.xlu0 %2264
        %2268 = vset.pattern.permute.xlu0 0
        %2269 = vperm.xlu0 %2268, %v2239
        %v2270 = vpop.permute.xlu0 %2269
        %2273 = vset.pattern.permute.xlu0 0
        %2274 = vperm.xlu0 %2273, %v2240
        %v2275 = vpop.permute.xlu0 %2274
        %2278 = vset.pattern.permute.xlu0 0
        %2279 = vperm.xlu0 %2278, %v2241
        %v2280 = vpop.permute.xlu0 %2279
        %v2290 = vunpack.c.l.b16 %v2222
        %v2291 = vunpack.c.l.b16 %v2223
        %v2292 = vunpack.c.l.b16 %v2224
        %v2293 = vunpack.c.l.b16 %v2225
        %v2294 = vunpack.c.l.b16 %v2226
        %v2295 = vunpack.c.l.b16 %v2227
        %v2296 = vunpack.c.l.b16 %v2228
        %v2297 = vunpack.c.l.b16 %v2229
        %v2298 = vpack.c.b16 %v2291, %v2290
        %v2299 = vpack.c.b16 %v2293, %v2292
        %v2300 = vpack.c.b16 %v2295, %v2294
        %v2301 = vpack.c.b16 %v2297, %v2296
        %v2303 = vsel %vm1020, %v2298, 0
        %v2306 = vsel %vm1020, %v2299, 0
        %v2309 = vsel %vm1020, %v2300, 0
        %v2312 = vsel %vm1020, %v2301, 0
        %2314 = vmatprep.subr.bf16.mxu0 0
        %2315 = vmatpush1.bf16.msra.mxu0 %v2230
        %2316 = vmatprep.subr.bf16.mxu0 0
        %2317 = vmatpush1.bf16.msra.mxu0 %v2231
        %2318 = vmatprep.subr.bf16.mxu0 0
        %2319 = vmatpush1.bf16.msra.mxu0 %v2232
        %2320 = vmatprep.subr.bf16.mxu0 0
        %2321 = vmatpush1.bf16.msra.mxu0 %v2233
        %2322 = vmatprep.subr.bf16.mxu0 0
        %2323 = vmatpush1.bf16.msra.mxu0 0
        %2324 = vmatprep.subr.bf16.mxu0 0
        %2325 = vmatpush1.bf16.msra.mxu0 0
        %2326 = vmatprep.subr.bf16.mxu0 0
        %2327 = vmatpush1.bf16.msra.mxu0 0
        %2328 = vmatprep.subr.bf16.mxu0 0
        %2329 = vmatpush1.bf16.msra.mxu0 0
        %2330 = vmatprep.subr.bf16.mxu0 0
        %2331 = vmatpush1.bf16.msra.mxu0 0
        %2332 = vmatprep.subr.bf16.mxu0 0
        %2333 = vmatpush1.bf16.msra.mxu0 0
        %2334 = vmatprep.subr.bf16.mxu0 0
        %2335 = vmatpush1.bf16.msra.mxu0 0
        %2336 = vmatprep.subr.bf16.mxu0 0
        %2337 = vmatpush1.bf16.msra.mxu0 0
        %2338 = vmatprep.subr.bf16.mxu0 0
        %2339 = vmatpush1.bf16.msra.mxu0 0
        %2340 = vmatprep.subr.bf16.mxu0 0
        %2341 = vmatpush1.bf16.msra.mxu0 0
        %2342 = vmatprep.subr.bf16.mxu0 0
        %2343 = vmatpush1.bf16.msra.mxu0 0
        %2344 = vmatprep.subr.bf16.mxu0 0
        %2345 = vmatpush1.bf16.msra.mxu0 0
        %2346 = vmatprep.mubr.bf16.mxu0 0
        %2347 = vmatmul.mubr.bf16.gmra.mrb[0].mxu0 %v2303
        %v2348 = vpop.f32.mrb[0].mxu0
        %v2349 = vadd.f32 %v2245, %v2348
        %v2350 = vpop.f32.mrb[0].mxu0
        %v2351 = vpop.f32.mrb[0].mxu0
        %v2352 = vadd.f32 %v2250, %v2351
        %v2353 = vpop.f32.mrb[0].mxu0
        %2354 = vmatprep.mubr.bf16.mxu0 0
        %2355 = vmatmul.mubr.bf16.gmra.mrb[0].mxu0 %v2306
        %v2356 = vpop.f32.mrb[0].mxu0
        %v2357 = vadd.f32 %v2255, %v2356
        %v2358 = vpop.f32.mrb[0].mxu0
        %v2359 = vpop.f32.mrb[0].mxu0
        %v2360 = vadd.f32 %v2260, %v2359
        %v2361 = vpop.f32.mrb[0].mxu0
        %2362 = vmatprep.mubr.bf16.mxu0 0
        %2363 = vmatmul.mubr.bf16.gmra.mrb[0].mxu0 %v2309
        %v2364 = vpop.f32.mrb[0].mxu0
        %v2365 = vadd.f32 %v2265, %v2364
        %v2366 = vpop.f32.mrb[0].mxu0
        %v2367 = vpop.f32.mrb[0].mxu0
        %v2368 = vadd.f32 %v2270, %v2367
        %v2369 = vpop.f32.mrb[0].mxu0
        %2370 = vmatprep.mubr.bf16.mxu0 0
        %2371 = vmatmul.mubr.bf16.gmra.mrb[0].mxu0 %v2312
        %v2372 = vpop.f32.mrb[0].mxu0
        %v2373 = vadd.f32 %v2275, %v2372
        %v2374 = vpop.f32.mrb[0].mxu0
        %v2375 = vpop.f32.mrb[0].mxu0
        %v2376 = vadd.f32 %v2280, %v2375
        %v2377 = vpop.f32.mrb[0].mxu0
        %2378 = vdwg.mxu0
        %s2379 = smul.addr %s936, 8
        %s2380 = scalar_lea.vmem %s330, %s2379 [#allocation7]
        %v2381 = vld [vmem:[%s2380] sm:$0xff]
        %v2382 = vld [vmem:[%s2380 + $0x10] sm:$0xff]
        %v2383 = vld [vmem:[%s2380 + $0x20] sm:$0xff]
        %v2384 = vld [vmem:[%s2380 + $0x30] sm:$0xff]
        %v2385 = vld [vmem:[%s2380 + $0x40] sm:$0xff]
        %v2386 = vld [vmem:[%s2380 + $0x50] sm:$0xff]
        %v2387 = vld [vmem:[%s2380 + $0x60] sm:$0xff]
        %v2388 = vld [vmem:[%s2380 + $0x70] sm:$0xff]
        %v2389 = vadd.f32 %v2381, %v2349
        %v2390 = vadd.f32 %v2382, %v2352
        %v2391 = vadd.f32 %v2383, %v2357
        %v2392 = vadd.f32 %v2384, %v2360
        %v2393 = vadd.f32 %v2385, %v2365
        %v2394 = vadd.f32 %v2386, %v2368
        %v2395 = vadd.f32 %v2387, %v2373
        %v2396 = vadd.f32 %v2388, %v2376
        %2397 = vst [vmem:[%s364] sm:$0xff] %v2389
        %2398 = vst [vmem:[%s364 + $0x8] sm:$0xff] %v2390
        %2399 = vst [vmem:[%s364 + $0x10] sm:$0xff] %v2391
        %2400 = vst [vmem:[%s364 + $0x18] sm:$0xff] %v2392
        %2401 = vst [vmem:[%s364 + $0x20] sm:$0xff] %v2393
        %2402 = vst [vmem:[%s364 + $0x28] sm:$0xff] %v2394
        %2403 = vst [vmem:[%s364 + $0x30] sm:$0xff] %v2395
        %2404 = vst [vmem:[%s364 + $0x38] sm:$0xff] %v2396
        %s2405 = sand.u32 %s242, 1
        %s2406 = scalar_lea.sflag [#allocation9], %s2405
        %s2407 = sand.u32 %s242, 1
        %s2408 = smul.addr %s2407, 64
        %s2409 = scalar_lea.vmem [#allocation10], %s2408
        // Predicated region
        $region79: #{tpu_custom_call.1} parent=55 // pred_check
          %p2410 = pneg %p252
        $region80: #{tpu_custom_call.1} parent=55 // pred_check_branch
          %2412 = sbr.rel (%p2410) target = $region82
        $region81: #{tpu_custom_call.1} parent=55 // pred_region
          %s2414 = ssub.s32 1024, 1024
          %2415 = vsyncadd %s2406, %s2414
          %s2416 = smul.addr %s30, 16
          %s2417 = sadd.s32 %s31, %s2416
          %s2418 = smul.addr %s2417, 128
          %s2419 = scalar_lea.hbm %s9, %s2418
          %s2420 = sshll.u32 %s2409, 4
          %s2421 = int_to_ptr.vmem [resolvable:$true] %s2420
          %2426 = dma.vmem_to_hbm [thread:$0]  %s2421, 1024, %s2419, %s2406, 128, 256, 8
        $region82: #{tpu_custom_call.1} parent=55 // pred_fallthru
          _
      $region56: #{tpu_custom_call.1} parent=5 // pred_fallthru
        _
      %p2427 = scmp.le.s32.totalorder 2, %s21
      // Predicated region
      $region83: #{tpu_custom_call.1} parent=5 // pred_check
        %p2428 = pneg %p2427
      $region84: #{tpu_custom_call.1} parent=5 // pred_check_branch
        %2430 = sbr.rel (%p2428) target = $region86
      $region85: #{tpu_custom_call.1} parent=5 // pred_region
        %s2431 = ssub.s32 %s21, 2
        // Predicated region
        $region87: #{tpu_custom_call.1} parent=85 // pred_check
          %p2432 = pneg %p258
        $region88: #{tpu_custom_call.1} parent=85 // pred_check_branch
          %2434 = sbr.rel (%p2432) target = $region90
        $region89: #{tpu_custom_call.1} parent=85 // pred_region
          %s2435 = sand.u32 %s243, 1
          %s2436 = scalar_lea.sflag [#allocation9], %s2435
          %s2437 = sand.u32 %s243, 1
          %s2438 = smul.addr %s2437, 64
          %s2439 = scalar_lea.vmem [#allocation10], %s2438
          %2440 = dma.done %s2436, 1024
        $region90: #{tpu_custom_call.1} parent=85 // pred_fallthru
          _
      $region86: #{tpu_custom_call.1} parent=5 // pred_fallthru
        _
    $region6: #{tpu_custom_call.1} parent=1 // loop_footer
      %s25 = sadd.s32 1, %s21
    $region7: #{tpu_custom_call.1} parent=1 // loop_footer_branch
      %20 = sbr.rel target = $region3
    $region8: #{tpu_custom_call.1} parent=1 // loop_exit
      _
    %2441 = vsyncpa [#allocation8], 1
    %s2442 = scalar_lea.sflag [#allocation8], 1
    %2443 = vsyncpa %s2442, 1
    %2444 = vsyncpa [#allocation9], 1
    %s2445 = scalar_lea.sflag [#allocation9], 1
    %2446 = vsyncpa %s2445, 1

</llo_original>
